<compile_context>
chip_gen: v6e
topology: v6e:2x2x1
jax: 0.10.0
libtpu: 0.0.40
codegen_flags: <defaults>
</compile_context>

<pallas_src>
import math

import jax
import jax.numpy as jnp
from jax.experimental import pallas as pl
from jax.experimental.pallas import tpu as pltpu

# PyTorch-style parameter names (weights [out, in], biases [1, out]).
RAW_PARAM_ORDER = [
    "w_ih_e", "w_hh_e", "b_e",          # encoder LSTM
    "w_a1", "b_a1", "w_a2", "b_a2",     # decoder attention MLP
    "w_ih_d", "w_hh_d", "b_d",          # decoder LSTM
    "w_fc", "b_fc",                     # decoder fc
    "w_ff", "b_ff",                     # decoder fc_final
]

# Kernel-ready (transposed / gate-reordered / folded) parameter names.
PREP_PARAM_ORDER = [
    "w_ih_e", "w_hh_e", "b_e",
    "w_a1_hc", "w_a1_e", "b_a1", "w_a2",
    "w_cg", "w_yg", "b_g", "w_hh_d",
    "w_ff", "b_ff",
]


# -----------------------------------------------------------------------------
# Pure-JAX reference in the ORIGINAL (PyTorch-style) formulation.  Used only as
# the correctness oracle for the restructured kernel math.
# -----------------------------------------------------------------------------
def _reference_math(x, w_ih_e, w_hh_e, b_e, w_a1, b_a1, w_a2, b_a2,
                    w_ih_d, w_hh_d, b_d, w_fc, b_fc, w_ff, b_ff):
  B, T, F = x.shape
  H = w_hh_e.shape[1]
  f32 = jnp.float32

  def lstm_cell(x_t, h, c, w_ih, w_hh, b):
    gates = (jnp.dot(x_t, w_ih.T, preferred_element_type=f32)
             + jnp.dot(h, w_hh.T, preferred_element_type=f32) + b)
    i = jax.nn.sigmoid(gates[:, 0 * H:1 * H])
    f = jax.nn.sigmoid(gates[:, 1 * H:2 * H])
    g = jnp.tanh(gates[:, 2 * H:3 * H])
    o = jax.nn.sigmoid(gates[:, 3 * H:4 * H])
    c_new = f * c + i * g
    h_new = o * jnp.tanh(c_new)
    return h_new, c_new

  h = jnp.zeros((B, H), f32)
  c = jnp.zeros((B, H), f32)
  enc_steps = []
  for t in range(T):
    h, c = lstm_cell(x[:, t, :], h, c, w_ih_e, w_hh_e, b_e)
    enc_steps.append(h)

  w_a1_h = w_a1[:, 0 * H:1 * H]
  w_a1_c = w_a1[:, 1 * H:2 * H]
  w_a1_e = w_a1[:, 2 * H:3 * H]
  encp_steps = [jnp.dot(e, w_a1_e.T, preferred_element_type=f32) + b_a1
                for e in enc_steps]

  hd = jnp.zeros((B, H), f32)
  cd = jnp.zeros((B, H), f32)
  context = jnp.zeros((B, H), f32)
  for t in range(T):
    hc_part = (jnp.dot(hd, w_a1_h.T, preferred_element_type=f32)
               + jnp.dot(cd, w_a1_c.T, preferred_element_type=f32))
    s_list = []
    for j in range(T):
      zj = jnp.tanh(hc_part + encp_steps[j])
      sj = jnp.sum(zj * w_a2, axis=-1, keepdims=True) + b_a2
      s_list.append(sj)
    m = s_list[0]
    for j in range(1, T):
      m = jnp.maximum(m, s_list[j])
    e_list = [jnp.exp(s - m) for s in s_list]
    denom = e_list[0]
    num = e_list[0] * enc_steps[0]
    for j in range(1, T):
      denom = denom + e_list[j]
      num = num + e_list[j] * enc_steps[j]
    context = num / denom

    y_t = x[:, t, :]
    y_tilde = (jnp.dot(context, w_fc[:, :H].T, preferred_element_type=f32)
               + jnp.dot(y_t, w_fc[:, H:].T, preferred_element_type=f32)
               + b_fc)
    hd, cd = lstm_cell(y_tilde, hd, cd, w_ih_d, w_hh_d, b_d)

  out = (jnp.dot(hd, w_ff[:, :H].T, preferred_element_type=f32)
         + jnp.dot(context, w_ff[:, H:].T, preferred_element_type=f32)
         + b_ff)
  return out


# -----------------------------------------------------------------------------
# Pallas kernel (operates on host-prepped / folded weights).
# -----------------------------------------------------------------------------
def attn_lstm_kernel(x_ref, w_ih_e_ref, w_hh_e_ref, b_e_ref,
                     w_a1_hc_ref, w_a1_e_ref, b_a1_ref, w_a2_ref,
                     w_cg_ref, w_yg_ref, b_g_ref, w_hh_d_ref,
                     w_ff_ref, b_ff_ref,
                     out_ref, enc_scr, encp_scr):
  f32 = jnp.float32
  B, T, F = x_ref.shape
  H = w_hh_e_ref.shape[0]
  dot = lambda a, b: jnp.dot(a, b, preferred_element_type=f32)

  def lstm_gates(gates, c):
    # Gate lanes prepped as (i, f, o, g): one sigmoid over [0, 3H), one tanh
    # over [3H, 4H) instead of four sliced 32-lane activations.
    s = jax.nn.sigmoid(gates[:, :3 * H])
    g = jnp.tanh(gates[:, 3 * H:])
    i, f, o = s[:, :H], s[:, H:2 * H], s[:, 2 * H:3 * H]
    c_new = f * c + i * g
    h_new = o * jnp.tanh(c_new)
    return h_new, c_new

  # Hoisted input projections (single batched MXU ops, biases folded):
  #   * encoder LSTM x_t @ W_ih for all T steps,
  #   * decoder gate pre-activation from y_history (fc folded into W_ih_d,
  #     so y_tilde never exists).
  x2d = x_ref[...].reshape(B * T, F)
  xp_enc = (dot(x2d, w_ih_e_ref[...]) + b_e_ref[...]).reshape(B, T, 4 * H)
  xg_dec = (dot(x2d, w_yg_ref[...]) + b_g_ref[...]).reshape(B, T, 4 * H)

  # ---- Encoder: only h @ W_hh remains on the serial recurrence. ----
  h = jnp.zeros((B, H), f32)
  c = jnp.zeros((B, H), f32)
  for t in range(T):
    gates = xp_enc[:, t, :] + dot(h, w_hh_e_ref[...])
    h, c = lstm_gates(gates, c)
    enc_scr[:, t, :] = h                     # park encoder states in VMEM

  # Encoder contribution to the attention MLP (bias folded), batched once and
  # parked in VMEM scratch so the unrolled decoder loop re-loads it cheaply
  # instead of keeping 8 live (B, H) values in vregs.
  encp_scr[...] = (dot(enc_scr[...].reshape(B * T, H), w_a1_e_ref[...])
                   + b_a1_ref[...]).reshape(B, T, H)

  # ---- Decoder: batched attention + one LSTM step per time step. ----
  hd = jnp.zeros((B, H), f32)
  cd = jnp.zeros((B, H), f32)
  context = jnp.zeros((B, H), f32)
  for t in range(T):
    enc = enc_scr[...]                       # cheap VMEM re-loads (remat)
    encp = encp_scr[...]
    # One fused [h|c] @ W dot (single MXU push/pop instead of two).
    hc_part = dot(jnp.concatenate([hd, cd], axis=-1), w_a1_hc_ref[...])
    z = jnp.tanh(hc_part[:, None, :] + encp)                    # (B, T, H)
    # Scores via elementwise mult + XLU lane reduce (no N=1 MXU matmul, no
    # B*T reshapes).  b_a2 was dropped host-side: it cancels in the softmax.
    scores = jnp.sum(z * w_a2_ref[...], axis=-1, keepdims=True)  # (B, T, 1)
    m = jnp.max(scores, axis=1, keepdims=True)                   # (B, 1, 1)
    e = jnp.exp(scores - m)                                      # (B, T, 1)
    recip = pl.reciprocal(jnp.sum(e, axis=1), approx=True)       # (B, 1) EUP
    context = jnp.sum(e * enc, axis=1) * recip                   # (B, H)
    # fc folded into the decoder gate projection: 2 per-step matmuls total,
    # written as one additive chain (MRB-friendly on v7x).
    gates = (dot(context, w_cg_ref[...]) + dot(hd, w_hh_d_ref[...])
             + xg_dec[:, t, :])
    hd, cd = lstm_gates(gates, cd)

  # fc_final(cat([hidden, context])) as a single fused dot.
  out = (dot(jnp.concatenate([hd, context], axis=-1), w_ff_ref[...])
         + b_ff_ref[...])
  out_ref[...] = out.astype(out_ref.dtype)


# -----------------------------------------------------------------------------
# Host-side weight prep (outside the kernel; done once per set of params).
# -----------------------------------------------------------------------------
def prep_params(params, H):
  """Transpose weights to [in, out], reorder LSTM gates (i,f,g,o)->(i,f,o,g),
  fuse the attention-layer h/c halves and fc_final into single matrices, fold
  the decoder fc into the decoder LSTM input projection, and drop b_a2 (it
  cancels in the softmax)."""
  def reorder_rows(w):   # [4H, in], PyTorch gate order -> (i, f, o, g)
    return jnp.concatenate([w[:H], w[H:2 * H], w[3 * H:], w[2 * H:3 * H]], 0)

  def reorder_cols(b):   # [1, 4H]
    return jnp.concatenate(
        [b[:, :H], b[:, H:2 * H], b[:, 3 * H:], b[:, 2 * H:3 * H]], 1)

  p = params
  w_ih_d_t = reorder_rows(p["w_ih_d"]).T        # [F, 4H]
  b_d_r = reorder_cols(p["b_d"])                # [1, 4H]
  w_fc_c_t = p["w_fc"][:, :H].T                 # [H, F]
  w_fc_y_t = p["w_fc"][:, H:].T                 # [F, F]
  return dict(
      w_ih_e=reorder_rows(p["w_ih_e"]).T,       # [F, 4H]
      w_hh_e=reorder_rows(p["w_hh_e"]).T,       # [H, 4H]
      b_e=reorder_cols(p["b_e"]),               # [1, 4H]
      w_a1_hc=p["w_a1"][:, :2 * H].T,           # [2H, H]  (hidden | cell)
      w_a1_e=p["w_a1"][:, 2 * H:].T,            # [H, H]
      b_a1=p["b_a1"],                           # [1, H]
      w_a2=p["w_a2"].reshape(1, 1, H),          # [1, 1, H] (b_a2 dropped)
      w_cg=jnp.dot(w_fc_c_t, w_ih_d_t),         # [H, 4H]   context -> gates
      w_yg=jnp.dot(w_fc_y_t, w_ih_d_t),         # [F, 4H]   y_history -> gates
      b_g=jnp.dot(p["b_fc"], w_ih_d_t) + b_d_r, # [1, 4H]   folded gate bias
      w_hh_d=reorder_rows(p["w_hh_d"]).T,       # [H, 4H]
      w_ff=p["w_ff"].T,                         # [2H, F]   (hidden | context)
      b_ff=p["b_ff"],                           # [1, F]
  )


def attn_lstm_forward(x, prepped):
  B, T, F = x.shape
  H = prepped["w_hh_e"].shape[0]
  args = [x] + [prepped[k] for k in PREP_PARAM_ORDER]
  vmem = pl.BlockSpec(memory_space=pltpu.MemorySpace.VMEM)
  # Grid-less: entire working set (<100 KB) fits comfortably in VMEM on
  # v5e/v6e/v7x.  See module docstring for the batch-grid variant used once B
  # is non-toy (required to use both v7x TensorCores).
  return pl.pallas_call(
      attn_lstm_kernel,
      out_shape=jax.ShapeDtypeStruct((B, F), jnp.float32),
      in_specs=[vmem] * len(args),
      out_specs=pl.BlockSpec(memory_space=pltpu.MemorySpace.VMEM),
      scratch_shapes=[pltpu.VMEM((B, T, H), jnp.float32),   # enc states
                      pltpu.VMEM((B, T, H), jnp.float32)],  # enc @ w_a1_e
  )(*args)


def make_params(key, H, F):
  """Deterministic synthetic parameters (PyTorch-default-style inits)."""
  ks = jax.random.split(key, 16)
  u = lambda k, shape, s: jax.random.uniform(k, shape, jnp.float32, -s, s)
  sH = 1.0 / math.sqrt(H)
  s3H = 1.0 / math.sqrt(3 * H)
  return dict(
      # encoder LSTM(input=F, hidden=H)
      w_ih_e=u(ks[0], (4 * H, F), sH),
      w_hh_e=u(ks[1], (4 * H, H), sH),
      b_e=u(ks[2], (1, 4 * H), sH) + u(ks[3], (1, 4 * H), sH),  # b_ih + b_hh
      # attn_layer: Linear(3H, H) -> Tanh -> Linear(H, 1)
      w_a1=u(ks[4], (H, 3 * H), s3H),
      b_a1=u(ks[5], (1, H), s3H),
      w_a2=u(ks[6], (1, H), sH),
      b_a2=u(ks[7], (1, 1), sH),
      # decoder LSTM(input=F, hidden=H)
      w_ih_d=u(ks[8], (4 * H, F), sH),
      w_hh_d=u(ks[9], (4 * H, H), sH),
      b_d=u(ks[10], (1, 4 * H), sH) + u(ks[11], (1, 4 * H), sH),
      # fc: Linear(H + F, F), weight.normal_() as in the module
      w_fc=jax.random.normal(ks[12], (F, H + F), jnp.float32),
      b_fc=u(ks[13], (1, F), 1.0 / math.sqrt(H + F)),
      # fc_final: Linear(2H, F)
      w_ff=u(ks[14], (F, 2 * H), 1.0 / math.sqrt(2 * H)),
      b_ff=u(ks[15], (1, F), 1.0 / math.sqrt(2 * H)),
  )


if __name__ == "__main__":
  # window == T; out_feats == input_size == 4 (required by the module's fc).
  B, T, F, H = 2, 8, 4, 32
  key = jax.random.PRNGKey(0)
  kx, kp = jax.random.split(key)
  x = jax.random.normal(kx, (B, T, F), jnp.float32)
  params = make_params(kp, H, F)

  prepped = prep_params(params, H)              # one-time, outside the kernel
  out = jax.jit(attn_lstm_forward)(x, prepped)
  out = jax.block_until_ready(out)

  # Independent pure-JAX reference in the original PyTorch-style formulation
  # (un-transposed weights, (i,f,g,o) gates, per-j attention loop, unfused fc).
  ref = _reference_math(x, *[params[k] for k in RAW_PARAM_ORDER])
  assert out.shape == (B, F)
  assert bool(jnp.all(jnp.isfinite(out)))
  assert bool(jnp.allclose(out, ref, rtol=1e-3, atol=1e-3))

  print("KERNEL_OK")
</pallas_src>

<mosaic_0001>
module attributes {stable_mosaic.version = 11 : i64} {
  func.func @attn_lstm_kernel(%arg0: memref<2x8x4xf32, #tpu.memory_space<vmem>>, %arg1: memref<4x128xf32, #tpu.memory_space<vmem>>, %arg2: memref<32x128xf32, #tpu.memory_space<vmem>>, %arg3: memref<1x128xf32, #tpu.memory_space<vmem>>, %arg4: memref<64x32xf32, #tpu.memory_space<vmem>>, %arg5: memref<32x32xf32, #tpu.memory_space<vmem>>, %arg6: memref<1x32xf32, #tpu.memory_space<vmem>>, %arg7: memref<1x1x32xf32, #tpu.memory_space<vmem>>, %arg8: memref<32x128xf32, #tpu.memory_space<vmem>>, %arg9: memref<4x128xf32, #tpu.memory_space<vmem>>, %arg10: memref<1x128xf32, #tpu.memory_space<vmem>>, %arg11: memref<32x128xf32, #tpu.memory_space<vmem>>, %arg12: memref<64x4xf32, #tpu.memory_space<vmem>>, %arg13: memref<1x4xf32, #tpu.memory_space<vmem>>, %arg14: memref<2x4xf32, #tpu.memory_space<vmem>>, %arg15: memref<2x8x32xf32, #tpu.memory_space<vmem>>, %arg16: memref<2x8x32xf32, #tpu.memory_space<vmem>>) attributes {dimension_semantics = [], scalar_prefetch = 0 : i64, scratch_operands = 2 : i64, tpu.core_type = #tpu.core_type<tc>} {
    %c0 = arith.constant 0 : index
    %c0_0 = arith.constant 0 : index
    %c0_1 = arith.constant 0 : index
    %0 = vector.load %arg0[%c0, %c0_0, %c0_1] : memref<2x8x4xf32, #tpu.memory_space<vmem>>, vector<2x8x4xf32>
    %1 = vector.shape_cast %0 : vector<2x8x4xf32> to vector<16x4xf32>
    %c0_2 = arith.constant 0 : index
    %c0_3 = arith.constant 0 : index
    %2 = vector.load %arg1[%c0_2, %c0_3] : memref<4x128xf32, #tpu.memory_space<vmem>>, vector<4x128xf32>
    %cst = arith.constant dense<0.000000e+00> : vector<16x128xf32>
    %3 = tpu.matmul %1, %2, %cst {dimension_numbers = #tpu.dot_dimension_numbers<[1], [0], [0], [1], [0, 0, 1, 1], [], []>} : vector<16x4xf32>, vector<4x128xf32>, vector<16x128xf32> -> vector<16x128xf32>
    %c0_4 = arith.constant 0 : index
    %c0_5 = arith.constant 0 : index
    %4 = vector.load %arg3[%c0_4, %c0_5] : memref<1x128xf32, #tpu.memory_space<vmem>>, vector<1x128xf32>
    %5 = vector.broadcast %4 : vector<1x128xf32> to vector<16x128xf32>
    %6 = arith.addf %3, %5 : vector<16x128xf32>
    %7 = vector.shape_cast %6 : vector<16x128xf32> to vector<2x8x128xf32>
    %c0_6 = arith.constant 0 : index
    %c0_7 = arith.constant 0 : index
    %8 = vector.load %arg9[%c0_6, %c0_7] : memref<4x128xf32, #tpu.memory_space<vmem>>, vector<4x128xf32>
    %cst_8 = arith.constant dense<0.000000e+00> : vector<16x128xf32>
    %9 = tpu.matmul %1, %8, %cst_8 {dimension_numbers = #tpu.dot_dimension_numbers<[1], [0], [0], [1], [0, 0, 1, 1], [], []>} : vector<16x4xf32>, vector<4x128xf32>, vector<16x128xf32> -> vector<16x128xf32>
    %c0_9 = arith.constant 0 : index
    %c0_10 = arith.constant 0 : index
    %10 = vector.load %arg10[%c0_9, %c0_10] : memref<1x128xf32, #tpu.memory_space<vmem>>, vector<1x128xf32>
    %11 = vector.broadcast %10 : vector<1x128xf32> to vector<16x128xf32>
    %12 = arith.addf %9, %11 : vector<16x128xf32>
    %13 = vector.shape_cast %12 : vector<16x128xf32> to vector<2x8x128xf32>
    %cst_11 = arith.constant 0.000000e+00 : f32
    %14 = vector.broadcast %cst_11 : f32 to vector<2x32xf32>
    %cst_12 = arith.constant 0.000000e+00 : f32
    %15 = vector.broadcast %cst_12 : f32 to vector<2x32xf32>
    %16 = vector.extract_strided_slice %7 {offsets = [0, 0, 0], sizes = [2, 1, 128], strides = [1, 1, 1]} : vector<2x8x128xf32> to vector<2x1x128xf32>
    %17 = vector.shape_cast %16 : vector<2x1x128xf32> to vector<2x128xf32>
    %c0_13 = arith.constant 0 : index
    %c0_14 = arith.constant 0 : index
    %18 = vector.load %arg2[%c0_13, %c0_14] : memref<32x128xf32, #tpu.memory_space<vmem>>, vector<32x128xf32>
    %cst_15 = arith.constant dense<0.000000e+00> : vector<2x128xf32>
    %19 = tpu.matmul %14, %18, %cst_15 {dimension_numbers = #tpu.dot_dimension_numbers<[1], [0], [0], [1], [0, 0, 1, 1], [], []>} : vector<2x32xf32>, vector<32x128xf32>, vector<2x128xf32> -> vector<2x128xf32>
    %20 = arith.addf %17, %19 : vector<2x128xf32>
    %21 = vector.extract_strided_slice %20 {offsets = [0, 0], sizes = [2, 96], strides = [1, 1]} : vector<2x128xf32> to vector<2x96xf32>
    %22 = arith.negf %21 : vector<2x96xf32>
    %23 = math.exp %22 : vector<2x96xf32>
    %cst_16 = arith.constant 1.000000e+00 : f32
    %24 = vector.broadcast %cst_16 : f32 to vector<2x96xf32>
    %25 = arith.addf %24, %23 : vector<2x96xf32>
    %26 = arith.divf %24, %25 : vector<2x96xf32>
    %27 = vector.extract_strided_slice %20 {offsets = [0, 96], sizes = [2, 32], strides = [1, 1]} : vector<2x128xf32> to vector<2x32xf32>
    %28 = math.tanh %27 : vector<2x32xf32>
    %29 = vector.extract_strided_slice %26 {offsets = [0, 0], sizes = [2, 32], strides = [1, 1]} : vector<2x96xf32> to vector<2x32xf32>
    %30 = vector.extract_strided_slice %26 {offsets = [0, 32], sizes = [2, 32], strides = [1, 1]} : vector<2x96xf32> to vector<2x32xf32>
    %31 = vector.extract_strided_slice %26 {offsets = [0, 64], sizes = [2, 32], strides = [1, 1]} : vector<2x96xf32> to vector<2x32xf32>
    %32 = arith.mulf %30, %15 : vector<2x32xf32>
    %33 = arith.mulf %29, %28 : vector<2x32xf32>
    %34 = arith.addf %32, %33 : vector<2x32xf32>
    %35 = math.tanh %34 : vector<2x32xf32>
    %36 = arith.mulf %31, %35 : vector<2x32xf32>
    %c0_17 = arith.constant 0 : index
    %c0_18 = arith.constant 0 : index
    %c0_19 = arith.constant 0 : index
    %37 = vector.load %arg15[%c0_17, %c0_18, %c0_19] : memref<2x8x32xf32, #tpu.memory_space<vmem>>, vector<2x1x32xf32>
    %38 = vector.shape_cast %37 : vector<2x1x32xf32> to vector<2x32xf32>
    %39 = vector.shape_cast %36 : vector<2x32xf32> to vector<2x1x32xf32>
    tpu.vector_store %arg15[%c0_17, %c0_18, %c0_19], %39 {strides = array<i32>} : memref<2x8x32xf32, #tpu.memory_space<vmem>>, vector<2x1x32xf32>,
    %40 = vector.extract_strided_slice %7 {offsets = [0, 1, 0], sizes = [2, 1, 128], strides = [1, 1, 1]} : vector<2x8x128xf32> to vector<2x1x128xf32>
    %41 = vector.shape_cast %40 : vector<2x1x128xf32> to vector<2x128xf32>
    %c0_20 = arith.constant 0 : index
    %c0_21 = arith.constant 0 : index
    %42 = vector.load %arg2[%c0_20, %c0_21] : memref<32x128xf32, #tpu.memory_space<vmem>>, vector<32x128xf32>
    %cst_22 = arith.constant dense<0.000000e+00> : vector<2x128xf32>
    %43 = tpu.matmul %36, %42, %cst_22 {dimension_numbers = #tpu.dot_dimension_numbers<[1], [0], [0], [1], [0, 0, 1, 1], [], []>} : vector<2x32xf32>, vector<32x128xf32>, vector<2x128xf32> -> vector<2x128xf32>
    %44 = arith.addf %41, %43 : vector<2x128xf32>
    %45 = vector.extract_strided_slice %44 {offsets = [0, 0], sizes = [2, 96], strides = [1, 1]} : vector<2x128xf32> to vector<2x96xf32>
    %46 = arith.negf %45 : vector<2x96xf32>
    %47 = math.exp %46 : vector<2x96xf32>
    %cst_23 = arith.constant 1.000000e+00 : f32
    %48 = vector.broadcast %cst_23 : f32 to vector<2x96xf32>
    %49 = arith.addf %48, %47 : vector<2x96xf32>
    %50 = arith.divf %48, %49 : vector<2x96xf32>
    %51 = vector.extract_strided_slice %44 {offsets = [0, 96], sizes = [2, 32], strides = [1, 1]} : vector<2x128xf32> to vector<2x32xf32>
    %52 = math.tanh %51 : vector<2x32xf32>
    %53 = vector.extract_strided_slice %50 {offsets = [0, 0], sizes = [2, 32], strides = [1, 1]} : vector<2x96xf32> to vector<2x32xf32>
    %54 = vector.extract_strided_slice %50 {offsets = [0, 32], sizes = [2, 32], strides = [1, 1]} : vector<2x96xf32> to vector<2x32xf32>
    %55 = vector.extract_strided_slice %50 {offsets = [0, 64], sizes = [2, 32], strides = [1, 1]} : vector<2x96xf32> to vector<2x32xf32>
    %56 = arith.mulf %54, %34 : vector<2x32xf32>
    %57 = arith.mulf %53, %52 : vector<2x32xf32>
    %58 = arith.addf %56, %57 : vector<2x32xf32>
    %59 = math.tanh %58 : vector<2x32xf32>
    %60 = arith.mulf %55, %59 : vector<2x32xf32>
    %c0_24 = arith.constant 0 : index
    %c1 = arith.constant 1 : index
    %c0_25 = arith.constant 0 : index
    %61 = vector.load %arg15[%c0_24, %c1, %c0_25] : memref<2x8x32xf32, #tpu.memory_space<vmem>>, vector<2x1x32xf32>
    %62 = vector.shape_cast %61 : vector<2x1x32xf32> to vector<2x32xf32>
    %63 = vector.shape_cast %60 : vector<2x32xf32> to vector<2x1x32xf32>
    tpu.vector_store %arg15[%c0_24, %c1, %c0_25], %63 {strides = array<i32>} : memref<2x8x32xf32, #tpu.memory_space<vmem>>, vector<2x1x32xf32>,
    %64 = vector.extract_strided_slice %7 {offsets = [0, 2, 0], sizes = [2, 1, 128], strides = [1, 1, 1]} : vector<2x8x128xf32> to vector<2x1x128xf32>
    %65 = vector.shape_cast %64 : vector<2x1x128xf32> to vector<2x128xf32>
    %c0_26 = arith.constant 0 : index
    %c0_27 = arith.constant 0 : index
    %66 = vector.load %arg2[%c0_26, %c0_27] : memref<32x128xf32, #tpu.memory_space<vmem>>, vector<32x128xf32>
    %cst_28 = arith.constant dense<0.000000e+00> : vector<2x128xf32>
    %67 = tpu.matmul %60, %66, %cst_28 {dimension_numbers = #tpu.dot_dimension_numbers<[1], [0], [0], [1], [0, 0, 1, 1], [], []>} : vector<2x32xf32>, vector<32x128xf32>, vector<2x128xf32> -> vector<2x128xf32>
    %68 = arith.addf %65, %67 : vector<2x128xf32>
    %69 = vector.extract_strided_slice %68 {offsets = [0, 0], sizes = [2, 96], strides = [1, 1]} : vector<2x128xf32> to vector<2x96xf32>
    %70 = arith.negf %69 : vector<2x96xf32>
    %71 = math.exp %70 : vector<2x96xf32>
    %cst_29 = arith.constant 1.000000e+00 : f32
    %72 = vector.broadcast %cst_29 : f32 to vector<2x96xf32>
    %73 = arith.addf %72, %71 : vector<2x96xf32>
    %74 = arith.divf %72, %73 : vector<2x96xf32>
    %75 = vector.extract_strided_slice %68 {offsets = [0, 96], sizes = [2, 32], strides = [1, 1]} : vector<2x128xf32> to vector<2x32xf32>
    %76 = math.tanh %75 : vector<2x32xf32>
    %77 = vector.extract_strided_slice %74 {offsets = [0, 0], sizes = [2, 32], strides = [1, 1]} : vector<2x96xf32> to vector<2x32xf32>
    %78 = vector.extract_strided_slice %74 {offsets = [0, 32], sizes = [2, 32], strides = [1, 1]} : vector<2x96xf32> to vector<2x32xf32>
    %79 = vector.extract_strided_slice %74 {offsets = [0, 64], sizes = [2, 32], strides = [1, 1]} : vector<2x96xf32> to vector<2x32xf32>
    %80 = arith.mulf %78, %58 : vector<2x32xf32>
    %81 = arith.mulf %77, %76 : vector<2x32xf32>
    %82 = arith.addf %80, %81 : vector<2x32xf32>
    %83 = math.tanh %82 : vector<2x32xf32>
    %84 = arith.mulf %79, %83 : vector<2x32xf32>
    %c0_30 = arith.constant 0 : index
    %c2 = arith.constant 2 : index
    %c0_31 = arith.constant 0 : index
    %85 = vector.load %arg15[%c0_30, %c2, %c0_31] : memref<2x8x32xf32, #tpu.memory_space<vmem>>, vector<2x1x32xf32>
    %86 = vector.shape_cast %85 : vector<2x1x32xf32> to vector<2x32xf32>
    %87 = vector.shape_cast %84 : vector<2x32xf32> to vector<2x1x32xf32>
    tpu.vector_store %arg15[%c0_30, %c2, %c0_31], %87 {strides = array<i32>} : memref<2x8x32xf32, #tpu.memory_space<vmem>>, vector<2x1x32xf32>,
    %88 = vector.extract_strided_slice %7 {offsets = [0, 3, 0], sizes = [2, 1, 128], strides = [1, 1, 1]} : vector<2x8x128xf32> to vector<2x1x128xf32>
    %89 = vector.shape_cast %88 : vector<2x1x128xf32> to vector<2x128xf32>
    %c0_32 = arith.constant 0 : index
    %c0_33 = arith.constant 0 : index
    %90 = vector.load %arg2[%c0_32, %c0_33] : memref<32x128xf32, #tpu.memory_space<vmem>>, vector<32x128xf32>
    %cst_34 = arith.constant dense<0.000000e+00> : vector<2x128xf32>
    %91 = tpu.matmul %84, %90, %cst_34 {dimension_numbers = #tpu.dot_dimension_numbers<[1], [0], [0], [1], [0, 0, 1, 1], [], []>} : vector<2x32xf32>, vector<32x128xf32>, vector<2x128xf32> -> vector<2x128xf32>
    %92 = arith.addf %89, %91 : vector<2x128xf32>
    %93 = vector.extract_strided_slice %92 {offsets = [0, 0], sizes = [2, 96], strides = [1, 1]} : vector<2x128xf32> to vector<2x96xf32>
    %94 = arith.negf %93 : vector<2x96xf32>
    %95 = math.exp %94 : vector<2x96xf32>
    %cst_35 = arith.constant 1.000000e+00 : f32
    %96 = vector.broadcast %cst_35 : f32 to vector<2x96xf32>
    %97 = arith.addf %96, %95 : vector<2x96xf32>
    %98 = arith.divf %96, %97 : vector<2x96xf32>
    %99 = vector.extract_strided_slice %92 {offsets = [0, 96], sizes = [2, 32], strides = [1, 1]} : vector<2x128xf32> to vector<2x32xf32>
    %100 = math.tanh %99 : vector<2x32xf32>
    %101 = vector.extract_strided_slice %98 {offsets = [0, 0], sizes = [2, 32], strides = [1, 1]} : vector<2x96xf32> to vector<2x32xf32>
    %102 = vector.extract_strided_slice %98 {offsets = [0, 32], sizes = [2, 32], strides = [1, 1]} : vector<2x96xf32> to vector<2x32xf32>
    %103 = vector.extract_strided_slice %98 {offsets = [0, 64], sizes = [2, 32], strides = [1, 1]} : vector<2x96xf32> to vector<2x32xf32>
    %104 = arith.mulf %102, %82 : vector<2x32xf32>
    %105 = arith.mulf %101, %100 : vector<2x32xf32>
    %106 = arith.addf %104, %105 : vector<2x32xf32>
    %107 = math.tanh %106 : vector<2x32xf32>
    %108 = arith.mulf %103, %107 : vector<2x32xf32>
    %c0_36 = arith.constant 0 : index
    %c3 = arith.constant 3 : index
    %c0_37 = arith.constant 0 : index
    %109 = vector.load %arg15[%c0_36, %c3, %c0_37] : memref<2x8x32xf32, #tpu.memory_space<vmem>>, vector<2x1x32xf32>
    %110 = vector.shape_cast %109 : vector<2x1x32xf32> to vector<2x32xf32>
    %111 = vector.shape_cast %108 : vector<2x32xf32> to vector<2x1x32xf32>
    tpu.vector_store %arg15[%c0_36, %c3, %c0_37], %111 {strides = array<i32>} : memref<2x8x32xf32, #tpu.memory_space<vmem>>, vector<2x1x32xf32>,
    %112 = vector.extract_strided_slice %7 {offsets = [0, 4, 0], sizes = [2, 1, 128], strides = [1, 1, 1]} : vector<2x8x128xf32> to vector<2x1x128xf32>
    %113 = vector.shape_cast %112 : vector<2x1x128xf32> to vector<2x128xf32>
    %c0_38 = arith.constant 0 : index
    %c0_39 = arith.constant 0 : index
    %114 = vector.load %arg2[%c0_38, %c0_39] : memref<32x128xf32, #tpu.memory_space<vmem>>, vector<32x128xf32>
    %cst_40 = arith.constant dense<0.000000e+00> : vector<2x128xf32>
    %115 = tpu.matmul %108, %114, %cst_40 {dimension_numbers = #tpu.dot_dimension_numbers<[1], [0], [0], [1], [0, 0, 1, 1], [], []>} : vector<2x32xf32>, vector<32x128xf32>, vector<2x128xf32> -> vector<2x128xf32>
    %116 = arith.addf %113, %115 : vector<2x128xf32>
    %117 = vector.extract_strided_slice %116 {offsets = [0, 0], sizes = [2, 96], strides = [1, 1]} : vector<2x128xf32> to vector<2x96xf32>
    %118 = arith.negf %117 : vector<2x96xf32>
    %119 = math.exp %118 : vector<2x96xf32>
    %cst_41 = arith.constant 1.000000e+00 : f32
    %120 = vector.broadcast %cst_41 : f32 to vector<2x96xf32>
    %121 = arith.addf %120, %119 : vector<2x96xf32>
    %122 = arith.divf %120, %121 : vector<2x96xf32>
    %123 = vector.extract_strided_slice %116 {offsets = [0, 96], sizes = [2, 32], strides = [1, 1]} : vector<2x128xf32> to vector<2x32xf32>
    %124 = math.tanh %123 : vector<2x32xf32>
    %125 = vector.extract_strided_slice %122 {offsets = [0, 0], sizes = [2, 32], strides = [1, 1]} : vector<2x96xf32> to vector<2x32xf32>
    %126 = vector.extract_strided_slice %122 {offsets = [0, 32], sizes = [2, 32], strides = [1, 1]} : vector<2x96xf32> to vector<2x32xf32>
    %127 = vector.extract_strided_slice %122 {offsets = [0, 64], sizes = [2, 32], strides = [1, 1]} : vector<2x96xf32> to vector<2x32xf32>
    %128 = arith.mulf %126, %106 : vector<2x32xf32>
    %129 = arith.mulf %125, %124 : vector<2x32xf32>
    %130 = arith.addf %128, %129 : vector<2x32xf32>
    %131 = math.tanh %130 : vector<2x32xf32>
    %132 = arith.mulf %127, %131 : vector<2x32xf32>
    %c0_42 = arith.constant 0 : index
    %c4 = arith.constant 4 : index
    %c0_43 = arith.constant 0 : index
    %133 = vector.load %arg15[%c0_42, %c4, %c0_43] : memref<2x8x32xf32, #tpu.memory_space<vmem>>, vector<2x1x32xf32>
    %134 = vector.shape_cast %133 : vector<2x1x32xf32> to vector<2x32xf32>
    %135 = vector.shape_cast %132 : vector<2x32xf32> to vector<2x1x32xf32>
    tpu.vector_store %arg15[%c0_42, %c4, %c0_43], %135 {strides = array<i32>} : memref<2x8x32xf32, #tpu.memory_space<vmem>>, vector<2x1x32xf32>,
    %136 = vector.extract_strided_slice %7 {offsets = [0, 5, 0], sizes = [2, 1, 128], strides = [1, 1, 1]} : vector<2x8x128xf32> to vector<2x1x128xf32>
    %137 = vector.shape_cast %136 : vector<2x1x128xf32> to vector<2x128xf32>
    %c0_44 = arith.constant 0 : index
    %c0_45 = arith.constant 0 : index
    %138 = vector.load %arg2[%c0_44, %c0_45] : memref<32x128xf32, #tpu.memory_space<vmem>>, vector<32x128xf32>
    %cst_46 = arith.constant dense<0.000000e+00> : vector<2x128xf32>
    %139 = tpu.matmul %132, %138, %cst_46 {dimension_numbers = #tpu.dot_dimension_numbers<[1], [0], [0], [1], [0, 0, 1, 1], [], []>} : vector<2x32xf32>, vector<32x128xf32>, vector<2x128xf32> -> vector<2x128xf32>
    %140 = arith.addf %137, %139 : vector<2x128xf32>
    %141 = vector.extract_strided_slice %140 {offsets = [0, 0], sizes = [2, 96], strides = [1, 1]} : vector<2x128xf32> to vector<2x96xf32>
    %142 = arith.negf %141 : vector<2x96xf32>
    %143 = math.exp %142 : vector<2x96xf32>
    %cst_47 = arith.constant 1.000000e+00 : f32
    %144 = vector.broadcast %cst_47 : f32 to vector<2x96xf32>
    %145 = arith.addf %144, %143 : vector<2x96xf32>
    %146 = arith.divf %144, %145 : vector<2x96xf32>
    %147 = vector.extract_strided_slice %140 {offsets = [0, 96], sizes = [2, 32], strides = [1, 1]} : vector<2x128xf32> to vector<2x32xf32>
    %148 = math.tanh %147 : vector<2x32xf32>
    %149 = vector.extract_strided_slice %146 {offsets = [0, 0], sizes = [2, 32], strides = [1, 1]} : vector<2x96xf32> to vector<2x32xf32>
    %150 = vector.extract_strided_slice %146 {offsets = [0, 32], sizes = [2, 32], strides = [1, 1]} : vector<2x96xf32> to vector<2x32xf32>
    %151 = vector.extract_strided_slice %146 {offsets = [0, 64], sizes = [2, 32], strides = [1, 1]} : vector<2x96xf32> to vector<2x32xf32>
    %152 = arith.mulf %150, %130 : vector<2x32xf32>
    %153 = arith.mulf %149, %148 : vector<2x32xf32>
    %154 = arith.addf %152, %153 : vector<2x32xf32>
    %155 = math.tanh %154 : vector<2x32xf32>
    %156 = arith.mulf %151, %155 : vector<2x32xf32>
    %c0_48 = arith.constant 0 : index
    %c5 = arith.constant 5 : index
    %c0_49 = arith.constant 0 : index
    %157 = vector.load %arg15[%c0_48, %c5, %c0_49] : memref<2x8x32xf32, #tpu.memory_space<vmem>>, vector<2x1x32xf32>
    %158 = vector.shape_cast %157 : vector<2x1x32xf32> to vector<2x32xf32>
    %159 = vector.shape_cast %156 : vector<2x32xf32> to vector<2x1x32xf32>
    tpu.vector_store %arg15[%c0_48, %c5, %c0_49], %159 {strides = array<i32>} : memref<2x8x32xf32, #tpu.memory_space<vmem>>, vector<2x1x32xf32>,
    %160 = vector.extract_strided_slice %7 {offsets = [0, 6, 0], sizes = [2, 1, 128], strides = [1, 1, 1]} : vector<2x8x128xf32> to vector<2x1x128xf32>
    %161 = vector.shape_cast %160 : vector<2x1x128xf32> to vector<2x128xf32>
    %c0_50 = arith.constant 0 : index
    %c0_51 = arith.constant 0 : index
    %162 = vector.load %arg2[%c0_50, %c0_51] : memref<32x128xf32, #tpu.memory_space<vmem>>, vector<32x128xf32>
    %cst_52 = arith.constant dense<0.000000e+00> : vector<2x128xf32>
    %163 = tpu.matmul %156, %162, %cst_52 {dimension_numbers = #tpu.dot_dimension_numbers<[1], [0], [0], [1], [0, 0, 1, 1], [], []>} : vector<2x32xf32>, vector<32x128xf32>, vector<2x128xf32> -> vector<2x128xf32>
    %164 = arith.addf %161, %163 : vector<2x128xf32>
    %165 = vector.extract_strided_slice %164 {offsets = [0, 0], sizes = [2, 96], strides = [1, 1]} : vector<2x128xf32> to vector<2x96xf32>
    %166 = arith.negf %165 : vector<2x96xf32>
    %167 = math.exp %166 : vector<2x96xf32>
    %cst_53 = arith.constant 1.000000e+00 : f32
    %168 = vector.broadcast %cst_53 : f32 to vector<2x96xf32>
    %169 = arith.addf %168, %167 : vector<2x96xf32>
    %170 = arith.divf %168, %169 : vector<2x96xf32>
    %171 = vector.extract_strided_slice %164 {offsets = [0, 96], sizes = [2, 32], strides = [1, 1]} : vector<2x128xf32> to vector<2x32xf32>
    %172 = math.tanh %171 : vector<2x32xf32>
    %173 = vector.extract_strided_slice %170 {offsets = [0, 0], sizes = [2, 32], strides = [1, 1]} : vector<2x96xf32> to vector<2x32xf32>
    %174 = vector.extract_strided_slice %170 {offsets = [0, 32], sizes = [2, 32], strides = [1, 1]} : vector<2x96xf32> to vector<2x32xf32>
    %175 = vector.extract_strided_slice %170 {offsets = [0, 64], sizes = [2, 32], strides = [1, 1]} : vector<2x96xf32> to vector<2x32xf32>
    %176 = arith.mulf %174, %154 : vector<2x32xf32>
    %177 = arith.mulf %173, %172 : vector<2x32xf32>
    %178 = arith.addf %176, %177 : vector<2x32xf32>
    %179 = math.tanh %178 : vector<2x32xf32>
    %180 = arith.mulf %175, %179 : vector<2x32xf32>
    %c0_54 = arith.constant 0 : index
    %c6 = arith.constant 6 : index
    %c0_55 = arith.constant 0 : index
    %181 = vector.load %arg15[%c0_54, %c6, %c0_55] : memref<2x8x32xf32, #tpu.memory_space<vmem>>, vector<2x1x32xf32>
    %182 = vector.shape_cast %181 : vector<2x1x32xf32> to vector<2x32xf32>
    %183 = vector.shape_cast %180 : vector<2x32xf32> to vector<2x1x32xf32>
    tpu.vector_store %arg15[%c0_54, %c6, %c0_55], %183 {strides = array<i32>} : memref<2x8x32xf32, #tpu.memory_space<vmem>>, vector<2x1x32xf32>,
    %184 = vector.extract_strided_slice %7 {offsets = [0, 7, 0], sizes = [2, 1, 128], strides = [1, 1, 1]} : vector<2x8x128xf32> to vector<2x1x128xf32>
    %185 = vector.shape_cast %184 : vector<2x1x128xf32> to vector<2x128xf32>
    %c0_56 = arith.constant 0 : index
    %c0_57 = arith.constant 0 : index
    %186 = vector.load %arg2[%c0_56, %c0_57] : memref<32x128xf32, #tpu.memory_space<vmem>>, vector<32x128xf32>
    %cst_58 = arith.constant dense<0.000000e+00> : vector<2x128xf32>
    %187 = tpu.matmul %180, %186, %cst_58 {dimension_numbers = #tpu.dot_dimension_numbers<[1], [0], [0], [1], [0, 0, 1, 1], [], []>} : vector<2x32xf32>, vector<32x128xf32>, vector<2x128xf32> -> vector<2x128xf32>
    %188 = arith.addf %185, %187 : vector<2x128xf32>
    %189 = vector.extract_strided_slice %188 {offsets = [0, 0], sizes = [2, 96], strides = [1, 1]} : vector<2x128xf32> to vector<2x96xf32>
    %190 = arith.negf %189 : vector<2x96xf32>
    %191 = math.exp %190 : vector<2x96xf32>
    %cst_59 = arith.constant 1.000000e+00 : f32
    %192 = vector.broadcast %cst_59 : f32 to vector<2x96xf32>
    %193 = arith.addf %192, %191 : vector<2x96xf32>
    %194 = arith.divf %192, %193 : vector<2x96xf32>
    %195 = vector.extract_strided_slice %188 {offsets = [0, 96], sizes = [2, 32], strides = [1, 1]} : vector<2x128xf32> to vector<2x32xf32>
    %196 = math.tanh %195 : vector<2x32xf32>
    %197 = vector.extract_strided_slice %194 {offsets = [0, 0], sizes = [2, 32], strides = [1, 1]} : vector<2x96xf32> to vector<2x32xf32>
    %198 = vector.extract_strided_slice %194 {offsets = [0, 32], sizes = [2, 32], strides = [1, 1]} : vector<2x96xf32> to vector<2x32xf32>
    %199 = vector.extract_strided_slice %194 {offsets = [0, 64], sizes = [2, 32], strides = [1, 1]} : vector<2x96xf32> to vector<2x32xf32>
    %200 = arith.mulf %198, %178 : vector<2x32xf32>
    %201 = arith.mulf %197, %196 : vector<2x32xf32>
    %202 = arith.addf %200, %201 : vector<2x32xf32>
    %203 = math.tanh %202 : vector<2x32xf32>
    %204 = arith.mulf %199, %203 : vector<2x32xf32>
    %c0_60 = arith.constant 0 : index
    %c7 = arith.constant 7 : index
    %c0_61 = arith.constant 0 : index
    %205 = vector.load %arg15[%c0_60, %c7, %c0_61] : memref<2x8x32xf32, #tpu.memory_space<vmem>>, vector<2x1x32xf32>
    %206 = vector.shape_cast %205 : vector<2x1x32xf32> to vector<2x32xf32>
    %207 = vector.shape_cast %204 : vector<2x32xf32> to vector<2x1x32xf32>
    tpu.vector_store %arg15[%c0_60, %c7, %c0_61], %207 {strides = array<i32>} : memref<2x8x32xf32, #tpu.memory_space<vmem>>, vector<2x1x32xf32>,
    %c0_62 = arith.constant 0 : index
    %c0_63 = arith.constant 0 : index
    %c0_64 = arith.constant 0 : index
    %208 = vector.load %arg15[%c0_62, %c0_63, %c0_64] : memref<2x8x32xf32, #tpu.memory_space<vmem>>, vector<2x8x32xf32>
    %209 = vector.shape_cast %208 : vector<2x8x32xf32> to vector<16x32xf32>
    %c0_65 = arith.constant 0 : index
    %c0_66 = arith.constant 0 : index
    %210 = vector.load %arg5[%c0_65, %c0_66] : memref<32x32xf32, #tpu.memory_space<vmem>>, vector<32x32xf32>
    %cst_67 = arith.constant dense<0.000000e+00> : vector<16x32xf32>
    %211 = tpu.matmul %209, %210, %cst_67 {dimension_numbers = #tpu.dot_dimension_numbers<[1], [0], [0], [1], [0, 0, 1, 1], [], []>} : vector<16x32xf32>, vector<32x32xf32>, vector<16x32xf32> -> vector<16x32xf32>
    %c0_68 = arith.constant 0 : index
    %c0_69 = arith.constant 0 : index
    %212 = vector.load %arg6[%c0_68, %c0_69] : memref<1x32xf32, #tpu.memory_space<vmem>>, vector<1x32xf32>
    %213 = vector.broadcast %212 : vector<1x32xf32> to vector<16x32xf32>
    %214 = arith.addf %211, %213 : vector<16x32xf32>
    %215 = vector.shape_cast %214 : vector<16x32xf32> to vector<2x8x32xf32>
    %c0_70 = arith.constant 0 : index
    %c0_71 = arith.constant 0 : index
    %c0_72 = arith.constant 0 : index
    %216 = vector.load %arg16[%c0_70, %c0_71, %c0_72] : memref<2x8x32xf32, #tpu.memory_space<vmem>>, vector<2x8x32xf32>
    tpu.vector_store %arg16[%c0_70, %c0_71, %c0_72], %215 {strides = array<i32>} : memref<2x8x32xf32, #tpu.memory_space<vmem>>, vector<2x8x32xf32>,
    %cst_73 = arith.constant 0.000000e+00 : f32
    %217 = vector.broadcast %cst_73 : f32 to vector<2x32xf32>
    %cst_74 = arith.constant 0.000000e+00 : f32
    %218 = vector.broadcast %cst_74 : f32 to vector<2x32xf32>
    %c0_75 = arith.constant 0 : index
    %c0_76 = arith.constant 0 : index
    %c0_77 = arith.constant 0 : index
    %219 = vector.load %arg15[%c0_75, %c0_76, %c0_77] : memref<2x8x32xf32, #tpu.memory_space<vmem>>, vector<2x8x32xf32>
    %c0_78 = arith.constant 0 : index
    %c0_79 = arith.constant 0 : index
    %c0_80 = arith.constant 0 : index
    %220 = vector.load %arg16[%c0_78, %c0_79, %c0_80] : memref<2x8x32xf32, #tpu.memory_space<vmem>>, vector<2x8x32xf32>
    %221 = tpu.concatenate %217, %218 in 1 : vector<2x32xf32>, vector<2x32xf32> -> vector<2x64xf32>
    %c0_81 = arith.constant 0 : index
    %c0_82 = arith.constant 0 : index
    %222 = vector.load %arg4[%c0_81, %c0_82] : memref<64x32xf32, #tpu.memory_space<vmem>>, vector<64x32xf32>
    %cst_83 = arith.constant dense<0.000000e+00> : vector<2x32xf32>
    %223 = tpu.matmul %221, %222, %cst_83 {dimension_numbers = #tpu.dot_dimension_numbers<[1], [0], [0], [1], [0, 0, 1, 1], [], []>} : vector<2x64xf32>, vector<64x32xf32>, vector<2x32xf32> -> vector<2x32xf32>
    %224 = vector.shape_cast %223 : vector<2x32xf32> to vector<2x1x32xf32>
    %225 = vector.broadcast %224 : vector<2x1x32xf32> to vector<2x8x32xf32>
    %226 = arith.addf %225, %220 : vector<2x8x32xf32>
    %227 = math.tanh %226 : vector<2x8x32xf32>
    %c0_84 = arith.constant 0 : index
    %c0_85 = arith.constant 0 : index
    %c0_86 = arith.constant 0 : index
    %228 = vector.load %arg7[%c0_84, %c0_85, %c0_86] : memref<1x1x32xf32, #tpu.memory_space<vmem>>, vector<1x1x32xf32>
    %229 = vector.broadcast %228 : vector<1x1x32xf32> to vector<2x8x32xf32>
    %230 = arith.mulf %227, %229 : vector<2x8x32xf32>
    %cst_87 = arith.constant dense<0.000000e+00> : vector<2x8xf32>
    %231 = vector.multi_reduction <add>, %230, %cst_87 [2] : vector<2x8x32xf32> to vector<2x8xf32>
    %232 = vector.shape_cast %231 : vector<2x8xf32> to vector<2x8x1xf32>
    %cst_88 = arith.constant dense<0xFF800000> : vector<2x1xf32>
    %233 = vector.multi_reduction <maximumf>, %232, %cst_88 [1] : vector<2x8x1xf32> to vector<2x1xf32>
    %234 = vector.shape_cast %233 : vector<2x1xf32> to vector<2x1x1xf32>
    %235 = vector.broadcast %234 : vector<2x1x1xf32> to vector<2x8x1xf32>
    %236 = arith.subf %232, %235 : vector<2x8x1xf32>
    %237 = math.exp %236 : vector<2x8x1xf32>
    %cst_89 = arith.constant dense<0.000000e+00> : vector<2x1xf32>
    %238 = vector.multi_reduction <add>, %237, %cst_89 [1] : vector<2x8x1xf32> to vector<2x1xf32>
    %239 = tpu.reciprocal %238 {approx = true} : vector<2x1xf32> -> vector<2x1xf32>
    %240 = vector.broadcast %237 : vector<2x8x1xf32> to vector<2x8x32xf32>
    %241 = arith.mulf %240, %219 : vector<2x8x32xf32>
    %cst_90 = arith.constant dense<0.000000e+00> : vector<2x32xf32>
    %242 = vector.multi_reduction <add>, %241, %cst_90 [1] : vector<2x8x32xf32> to vector<2x32xf32>
    %243 = vector.broadcast %239 : vector<2x1xf32> to vector<2x32xf32>
    %244 = arith.mulf %242, %243 : vector<2x32xf32>
    %c0_91 = arith.constant 0 : index
    %c0_92 = arith.constant 0 : index
    %245 = vector.load %arg8[%c0_91, %c0_92] : memref<32x128xf32, #tpu.memory_space<vmem>>, vector<32x128xf32>
    %cst_93 = arith.constant dense<0.000000e+00> : vector<2x128xf32>
    %246 = tpu.matmul %244, %245, %cst_93 {dimension_numbers = #tpu.dot_dimension_numbers<[1], [0], [0], [1], [0, 0, 1, 1], [], []>} : vector<2x32xf32>, vector<32x128xf32>, vector<2x128xf32> -> vector<2x128xf32>
    %c0_94 = arith.constant 0 : index
    %c0_95 = arith.constant 0 : index
    %247 = vector.load %arg11[%c0_94, %c0_95] : memref<32x128xf32, #tpu.memory_space<vmem>>, vector<32x128xf32>
    %cst_96 = arith.constant dense<0.000000e+00> : vector<2x128xf32>
    %248 = tpu.matmul %217, %247, %cst_96 {dimension_numbers = #tpu.dot_dimension_numbers<[1], [0], [0], [1], [0, 0, 1, 1], [], []>} : vector<2x32xf32>, vector<32x128xf32>, vector<2x128xf32> -> vector<2x128xf32>
    %249 = arith.addf %246, %248 : vector<2x128xf32>
    %250 = vector.extract_strided_slice %13 {offsets = [0, 0, 0], sizes = [2, 1, 128], strides = [1, 1, 1]} : vector<2x8x128xf32> to vector<2x1x128xf32>
    %251 = vector.shape_cast %250 : vector<2x1x128xf32> to vector<2x128xf32>
    %252 = arith.addf %249, %251 : vector<2x128xf32>
    %253 = vector.extract_strided_slice %252 {offsets = [0, 0], sizes = [2, 96], strides = [1, 1]} : vector<2x128xf32> to vector<2x96xf32>
    %254 = arith.negf %253 : vector<2x96xf32>
    %255 = math.exp %254 : vector<2x96xf32>
    %cst_97 = arith.constant 1.000000e+00 : f32
    %256 = vector.broadcast %cst_97 : f32 to vector<2x96xf32>
    %257 = arith.addf %256, %255 : vector<2x96xf32>
    %258 = arith.divf %256, %257 : vector<2x96xf32>
    %259 = vector.extract_strided_slice %252 {offsets = [0, 96], sizes = [2, 32], strides = [1, 1]} : vector<2x128xf32> to vector<2x32xf32>
    %260 = math.tanh %259 : vector<2x32xf32>
    %261 = vector.extract_strided_slice %258 {offsets = [0, 0], sizes = [2, 32], strides = [1, 1]} : vector<2x96xf32> to vector<2x32xf32>
    %262 = vector.extract_strided_slice %258 {offsets = [0, 32], sizes = [2, 32], strides = [1, 1]} : vector<2x96xf32> to vector<2x32xf32>
    %263 = vector.extract_strided_slice %258 {offsets = [0, 64], sizes = [2, 32], strides = [1, 1]} : vector<2x96xf32> to vector<2x32xf32>
    %264 = arith.mulf %262, %218 : vector<2x32xf32>
    %265 = arith.mulf %261, %260 : vector<2x32xf32>
    %266 = arith.addf %264, %265 : vector<2x32xf32>
    %267 = math.tanh %266 : vector<2x32xf32>
    %268 = arith.mulf %263, %267 : vector<2x32xf32>
    %c0_98 = arith.constant 0 : index
    %c0_99 = arith.constant 0 : index
    %c0_100 = arith.constant 0 : index
    %269 = vector.load %arg15[%c0_98, %c0_99, %c0_100] : memref<2x8x32xf32, #tpu.memory_space<vmem>>, vector<2x8x32xf32>
    %c0_101 = arith.constant 0 : index
    %c0_102 = arith.constant 0 : index
    %c0_103 = arith.constant 0 : index
    %270 = vector.load %arg16[%c0_101, %c0_102, %c0_103] : memref<2x8x32xf32, #tpu.memory_space<vmem>>, vector<2x8x32xf32>
    %271 = tpu.concatenate %268, %266 in 1 : vector<2x32xf32>, vector<2x32xf32> -> vector<2x64xf32>
    %c0_104 = arith.constant 0 : index
    %c0_105 = arith.constant 0 : index
    %272 = vector.load %arg4[%c0_104, %c0_105] : memref<64x32xf32, #tpu.memory_space<vmem>>, vector<64x32xf32>
    %cst_106 = arith.constant dense<0.000000e+00> : vector<2x32xf32>
    %273 = tpu.matmul %271, %272, %cst_106 {dimension_numbers = #tpu.dot_dimension_numbers<[1], [0], [0], [1], [0, 0, 1, 1], [], []>} : vector<2x64xf32>, vector<64x32xf32>, vector<2x32xf32> -> vector<2x32xf32>
    %274 = vector.shape_cast %273 : vector<2x32xf32> to vector<2x1x32xf32>
    %275 = vector.broadcast %274 : vector<2x1x32xf32> to vector<2x8x32xf32>
    %276 = arith.addf %275, %270 : vector<2x8x32xf32>
    %277 = math.tanh %276 : vector<2x8x32xf32>
    %c0_107 = arith.constant 0 : index
    %c0_108 = arith.constant 0 : index
    %c0_109 = arith.constant 0 : index
    %278 = vector.load %arg7[%c0_107, %c0_108, %c0_109] : memref<1x1x32xf32, #tpu.memory_space<vmem>>, vector<1x1x32xf32>
    %279 = vector.broadcast %278 : vector<1x1x32xf32> to vector<2x8x32xf32>
    %280 = arith.mulf %277, %279 : vector<2x8x32xf32>
    %cst_110 = arith.constant dense<0.000000e+00> : vector<2x8xf32>
    %281 = vector.multi_reduction <add>, %280, %cst_110 [2] : vector<2x8x32xf32> to vector<2x8xf32>
    %282 = vector.shape_cast %281 : vector<2x8xf32> to vector<2x8x1xf32>
    %cst_111 = arith.constant dense<0xFF800000> : vector<2x1xf32>
    %283 = vector.multi_reduction <maximumf>, %282, %cst_111 [1] : vector<2x8x1xf32> to vector<2x1xf32>
    %284 = vector.shape_cast %283 : vector<2x1xf32> to vector<2x1x1xf32>
    %285 = vector.broadcast %284 : vector<2x1x1xf32> to vector<2x8x1xf32>
    %286 = arith.subf %282, %285 : vector<2x8x1xf32>
    %287 = math.exp %286 : vector<2x8x1xf32>
    %cst_112 = arith.constant dense<0.000000e+00> : vector<2x1xf32>
    %288 = vector.multi_reduction <add>, %287, %cst_112 [1] : vector<2x8x1xf32> to vector<2x1xf32>
    %289 = tpu.reciprocal %288 {approx = true} : vector<2x1xf32> -> vector<2x1xf32>
    %290 = vector.broadcast %287 : vector<2x8x1xf32> to vector<2x8x32xf32>
    %291 = arith.mulf %290, %269 : vector<2x8x32xf32>
    %cst_113 = arith.constant dense<0.000000e+00> : vector<2x32xf32>
    %292 = vector.multi_reduction <add>, %291, %cst_113 [1] : vector<2x8x32xf32> to vector<2x32xf32>
    %293 = vector.broadcast %289 : vector<2x1xf32> to vector<2x32xf32>
    %294 = arith.mulf %292, %293 : vector<2x32xf32>
    %c0_114 = arith.constant 0 : index
    %c0_115 = arith.constant 0 : index
    %295 = vector.load %arg8[%c0_114, %c0_115] : memref<32x128xf32, #tpu.memory_space<vmem>>, vector<32x128xf32>
    %cst_116 = arith.constant dense<0.000000e+00> : vector<2x128xf32>
    %296 = tpu.matmul %294, %295, %cst_116 {dimension_numbers = #tpu.dot_dimension_numbers<[1], [0], [0], [1], [0, 0, 1, 1], [], []>} : vector<2x32xf32>, vector<32x128xf32>, vector<2x128xf32> -> vector<2x128xf32>
    %c0_117 = arith.constant 0 : index
    %c0_118 = arith.constant 0 : index
    %297 = vector.load %arg11[%c0_117, %c0_118] : memref<32x128xf32, #tpu.memory_space<vmem>>, vector<32x128xf32>
    %cst_119 = arith.constant dense<0.000000e+00> : vector<2x128xf32>
    %298 = tpu.matmul %268, %297, %cst_119 {dimension_numbers = #tpu.dot_dimension_numbers<[1], [0], [0], [1], [0, 0, 1, 1], [], []>} : vector<2x32xf32>, vector<32x128xf32>, vector<2x128xf32> -> vector<2x128xf32>
    %299 = arith.addf %296, %298 : vector<2x128xf32>
    %300 = vector.extract_strided_slice %13 {offsets = [0, 1, 0], sizes = [2, 1, 128], strides = [1, 1, 1]} : vector<2x8x128xf32> to vector<2x1x128xf32>
    %301 = vector.shape_cast %300 : vector<2x1x128xf32> to vector<2x128xf32>
    %302 = arith.addf %299, %301 : vector<2x128xf32>
    %303 = vector.extract_strided_slice %302 {offsets = [0, 0], sizes = [2, 96], strides = [1, 1]} : vector<2x128xf32> to vector<2x96xf32>
    %304 = arith.negf %303 : vector<2x96xf32>
    %305 = math.exp %304 : vector<2x96xf32>
    %cst_120 = arith.constant 1.000000e+00 : f32
    %306 = vector.broadcast %cst_120 : f32 to vector<2x96xf32>
    %307 = arith.addf %306, %305 : vector<2x96xf32>
    %308 = arith.divf %306, %307 : vector<2x96xf32>
    %309 = vector.extract_strided_slice %302 {offsets = [0, 96], sizes = [2, 32], strides = [1, 1]} : vector<2x128xf32> to vector<2x32xf32>
    %310 = math.tanh %309 : vector<2x32xf32>
    %311 = vector.extract_strided_slice %308 {offsets = [0, 0], sizes = [2, 32], strides = [1, 1]} : vector<2x96xf32> to vector<2x32xf32>
    %312 = vector.extract_strided_slice %308 {offsets = [0, 32], sizes = [2, 32], strides = [1, 1]} : vector<2x96xf32> to vector<2x32xf32>
    %313 = vector.extract_strided_slice %308 {offsets = [0, 64], sizes = [2, 32], strides = [1, 1]} : vector<2x96xf32> to vector<2x32xf32>
    %314 = arith.mulf %312, %266 : vector<2x32xf32>
    %315 = arith.mulf %311, %310 : vector<2x32xf32>
    %316 = arith.addf %314, %315 : vector<2x32xf32>
    %317 = math.tanh %316 : vector<2x32xf32>
    %318 = arith.mulf %313, %317 : vector<2x32xf32>
    %c0_121 = arith.constant 0 : index
    %c0_122 = arith.constant 0 : index
    %c0_123 = arith.constant 0 : index
    %319 = vector.load %arg15[%c0_121, %c0_122, %c0_123] : memref<2x8x32xf32, #tpu.memory_space<vmem>>, vector<2x8x32xf32>
    %c0_124 = arith.constant 0 : index
    %c0_125 = arith.constant 0 : index
    %c0_126 = arith.constant 0 : index
    %320 = vector.load %arg16[%c0_124, %c0_125, %c0_126] : memref<2x8x32xf32, #tpu.memory_space<vmem>>, vector<2x8x32xf32>
    %321 = tpu.concatenate %318, %316 in 1 : vector<2x32xf32>, vector<2x32xf32> -> vector<2x64xf32>
    %c0_127 = arith.constant 0 : index
    %c0_128 = arith.constant 0 : index
    %322 = vector.load %arg4[%c0_127, %c0_128] : memref<64x32xf32, #tpu.memory_space<vmem>>, vector<64x32xf32>
    %cst_129 = arith.constant dense<0.000000e+00> : vector<2x32xf32>
    %323 = tpu.matmul %321, %322, %cst_129 {dimension_numbers = #tpu.dot_dimension_numbers<[1], [0], [0], [1], [0, 0, 1, 1], [], []>} : vector<2x64xf32>, vector<64x32xf32>, vector<2x32xf32> -> vector<2x32xf32>
    %324 = vector.shape_cast %323 : vector<2x32xf32> to vector<2x1x32xf32>
    %325 = vector.broadcast %324 : vector<2x1x32xf32> to vector<2x8x32xf32>
    %326 = arith.addf %325, %320 : vector<2x8x32xf32>
    %327 = math.tanh %326 : vector<2x8x32xf32>
    %c0_130 = arith.constant 0 : index
    %c0_131 = arith.constant 0 : index
    %c0_132 = arith.constant 0 : index
    %328 = vector.load %arg7[%c0_130, %c0_131, %c0_132] : memref<1x1x32xf32, #tpu.memory_space<vmem>>, vector<1x1x32xf32>
    %329 = vector.broadcast %328 : vector<1x1x32xf32> to vector<2x8x32xf32>
    %330 = arith.mulf %327, %329 : vector<2x8x32xf32>
    %cst_133 = arith.constant dense<0.000000e+00> : vector<2x8xf32>
    %331 = vector.multi_reduction <add>, %330, %cst_133 [2] : vector<2x8x32xf32> to vector<2x8xf32>
    %332 = vector.shape_cast %331 : vector<2x8xf32> to vector<2x8x1xf32>
    %cst_134 = arith.constant dense<0xFF800000> : vector<2x1xf32>
    %333 = vector.multi_reduction <maximumf>, %332, %cst_134 [1] : vector<2x8x1xf32> to vector<2x1xf32>
    %334 = vector.shape_cast %333 : vector<2x1xf32> to vector<2x1x1xf32>
    %335 = vector.broadcast %334 : vector<2x1x1xf32> to vector<2x8x1xf32>
    %336 = arith.subf %332, %335 : vector<2x8x1xf32>
    %337 = math.exp %336 : vector<2x8x1xf32>
    %cst_135 = arith.constant dense<0.000000e+00> : vector<2x1xf32>
    %338 = vector.multi_reduction <add>, %337, %cst_135 [1] : vector<2x8x1xf32> to vector<2x1xf32>
    %339 = tpu.reciprocal %338 {approx = true} : vector<2x1xf32> -> vector<2x1xf32>
    %340 = vector.broadcast %337 : vector<2x8x1xf32> to vector<2x8x32xf32>
    %341 = arith.mulf %340, %319 : vector<2x8x32xf32>
    %cst_136 = arith.constant dense<0.000000e+00> : vector<2x32xf32>
    %342 = vector.multi_reduction <add>, %341, %cst_136 [1] : vector<2x8x32xf32> to vector<2x32xf32>
    %343 = vector.broadcast %339 : vector<2x1xf32> to vector<2x32xf32>
    %344 = arith.mulf %342, %343 : vector<2x32xf32>
    %c0_137 = arith.constant 0 : index
    %c0_138 = arith.constant 0 : index
    %345 = vector.load %arg8[%c0_137, %c0_138] : memref<32x128xf32, #tpu.memory_space<vmem>>, vector<32x128xf32>
    %cst_139 = arith.constant dense<0.000000e+00> : vector<2x128xf32>
    %346 = tpu.matmul %344, %345, %cst_139 {dimension_numbers = #tpu.dot_dimension_numbers<[1], [0], [0], [1], [0, 0, 1, 1], [], []>} : vector<2x32xf32>, vector<32x128xf32>, vector<2x128xf32> -> vector<2x128xf32>
    %c0_140 = arith.constant 0 : index
    %c0_141 = arith.constant 0 : index
    %347 = vector.load %arg11[%c0_140, %c0_141] : memref<32x128xf32, #tpu.memory_space<vmem>>, vector<32x128xf32>
    %cst_142 = arith.constant dense<0.000000e+00> : vector<2x128xf32>
    %348 = tpu.matmul %318, %347, %cst_142 {dimension_numbers = #tpu.dot_dimension_numbers<[1], [0], [0], [1], [0, 0, 1, 1], [], []>} : vector<2x32xf32>, vector<32x128xf32>, vector<2x128xf32> -> vector<2x128xf32>
    %349 = arith.addf %346, %348 : vector<2x128xf32>
    %350 = vector.extract_strided_slice %13 {offsets = [0, 2, 0], sizes = [2, 1, 128], strides = [1, 1, 1]} : vector<2x8x128xf32> to vector<2x1x128xf32>
    %351 = vector.shape_cast %350 : vector<2x1x128xf32> to vector<2x128xf32>
    %352 = arith.addf %349, %351 : vector<2x128xf32>
    %353 = vector.extract_strided_slice %352 {offsets = [0, 0], sizes = [2, 96], strides = [1, 1]} : vector<2x128xf32> to vector<2x96xf32>
    %354 = arith.negf %353 : vector<2x96xf32>
    %355 = math.exp %354 : vector<2x96xf32>
    %cst_143 = arith.constant 1.000000e+00 : f32
    %356 = vector.broadcast %cst_143 : f32 to vector<2x96xf32>
    %357 = arith.addf %356, %355 : vector<2x96xf32>
    %358 = arith.divf %356, %357 : vector<2x96xf32>
    %359 = vector.extract_strided_slice %352 {offsets = [0, 96], sizes = [2, 32], strides = [1, 1]} : vector<2x128xf32> to vector<2x32xf32>
    %360 = math.tanh %359 : vector<2x32xf32>
    %361 = vector.extract_strided_slice %358 {offsets = [0, 0], sizes = [2, 32], strides = [1, 1]} : vector<2x96xf32> to vector<2x32xf32>
    %362 = vector.extract_strided_slice %358 {offsets = [0, 32], sizes = [2, 32], strides = [1, 1]} : vector<2x96xf32> to vector<2x32xf32>
    %363 = vector.extract_strided_slice %358 {offsets = [0, 64], sizes = [2, 32], strides = [1, 1]} : vector<2x96xf32> to vector<2x32xf32>
    %364 = arith.mulf %362, %316 : vector<2x32xf32>
    %365 = arith.mulf %361, %360 : vector<2x32xf32>
    %366 = arith.addf %364, %365 : vector<2x32xf32>
    %367 = math.tanh %366 : vector<2x32xf32>
    %368 = arith.mulf %363, %367 : vector<2x32xf32>
    %c0_144 = arith.constant 0 : index
    %c0_145 = arith.constant 0 : index
    %c0_146 = arith.constant 0 : index
    %369 = vector.load %arg15[%c0_144, %c0_145, %c0_146] : memref<2x8x32xf32, #tpu.memory_space<vmem>>, vector<2x8x32xf32>
    %c0_147 = arith.constant 0 : index
    %c0_148 = arith.constant 0 : index
    %c0_149 = arith.constant 0 : index
    %370 = vector.load %arg16[%c0_147, %c0_148, %c0_149] : memref<2x8x32xf32, #tpu.memory_space<vmem>>, vector<2x8x32xf32>
    %371 = tpu.concatenate %368, %366 in 1 : vector<2x32xf32>, vector<2x32xf32> -> vector<2x64xf32>
    %c0_150 = arith.constant 0 : index
    %c0_151 = arith.constant 0 : index
    %372 = vector.load %arg4[%c0_150, %c0_151] : memref<64x32xf32, #tpu.memory_space<vmem>>, vector<64x32xf32>
    %cst_152 = arith.constant dense<0.000000e+00> : vector<2x32xf32>
    %373 = tpu.matmul %371, %372, %cst_152 {dimension_numbers = #tpu.dot_dimension_numbers<[1], [0], [0], [1], [0, 0, 1, 1], [], []>} : vector<2x64xf32>, vector<64x32xf32>, vector<2x32xf32> -> vector<2x32xf32>
    %374 = vector.shape_cast %373 : vector<2x32xf32> to vector<2x1x32xf32>
    %375 = vector.broadcast %374 : vector<2x1x32xf32> to vector<2x8x32xf32>
    %376 = arith.addf %375, %370 : vector<2x8x32xf32>
    %377 = math.tanh %376 : vector<2x8x32xf32>
    %c0_153 = arith.constant 0 : index
    %c0_154 = arith.constant 0 : index
    %c0_155 = arith.constant 0 : index
    %378 = vector.load %arg7[%c0_153, %c0_154, %c0_155] : memref<1x1x32xf32, #tpu.memory_space<vmem>>, vector<1x1x32xf32>
    %379 = vector.broadcast %378 : vector<1x1x32xf32> to vector<2x8x32xf32>
    %380 = arith.mulf %377, %379 : vector<2x8x32xf32>
    %cst_156 = arith.constant dense<0.000000e+00> : vector<2x8xf32>
    %381 = vector.multi_reduction <add>, %380, %cst_156 [2] : vector<2x8x32xf32> to vector<2x8xf32>
    %382 = vector.shape_cast %381 : vector<2x8xf32> to vector<2x8x1xf32>
    %cst_157 = arith.constant dense<0xFF800000> : vector<2x1xf32>
    %383 = vector.multi_reduction <maximumf>, %382, %cst_157 [1] : vector<2x8x1xf32> to vector<2x1xf32>
    %384 = vector.shape_cast %383 : vector<2x1xf32> to vector<2x1x1xf32>
    %385 = vector.broadcast %384 : vector<2x1x1xf32> to vector<2x8x1xf32>
    %386 = arith.subf %382, %385 : vector<2x8x1xf32>
    %387 = math.exp %386 : vector<2x8x1xf32>
    %cst_158 = arith.constant dense<0.000000e+00> : vector<2x1xf32>
    %388 = vector.multi_reduction <add>, %387, %cst_158 [1] : vector<2x8x1xf32> to vector<2x1xf32>
    %389 = tpu.reciprocal %388 {approx = true} : vector<2x1xf32> -> vector<2x1xf32>
    %390 = vector.broadcast %387 : vector<2x8x1xf32> to vector<2x8x32xf32>
    %391 = arith.mulf %390, %369 : vector<2x8x32xf32>
    %cst_159 = arith.constant dense<0.000000e+00> : vector<2x32xf32>
    %392 = vector.multi_reduction <add>, %391, %cst_159 [1] : vector<2x8x32xf32> to vector<2x32xf32>
    %393 = vector.broadcast %389 : vector<2x1xf32> to vector<2x32xf32>
    %394 = arith.mulf %392, %393 : vector<2x32xf32>
    %c0_160 = arith.constant 0 : index
    %c0_161 = arith.constant 0 : index
    %395 = vector.load %arg8[%c0_160, %c0_161] : memref<32x128xf32, #tpu.memory_space<vmem>>, vector<32x128xf32>
    %cst_162 = arith.constant dense<0.000000e+00> : vector<2x128xf32>
    %396 = tpu.matmul %394, %395, %cst_162 {dimension_numbers = #tpu.dot_dimension_numbers<[1], [0], [0], [1], [0, 0, 1, 1], [], []>} : vector<2x32xf32>, vector<32x128xf32>, vector<2x128xf32> -> vector<2x128xf32>
    %c0_163 = arith.constant 0 : index
    %c0_164 = arith.constant 0 : index
    %397 = vector.load %arg11[%c0_163, %c0_164] : memref<32x128xf32, #tpu.memory_space<vmem>>, vector<32x128xf32>
    %cst_165 = arith.constant dense<0.000000e+00> : vector<2x128xf32>
    %398 = tpu.matmul %368, %397, %cst_165 {dimension_numbers = #tpu.dot_dimension_numbers<[1], [0], [0], [1], [0, 0, 1, 1], [], []>} : vector<2x32xf32>, vector<32x128xf32>, vector<2x128xf32> -> vector<2x128xf32>
    %399 = arith.addf %396, %398 : vector<2x128xf32>
    %400 = vector.extract_strided_slice %13 {offsets = [0, 3, 0], sizes = [2, 1, 128], strides = [1, 1, 1]} : vector<2x8x128xf32> to vector<2x1x128xf32>
    %401 = vector.shape_cast %400 : vector<2x1x128xf32> to vector<2x128xf32>
    %402 = arith.addf %399, %401 : vector<2x128xf32>
    %403 = vector.extract_strided_slice %402 {offsets = [0, 0], sizes = [2, 96], strides = [1, 1]} : vector<2x128xf32> to vector<2x96xf32>
    %404 = arith.negf %403 : vector<2x96xf32>
    %405 = math.exp %404 : vector<2x96xf32>
    %cst_166 = arith.constant 1.000000e+00 : f32
    %406 = vector.broadcast %cst_166 : f32 to vector<2x96xf32>
    %407 = arith.addf %406, %405 : vector<2x96xf32>
    %408 = arith.divf %406, %407 : vector<2x96xf32>
    %409 = vector.extract_strided_slice %402 {offsets = [0, 96], sizes = [2, 32], strides = [1, 1]} : vector<2x128xf32> to vector<2x32xf32>
    %410 = math.tanh %409 : vector<2x32xf32>
    %411 = vector.extract_strided_slice %408 {offsets = [0, 0], sizes = [2, 32], strides = [1, 1]} : vector<2x96xf32> to vector<2x32xf32>
    %412 = vector.extract_strided_slice %408 {offsets = [0, 32], sizes = [2, 32], strides = [1, 1]} : vector<2x96xf32> to vector<2x32xf32>
    %413 = vector.extract_strided_slice %408 {offsets = [0, 64], sizes = [2, 32], strides = [1, 1]} : vector<2x96xf32> to vector<2x32xf32>
    %414 = arith.mulf %412, %366 : vector<2x32xf32>
    %415 = arith.mulf %411, %410 : vector<2x32xf32>
    %416 = arith.addf %414, %415 : vector<2x32xf32>
    %417 = math.tanh %416 : vector<2x32xf32>
    %418 = arith.mulf %413, %417 : vector<2x32xf32>
    %c0_167 = arith.constant 0 : index
    %c0_168 = arith.constant 0 : index
    %c0_169 = arith.constant 0 : index
    %419 = vector.load %arg15[%c0_167, %c0_168, %c0_169] : memref<2x8x32xf32, #tpu.memory_space<vmem>>, vector<2x8x32xf32>
    %c0_170 = arith.constant 0 : index
    %c0_171 = arith.constant 0 : index
    %c0_172 = arith.constant 0 : index
    %420 = vector.load %arg16[%c0_170, %c0_171, %c0_172] : memref<2x8x32xf32, #tpu.memory_space<vmem>>, vector<2x8x32xf32>
    %421 = tpu.concatenate %418, %416 in 1 : vector<2x32xf32>, vector<2x32xf32> -> vector<2x64xf32>
    %c0_173 = arith.constant 0 : index
    %c0_174 = arith.constant 0 : index
    %422 = vector.load %arg4[%c0_173, %c0_174] : memref<64x32xf32, #tpu.memory_space<vmem>>, vector<64x32xf32>
    %cst_175 = arith.constant dense<0.000000e+00> : vector<2x32xf32>
    %423 = tpu.matmul %421, %422, %cst_175 {dimension_numbers = #tpu.dot_dimension_numbers<[1], [0], [0], [1], [0, 0, 1, 1], [], []>} : vector<2x64xf32>, vector<64x32xf32>, vector<2x32xf32> -> vector<2x32xf32>
    %424 = vector.shape_cast %423 : vector<2x32xf32> to vector<2x1x32xf32>
    %425 = vector.broadcast %424 : vector<2x1x32xf32> to vector<2x8x32xf32>
    %426 = arith.addf %425, %420 : vector<2x8x32xf32>
    %427 = math.tanh %426 : vector<2x8x32xf32>
    %c0_176 = arith.constant 0 : index
    %c0_177 = arith.constant 0 : index
    %c0_178 = arith.constant 0 : index
    %428 = vector.load %arg7[%c0_176, %c0_177, %c0_178] : memref<1x1x32xf32, #tpu.memory_space<vmem>>, vector<1x1x32xf32>
    %429 = vector.broadcast %428 : vector<1x1x32xf32> to vector<2x8x32xf32>
    %430 = arith.mulf %427, %429 : vector<2x8x32xf32>
    %cst_179 = arith.constant dense<0.000000e+00> : vector<2x8xf32>
    %431 = vector.multi_reduction <add>, %430, %cst_179 [2] : vector<2x8x32xf32> to vector<2x8xf32>
    %432 = vector.shape_cast %431 : vector<2x8xf32> to vector<2x8x1xf32>
    %cst_180 = arith.constant dense<0xFF800000> : vector<2x1xf32>
    %433 = vector.multi_reduction <maximumf>, %432, %cst_180 [1] : vector<2x8x1xf32> to vector<2x1xf32>
    %434 = vector.shape_cast %433 : vector<2x1xf32> to vector<2x1x1xf32>
    %435 = vector.broadcast %434 : vector<2x1x1xf32> to vector<2x8x1xf32>
    %436 = arith.subf %432, %435 : vector<2x8x1xf32>
    %437 = math.exp %436 : vector<2x8x1xf32>
    %cst_181 = arith.constant dense<0.000000e+00> : vector<2x1xf32>
    %438 = vector.multi_reduction <add>, %437, %cst_181 [1] : vector<2x8x1xf32> to vector<2x1xf32>
    %439 = tpu.reciprocal %438 {approx = true} : vector<2x1xf32> -> vector<2x1xf32>
    %440 = vector.broadcast %437 : vector<2x8x1xf32> to vector<2x8x32xf32>
    %441 = arith.mulf %440, %419 : vector<2x8x32xf32>
    %cst_182 = arith.constant dense<0.000000e+00> : vector<2x32xf32>
    %442 = vector.multi_reduction <add>, %441, %cst_182 [1] : vector<2x8x32xf32> to vector<2x32xf32>
    %443 = vector.broadcast %439 : vector<2x1xf32> to vector<2x32xf32>
    %444 = arith.mulf %442, %443 : vector<2x32xf32>
    %c0_183 = arith.constant 0 : index
    %c0_184 = arith.constant 0 : index
    %445 = vector.load %arg8[%c0_183, %c0_184] : memref<32x128xf32, #tpu.memory_space<vmem>>, vector<32x128xf32>
    %cst_185 = arith.constant dense<0.000000e+00> : vector<2x128xf32>
    %446 = tpu.matmul %444, %445, %cst_185 {dimension_numbers = #tpu.dot_dimension_numbers<[1], [0], [0], [1], [0, 0, 1, 1], [], []>} : vector<2x32xf32>, vector<32x128xf32>, vector<2x128xf32> -> vector<2x128xf32>
    %c0_186 = arith.constant 0 : index
    %c0_187 = arith.constant 0 : index
    %447 = vector.load %arg11[%c0_186, %c0_187] : memref<32x128xf32, #tpu.memory_space<vmem>>, vector<32x128xf32>
    %cst_188 = arith.constant dense<0.000000e+00> : vector<2x128xf32>
    %448 = tpu.matmul %418, %447, %cst_188 {dimension_numbers = #tpu.dot_dimension_numbers<[1], [0], [0], [1], [0, 0, 1, 1], [], []>} : vector<2x32xf32>, vector<32x128xf32>, vector<2x128xf32> -> vector<2x128xf32>
    %449 = arith.addf %446, %448 : vector<2x128xf32>
    %450 = vector.extract_strided_slice %13 {offsets = [0, 4, 0], sizes = [2, 1, 128], strides = [1, 1, 1]} : vector<2x8x128xf32> to vector<2x1x128xf32>
    %451 = vector.shape_cast %450 : vector<2x1x128xf32> to vector<2x128xf32>
    %452 = arith.addf %449, %451 : vector<2x128xf32>
    %453 = vector.extract_strided_slice %452 {offsets = [0, 0], sizes = [2, 96], strides = [1, 1]} : vector<2x128xf32> to vector<2x96xf32>
    %454 = arith.negf %453 : vector<2x96xf32>
    %455 = math.exp %454 : vector<2x96xf32>
    %cst_189 = arith.constant 1.000000e+00 : f32
    %456 = vector.broadcast %cst_189 : f32 to vector<2x96xf32>
    %457 = arith.addf %456, %455 : vector<2x96xf32>
    %458 = arith.divf %456, %457 : vector<2x96xf32>
    %459 = vector.extract_strided_slice %452 {offsets = [0, 96], sizes = [2, 32], strides = [1, 1]} : vector<2x128xf32> to vector<2x32xf32>
    %460 = math.tanh %459 : vector<2x32xf32>
    %461 = vector.extract_strided_slice %458 {offsets = [0, 0], sizes = [2, 32], strides = [1, 1]} : vector<2x96xf32> to vector<2x32xf32>
    %462 = vector.extract_strided_slice %458 {offsets = [0, 32], sizes = [2, 32], strides = [1, 1]} : vector<2x96xf32> to vector<2x32xf32>
    %463 = vector.extract_strided_slice %458 {offsets = [0, 64], sizes = [2, 32], strides = [1, 1]} : vector<2x96xf32> to vector<2x32xf32>
    %464 = arith.mulf %462, %416 : vector<2x32xf32>
    %465 = arith.mulf %461, %460 : vector<2x32xf32>
    %466 = arith.addf %464, %465 : vector<2x32xf32>
    %467 = math.tanh %466 : vector<2x32xf32>
    %468 = arith.mulf %463, %467 : vector<2x32xf32>
    %c0_190 = arith.constant 0 : index
    %c0_191 = arith.constant 0 : index
    %c0_192 = arith.constant 0 : index
    %469 = vector.load %arg15[%c0_190, %c0_191, %c0_192] : memref<2x8x32xf32, #tpu.memory_space<vmem>>, vector<2x8x32xf32>
    %c0_193 = arith.constant 0 : index
    %c0_194 = arith.constant 0 : index
    %c0_195 = arith.constant 0 : index
    %470 = vector.load %arg16[%c0_193, %c0_194, %c0_195] : memref<2x8x32xf32, #tpu.memory_space<vmem>>, vector<2x8x32xf32>
    %471 = tpu.concatenate %468, %466 in 1 : vector<2x32xf32>, vector<2x32xf32> -> vector<2x64xf32>
    %c0_196 = arith.constant 0 : index
    %c0_197 = arith.constant 0 : index
    %472 = vector.load %arg4[%c0_196, %c0_197] : memref<64x32xf32, #tpu.memory_space<vmem>>, vector<64x32xf32>
    %cst_198 = arith.constant dense<0.000000e+00> : vector<2x32xf32>
    %473 = tpu.matmul %471, %472, %cst_198 {dimension_numbers = #tpu.dot_dimension_numbers<[1], [0], [0], [1], [0, 0, 1, 1], [], []>} : vector<2x64xf32>, vector<64x32xf32>, vector<2x32xf32> -> vector<2x32xf32>
    %474 = vector.shape_cast %473 : vector<2x32xf32> to vector<2x1x32xf32>
    %475 = vector.broadcast %474 : vector<2x1x32xf32> to vector<2x8x32xf32>
    %476 = arith.addf %475, %470 : vector<2x8x32xf32>
    %477 = math.tanh %476 : vector<2x8x32xf32>
    %c0_199 = arith.constant 0 : index
    %c0_200 = arith.constant 0 : index
    %c0_201 = arith.constant 0 : index
    %478 = vector.load %arg7[%c0_199, %c0_200, %c0_201] : memref<1x1x32xf32, #tpu.memory_space<vmem>>, vector<1x1x32xf32>
    %479 = vector.broadcast %478 : vector<1x1x32xf32> to vector<2x8x32xf32>
    %480 = arith.mulf %477, %479 : vector<2x8x32xf32>
    %cst_202 = arith.constant dense<0.000000e+00> : vector<2x8xf32>
    %481 = vector.multi_reduction <add>, %480, %cst_202 [2] : vector<2x8x32xf32> to vector<2x8xf32>
    %482 = vector.shape_cast %481 : vector<2x8xf32> to vector<2x8x1xf32>
    %cst_203 = arith.constant dense<0xFF800000> : vector<2x1xf32>
    %483 = vector.multi_reduction <maximumf>, %482, %cst_203 [1] : vector<2x8x1xf32> to vector<2x1xf32>
    %484 = vector.shape_cast %483 : vector<2x1xf32> to vector<2x1x1xf32>
    %485 = vector.broadcast %484 : vector<2x1x1xf32> to vector<2x8x1xf32>
    %486 = arith.subf %482, %485 : vector<2x8x1xf32>
    %487 = math.exp %486 : vector<2x8x1xf32>
    %cst_204 = arith.constant dense<0.000000e+00> : vector<2x1xf32>
    %488 = vector.multi_reduction <add>, %487, %cst_204 [1] : vector<2x8x1xf32> to vector<2x1xf32>
    %489 = tpu.reciprocal %488 {approx = true} : vector<2x1xf32> -> vector<2x1xf32>
    %490 = vector.broadcast %487 : vector<2x8x1xf32> to vector<2x8x32xf32>
    %491 = arith.mulf %490, %469 : vector<2x8x32xf32>
    %cst_205 = arith.constant dense<0.000000e+00> : vector<2x32xf32>
    %492 = vector.multi_reduction <add>, %491, %cst_205 [1] : vector<2x8x32xf32> to vector<2x32xf32>
    %493 = vector.broadcast %489 : vector<2x1xf32> to vector<2x32xf32>
    %494 = arith.mulf %492, %493 : vector<2x32xf32>
    %c0_206 = arith.constant 0 : index
    %c0_207 = arith.constant 0 : index
    %495 = vector.load %arg8[%c0_206, %c0_207] : memref<32x128xf32, #tpu.memory_space<vmem>>, vector<32x128xf32>
    %cst_208 = arith.constant dense<0.000000e+00> : vector<2x128xf32>
    %496 = tpu.matmul %494, %495, %cst_208 {dimension_numbers = #tpu.dot_dimension_numbers<[1], [0], [0], [1], [0, 0, 1, 1], [], []>} : vector<2x32xf32>, vector<32x128xf32>, vector<2x128xf32> -> vector<2x128xf32>
    %c0_209 = arith.constant 0 : index
    %c0_210 = arith.constant 0 : index
    %497 = vector.load %arg11[%c0_209, %c0_210] : memref<32x128xf32, #tpu.memory_space<vmem>>, vector<32x128xf32>
    %cst_211 = arith.constant dense<0.000000e+00> : vector<2x128xf32>
    %498 = tpu.matmul %468, %497, %cst_211 {dimension_numbers = #tpu.dot_dimension_numbers<[1], [0], [0], [1], [0, 0, 1, 1], [], []>} : vector<2x32xf32>, vector<32x128xf32>, vector<2x128xf32> -> vector<2x128xf32>
    %499 = arith.addf %496, %498 : vector<2x128xf32>
    %500 = vector.extract_strided_slice %13 {offsets = [0, 5, 0], sizes = [2, 1, 128], strides = [1, 1, 1]} : vector<2x8x128xf32> to vector<2x1x128xf32>
    %501 = vector.shape_cast %500 : vector<2x1x128xf32> to vector<2x128xf32>
    %502 = arith.addf %499, %501 : vector<2x128xf32>
    %503 = vector.extract_strided_slice %502 {offsets = [0, 0], sizes = [2, 96], strides = [1, 1]} : vector<2x128xf32> to vector<2x96xf32>
    %504 = arith.negf %503 : vector<2x96xf32>
    %505 = math.exp %504 : vector<2x96xf32>
    %cst_212 = arith.constant 1.000000e+00 : f32
    %506 = vector.broadcast %cst_212 : f32 to vector<2x96xf32>
    %507 = arith.addf %506, %505 : vector<2x96xf32>
    %508 = arith.divf %506, %507 : vector<2x96xf32>
    %509 = vector.extract_strided_slice %502 {offsets = [0, 96], sizes = [2, 32], strides = [1, 1]} : vector<2x128xf32> to vector<2x32xf32>
    %510 = math.tanh %509 : vector<2x32xf32>
    %511 = vector.extract_strided_slice %508 {offsets = [0, 0], sizes = [2, 32], strides = [1, 1]} : vector<2x96xf32> to vector<2x32xf32>
    %512 = vector.extract_strided_slice %508 {offsets = [0, 32], sizes = [2, 32], strides = [1, 1]} : vector<2x96xf32> to vector<2x32xf32>
    %513 = vector.extract_strided_slice %508 {offsets = [0, 64], sizes = [2, 32], strides = [1, 1]} : vector<2x96xf32> to vector<2x32xf32>
    %514 = arith.mulf %512, %466 : vector<2x32xf32>
    %515 = arith.mulf %511, %510 : vector<2x32xf32>
    %516 = arith.addf %514, %515 : vector<2x32xf32>
    %517 = math.tanh %516 : vector<2x32xf32>
    %518 = arith.mulf %513, %517 : vector<2x32xf32>
    %c0_213 = arith.constant 0 : index
    %c0_214 = arith.constant 0 : index
    %c0_215 = arith.constant 0 : index
    %519 = vector.load %arg15[%c0_213, %c0_214, %c0_215] : memref<2x8x32xf32, #tpu.memory_space<vmem>>, vector<2x8x32xf32>
    %c0_216 = arith.constant 0 : index
    %c0_217 = arith.constant 0 : index
    %c0_218 = arith.constant 0 : index
    %520 = vector.load %arg16[%c0_216, %c0_217, %c0_218] : memref<2x8x32xf32, #tpu.memory_space<vmem>>, vector<2x8x32xf32>
    %521 = tpu.concatenate %518, %516 in 1 : vector<2x32xf32>, vector<2x32xf32> -> vector<2x64xf32>
    %c0_219 = arith.constant 0 : index
    %c0_220 = arith.constant 0 : index
    %522 = vector.load %arg4[%c0_219, %c0_220] : memref<64x32xf32, #tpu.memory_space<vmem>>, vector<64x32xf32>
    %cst_221 = arith.constant dense<0.000000e+00> : vector<2x32xf32>
    %523 = tpu.matmul %521, %522, %cst_221 {dimension_numbers = #tpu.dot_dimension_numbers<[1], [0], [0], [1], [0, 0, 1, 1], [], []>} : vector<2x64xf32>, vector<64x32xf32>, vector<2x32xf32> -> vector<2x32xf32>
    %524 = vector.shape_cast %523 : vector<2x32xf32> to vector<2x1x32xf32>
    %525 = vector.broadcast %524 : vector<2x1x32xf32> to vector<2x8x32xf32>
    %526 = arith.addf %525, %520 : vector<2x8x32xf32>
    %527 = math.tanh %526 : vector<2x8x32xf32>
    %c0_222 = arith.constant 0 : index
    %c0_223 = arith.constant 0 : index
    %c0_224 = arith.constant 0 : index
    %528 = vector.load %arg7[%c0_222, %c0_223, %c0_224] : memref<1x1x32xf32, #tpu.memory_space<vmem>>, vector<1x1x32xf32>
    %529 = vector.broadcast %528 : vector<1x1x32xf32> to vector<2x8x32xf32>
    %530 = arith.mulf %527, %529 : vector<2x8x32xf32>
    %cst_225 = arith.constant dense<0.000000e+00> : vector<2x8xf32>
    %531 = vector.multi_reduction <add>, %530, %cst_225 [2] : vector<2x8x32xf32> to vector<2x8xf32>
    %532 = vector.shape_cast %531 : vector<2x8xf32> to vector<2x8x1xf32>
    %cst_226 = arith.constant dense<0xFF800000> : vector<2x1xf32>
    %533 = vector.multi_reduction <maximumf>, %532, %cst_226 [1] : vector<2x8x1xf32> to vector<2x1xf32>
    %534 = vector.shape_cast %533 : vector<2x1xf32> to vector<2x1x1xf32>
    %535 = vector.broadcast %534 : vector<2x1x1xf32> to vector<2x8x1xf32>
    %536 = arith.subf %532, %535 : vector<2x8x1xf32>
    %537 = math.exp %536 : vector<2x8x1xf32>
    %cst_227 = arith.constant dense<0.000000e+00> : vector<2x1xf32>
    %538 = vector.multi_reduction <add>, %537, %cst_227 [1] : vector<2x8x1xf32> to vector<2x1xf32>
    %539 = tpu.reciprocal %538 {approx = true} : vector<2x1xf32> -> vector<2x1xf32>
    %540 = vector.broadcast %537 : vector<2x8x1xf32> to vector<2x8x32xf32>
    %541 = arith.mulf %540, %519 : vector<2x8x32xf32>
    %cst_228 = arith.constant dense<0.000000e+00> : vector<2x32xf32>
    %542 = vector.multi_reduction <add>, %541, %cst_228 [1] : vector<2x8x32xf32> to vector<2x32xf32>
    %543 = vector.broadcast %539 : vector<2x1xf32> to vector<2x32xf32>
    %544 = arith.mulf %542, %543 : vector<2x32xf32>
    %c0_229 = arith.constant 0 : index
    %c0_230 = arith.constant 0 : index
    %545 = vector.load %arg8[%c0_229, %c0_230] : memref<32x128xf32, #tpu.memory_space<vmem>>, vector<32x128xf32>
    %cst_231 = arith.constant dense<0.000000e+00> : vector<2x128xf32>
    %546 = tpu.matmul %544, %545, %cst_231 {dimension_numbers = #tpu.dot_dimension_numbers<[1], [0], [0], [1], [0, 0, 1, 1], [], []>} : vector<2x32xf32>, vector<32x128xf32>, vector<2x128xf32> -> vector<2x128xf32>
    %c0_232 = arith.constant 0 : index
    %c0_233 = arith.constant 0 : index
    %547 = vector.load %arg11[%c0_232, %c0_233] : memref<32x128xf32, #tpu.memory_space<vmem>>, vector<32x128xf32>
    %cst_234 = arith.constant dense<0.000000e+00> : vector<2x128xf32>
    %548 = tpu.matmul %518, %547, %cst_234 {dimension_numbers = #tpu.dot_dimension_numbers<[1], [0], [0], [1], [0, 0, 1, 1], [], []>} : vector<2x32xf32>, vector<32x128xf32>, vector<2x128xf32> -> vector<2x128xf32>
    %549 = arith.addf %546, %548 : vector<2x128xf32>
    %550 = vector.extract_strided_slice %13 {offsets = [0, 6, 0], sizes = [2, 1, 128], strides = [1, 1, 1]} : vector<2x8x128xf32> to vector<2x1x128xf32>
    %551 = vector.shape_cast %550 : vector<2x1x128xf32> to vector<2x128xf32>
    %552 = arith.addf %549, %551 : vector<2x128xf32>
    %553 = vector.extract_strided_slice %552 {offsets = [0, 0], sizes = [2, 96], strides = [1, 1]} : vector<2x128xf32> to vector<2x96xf32>
    %554 = arith.negf %553 : vector<2x96xf32>
    %555 = math.exp %554 : vector<2x96xf32>
    %cst_235 = arith.constant 1.000000e+00 : f32
    %556 = vector.broadcast %cst_235 : f32 to vector<2x96xf32>
    %557 = arith.addf %556, %555 : vector<2x96xf32>
    %558 = arith.divf %556, %557 : vector<2x96xf32>
    %559 = vector.extract_strided_slice %552 {offsets = [0, 96], sizes = [2, 32], strides = [1, 1]} : vector<2x128xf32> to vector<2x32xf32>
    %560 = math.tanh %559 : vector<2x32xf32>
    %561 = vector.extract_strided_slice %558 {offsets = [0, 0], sizes = [2, 32], strides = [1, 1]} : vector<2x96xf32> to vector<2x32xf32>
    %562 = vector.extract_strided_slice %558 {offsets = [0, 32], sizes = [2, 32], strides = [1, 1]} : vector<2x96xf32> to vector<2x32xf32>
    %563 = vector.extract_strided_slice %558 {offsets = [0, 64], sizes = [2, 32], strides = [1, 1]} : vector<2x96xf32> to vector<2x32xf32>
    %564 = arith.mulf %562, %516 : vector<2x32xf32>
    %565 = arith.mulf %561, %560 : vector<2x32xf32>
    %566 = arith.addf %564, %565 : vector<2x32xf32>
    %567 = math.tanh %566 : vector<2x32xf32>
    %568 = arith.mulf %563, %567 : vector<2x32xf32>
    %c0_236 = arith.constant 0 : index
    %c0_237 = arith.constant 0 : index
    %c0_238 = arith.constant 0 : index
    %569 = vector.load %arg15[%c0_236, %c0_237, %c0_238] : memref<2x8x32xf32, #tpu.memory_space<vmem>>, vector<2x8x32xf32>
    %c0_239 = arith.constant 0 : index
    %c0_240 = arith.constant 0 : index
    %c0_241 = arith.constant 0 : index
    %570 = vector.load %arg16[%c0_239, %c0_240, %c0_241] : memref<2x8x32xf32, #tpu.memory_space<vmem>>, vector<2x8x32xf32>
    %571 = tpu.concatenate %568, %566 in 1 : vector<2x32xf32>, vector<2x32xf32> -> vector<2x64xf32>
    %c0_242 = arith.constant 0 : index
    %c0_243 = arith.constant 0 : index
    %572 = vector.load %arg4[%c0_242, %c0_243] : memref<64x32xf32, #tpu.memory_space<vmem>>, vector<64x32xf32>
    %cst_244 = arith.constant dense<0.000000e+00> : vector<2x32xf32>
    %573 = tpu.matmul %571, %572, %cst_244 {dimension_numbers = #tpu.dot_dimension_numbers<[1], [0], [0], [1], [0, 0, 1, 1], [], []>} : vector<2x64xf32>, vector<64x32xf32>, vector<2x32xf32> -> vector<2x32xf32>
    %574 = vector.shape_cast %573 : vector<2x32xf32> to vector<2x1x32xf32>
    %575 = vector.broadcast %574 : vector<2x1x32xf32> to vector<2x8x32xf32>
    %576 = arith.addf %575, %570 : vector<2x8x32xf32>
    %577 = math.tanh %576 : vector<2x8x32xf32>
    %c0_245 = arith.constant 0 : index
    %c0_246 = arith.constant 0 : index
    %c0_247 = arith.constant 0 : index
    %578 = vector.load %arg7[%c0_245, %c0_246, %c0_247] : memref<1x1x32xf32, #tpu.memory_space<vmem>>, vector<1x1x32xf32>
    %579 = vector.broadcast %578 : vector<1x1x32xf32> to vector<2x8x32xf32>
    %580 = arith.mulf %577, %579 : vector<2x8x32xf32>
    %cst_248 = arith.constant dense<0.000000e+00> : vector<2x8xf32>
    %581 = vector.multi_reduction <add>, %580, %cst_248 [2] : vector<2x8x32xf32> to vector<2x8xf32>
    %582 = vector.shape_cast %581 : vector<2x8xf32> to vector<2x8x1xf32>
    %cst_249 = arith.constant dense<0xFF800000> : vector<2x1xf32>
    %583 = vector.multi_reduction <maximumf>, %582, %cst_249 [1] : vector<2x8x1xf32> to vector<2x1xf32>
    %584 = vector.shape_cast %583 : vector<2x1xf32> to vector<2x1x1xf32>
    %585 = vector.broadcast %584 : vector<2x1x1xf32> to vector<2x8x1xf32>
    %586 = arith.subf %582, %585 : vector<2x8x1xf32>
    %587 = math.exp %586 : vector<2x8x1xf32>
    %cst_250 = arith.constant dense<0.000000e+00> : vector<2x1xf32>
    %588 = vector.multi_reduction <add>, %587, %cst_250 [1] : vector<2x8x1xf32> to vector<2x1xf32>
    %589 = tpu.reciprocal %588 {approx = true} : vector<2x1xf32> -> vector<2x1xf32>
    %590 = vector.broadcast %587 : vector<2x8x1xf32> to vector<2x8x32xf32>
    %591 = arith.mulf %590, %569 : vector<2x8x32xf32>
    %cst_251 = arith.constant dense<0.000000e+00> : vector<2x32xf32>
    %592 = vector.multi_reduction <add>, %591, %cst_251 [1] : vector<2x8x32xf32> to vector<2x32xf32>
    %593 = vector.broadcast %589 : vector<2x1xf32> to vector<2x32xf32>
    %594 = arith.mulf %592, %593 : vector<2x32xf32>
    %c0_252 = arith.constant 0 : index
    %c0_253 = arith.constant 0 : index
    %595 = vector.load %arg8[%c0_252, %c0_253] : memref<32x128xf32, #tpu.memory_space<vmem>>, vector<32x128xf32>
    %cst_254 = arith.constant dense<0.000000e+00> : vector<2x128xf32>
    %596 = tpu.matmul %594, %595, %cst_254 {dimension_numbers = #tpu.dot_dimension_numbers<[1], [0], [0], [1], [0, 0, 1, 1], [], []>} : vector<2x32xf32>, vector<32x128xf32>, vector<2x128xf32> -> vector<2x128xf32>
    %c0_255 = arith.constant 0 : index
    %c0_256 = arith.constant 0 : index
    %597 = vector.load %arg11[%c0_255, %c0_256] : memref<32x128xf32, #tpu.memory_space<vmem>>, vector<32x128xf32>
    %cst_257 = arith.constant dense<0.000000e+00> : vector<2x128xf32>
    %598 = tpu.matmul %568, %597, %cst_257 {dimension_numbers = #tpu.dot_dimension_numbers<[1], [0], [0], [1], [0, 0, 1, 1], [], []>} : vector<2x32xf32>, vector<32x128xf32>, vector<2x128xf32> -> vector<2x128xf32>
    %599 = arith.addf %596, %598 : vector<2x128xf32>
    %600 = vector.extract_strided_slice %13 {offsets = [0, 7, 0], sizes = [2, 1, 128], strides = [1, 1, 1]} : vector<2x8x128xf32> to vector<2x1x128xf32>
    %601 = vector.shape_cast %600 : vector<2x1x128xf32> to vector<2x128xf32>
    %602 = arith.addf %599, %601 : vector<2x128xf32>
    %603 = vector.extract_strided_slice %602 {offsets = [0, 0], sizes = [2, 96], strides = [1, 1]} : vector<2x128xf32> to vector<2x96xf32>
    %604 = arith.negf %603 : vector<2x96xf32>
    %605 = math.exp %604 : vector<2x96xf32>
    %cst_258 = arith.constant 1.000000e+00 : f32
    %606 = vector.broadcast %cst_258 : f32 to vector<2x96xf32>
    %607 = arith.addf %606, %605 : vector<2x96xf32>
    %608 = arith.divf %606, %607 : vector<2x96xf32>
    %609 = vector.extract_strided_slice %602 {offsets = [0, 96], sizes = [2, 32], strides = [1, 1]} : vector<2x128xf32> to vector<2x32xf32>
    %610 = math.tanh %609 : vector<2x32xf32>
    %611 = vector.extract_strided_slice %608 {offsets = [0, 0], sizes = [2, 32], strides = [1, 1]} : vector<2x96xf32> to vector<2x32xf32>
    %612 = vector.extract_strided_slice %608 {offsets = [0, 32], sizes = [2, 32], strides = [1, 1]} : vector<2x96xf32> to vector<2x32xf32>
    %613 = vector.extract_strided_slice %608 {offsets = [0, 64], sizes = [2, 32], strides = [1, 1]} : vector<2x96xf32> to vector<2x32xf32>
    %614 = arith.mulf %612, %566 : vector<2x32xf32>
    %615 = arith.mulf %611, %610 : vector<2x32xf32>
    %616 = arith.addf %614, %615 : vector<2x32xf32>
    %617 = math.tanh %616 : vector<2x32xf32>
    %618 = arith.mulf %613, %617 : vector<2x32xf32>
    %619 = tpu.concatenate %618, %594 in 1 : vector<2x32xf32>, vector<2x32xf32> -> vector<2x64xf32>
    %c0_259 = arith.constant 0 : index
    %c0_260 = arith.constant 0 : index
    %620 = vector.load %arg12[%c0_259, %c0_260] : memref<64x4xf32, #tpu.memory_space<vmem>>, vector<64x4xf32>
    %cst_261 = arith.constant dense<0.000000e+00> : vector<2x4xf32>
    %621 = tpu.matmul %619, %620, %cst_261 {dimension_numbers = #tpu.dot_dimension_numbers<[1], [0], [0], [1], [0, 0, 1, 1], [], []>} : vector<2x64xf32>, vector<64x4xf32>, vector<2x4xf32> -> vector<2x4xf32>
    %c0_262 = arith.constant 0 : index
    %c0_263 = arith.constant 0 : index
    %622 = vector.load %arg13[%c0_262, %c0_263] : memref<1x4xf32, #tpu.memory_space<vmem>>, vector<1x4xf32>
    %623 = vector.broadcast %622 : vector<1x4xf32> to vector<2x4xf32>
    %624 = arith.addf %621, %623 : vector<2x4xf32>
    %c0_264 = arith.constant 0 : index
    %c0_265 = arith.constant 0 : index
    %625 = vector.load %arg14[%c0_264, %c0_265] : memref<2x4xf32, #tpu.memory_space<vmem>>, vector<2x4xf32>
    tpu.vector_store %arg14[%c0_264, %c0_265], %624 {strides = array<i32>} : memref<2x4xf32, #tpu.memory_space<vmem>>, vector<2x4xf32>,
    return
  }
}

</mosaic_0001>

<llo_original>
// kernel: attn_lstm_forward.1
$region0: #{attn_lstm_forward.1}
  #allocation0 [shape = 'u32[]', space=smem, size = 0x4, offset = 0x4, fixed_abs, tag = 'smem constant byte address 0x4 - core index']
  #allocation1 [shape = 'u32[144,128]{1,0:T(1,128)}', space=vmem, size = 0x12000, scoped, tag = 'internal scratch']
  #allocation2 [shape = 'f32[2,8,32]{2,1,0:T(8,128)}', space=vmem, size = 0x2000, scoped, tag = 'scratch operand']
  #allocation3 [shape = 'f32[2,8,32]{2,1,0:T(8,128)}', space=vmem, size = 0x2000, scoped, tag = 'scratch operand']
  %s0 = inlined_call_operand.vmem [shape: f32[2,8,4], index: 0, kind: input, shape index: {}]
  %s1 = inlined_call_operand.vmem [shape: f32[4,128], index: 1, kind: input, shape index: {}]
  %s2 = inlined_call_operand.vmem [shape: f32[32,128], index: 2, kind: input, shape index: {}]
  %s3 = inlined_call_operand.vmem [shape: f32[1,128], index: 3, kind: input, shape index: {}]
  %s4 = inlined_call_operand.vmem [shape: f32[64,32], index: 4, kind: input, shape index: {}]
  %s5 = inlined_call_operand.vmem [shape: f32[32,32], index: 5, kind: input, shape index: {}]
  %s6 = inlined_call_operand.vmem [shape: f32[1,32], index: 6, kind: input, shape index: {}]
  %s7 = inlined_call_operand.vmem [shape: f32[1,1,32], index: 7, kind: input, shape index: {}]
  %s8 = inlined_call_operand.vmem [shape: f32[32,128], index: 8, kind: input, shape index: {}]
  %s9 = inlined_call_operand.vmem [shape: f32[4,128], index: 9, kind: input, shape index: {}]
  %s10 = inlined_call_operand.vmem [shape: f32[1,128], index: 10, kind: input, shape index: {}]
  %s11 = inlined_call_operand.vmem [shape: f32[32,128], index: 11, kind: input, shape index: {}]
  %s12 = inlined_call_operand.vmem [shape: f32[64,4], index: 12, kind: input, shape index: {}]
  %s13 = inlined_call_operand.vmem [shape: f32[1,4], index: 13, kind: input, shape index: {}]
  %s14 = inlined_call_operand.hbm [shape: f32[2,4], index: 14, kind: output, shape index: {}]
  %s15 = sld [smem:[#allocation0]]
  $region66: #{attn_lstm_forward.1} parent=0
    _
  %s17 = ssub.s32 1, %s15
  %s18 = scalar_select 0, %s17, %s15
  $region1: #{attn_lstm_forward.1} parent=0
    #allocation4 [shape = 'u8[1024]{0}', space=vmem, size = 0x400, scoped, tag = 'output window, operand 0, single buffered']
    #allocation5 [shape = 's32[1]{0}', space=sflag, size = 0x4, scoped, tag = 'scoped memory for attn_lstm_forward.1']
    %19 = vsyncpa [#allocation5], 0
    // Predicated region
    $region2: #{attn_lstm_forward.1} parent=1 // pred_check
      _
    $region3: #{attn_lstm_forward.1} parent=1 // pred_check_branch
      %21 = sbr.rel (0) target = $region5
    $region4: #{attn_lstm_forward.1} parent=1 // pred_region
      _
    $region5: #{attn_lstm_forward.1} parent=1 // pred_fallthru
      _
    // Predicated region
    $region6: #{attn_lstm_forward.1} parent=1 // pred_check
      _
    $region7: #{attn_lstm_forward.1} parent=1 // pred_check_branch
      %23 = sbr.rel (0) target = $region9
    $region8: #{attn_lstm_forward.1} parent=1 // pred_region
      _
    $region9: #{attn_lstm_forward.1} parent=1 // pred_fallthru
      _
    // Predicated region
    $region10: #{attn_lstm_forward.1} parent=1 // pred_check
      _
    $region11: #{attn_lstm_forward.1} parent=1 // pred_check_branch
      %25 = sbr.rel (0) target = $region13
    $region12: #{attn_lstm_forward.1} parent=1 // pred_region
      _
    $region13: #{attn_lstm_forward.1} parent=1 // pred_fallthru
      _
    // Predicated region
    $region14: #{attn_lstm_forward.1} parent=1 // pred_check
      _
    $region15: #{attn_lstm_forward.1} parent=1 // pred_check_branch
      %27 = sbr.rel (0) target = $region17
    $region16: #{attn_lstm_forward.1} parent=1 // pred_region
      _
    $region17: #{attn_lstm_forward.1} parent=1 // pred_fallthru
      _
    // Predicated region
    $region18: #{attn_lstm_forward.1} parent=1 // pred_check
      _
    $region19: #{attn_lstm_forward.1} parent=1 // pred_check_branch
      %29 = sbr.rel (0) target = $region21
    $region20: #{attn_lstm_forward.1} parent=1 // pred_region
      _
    $region21: #{attn_lstm_forward.1} parent=1 // pred_fallthru
      _
    // Predicated region
    $region22: #{attn_lstm_forward.1} parent=1 // pred_check
      _
    $region23: #{attn_lstm_forward.1} parent=1 // pred_check_branch
      %31 = sbr.rel (0) target = $region25
    $region24: #{attn_lstm_forward.1} parent=1 // pred_region
      _
    $region25: #{attn_lstm_forward.1} parent=1 // pred_fallthru
      _
    // Predicated region
    $region26: #{attn_lstm_forward.1} parent=1 // pred_check
      _
    $region27: #{attn_lstm_forward.1} parent=1 // pred_check_branch
      %33 = sbr.rel (0) target = $region29
    $region28: #{attn_lstm_forward.1} parent=1 // pred_region
      _
    $region29: #{attn_lstm_forward.1} parent=1 // pred_fallthru
      _
    // Predicated region
    $region30: #{attn_lstm_forward.1} parent=1 // pred_check
      _
    $region31: #{attn_lstm_forward.1} parent=1 // pred_check_branch
      %35 = sbr.rel (0) target = $region33
    $region32: #{attn_lstm_forward.1} parent=1 // pred_region
      _
    $region33: #{attn_lstm_forward.1} parent=1 // pred_fallthru
      _
    // Predicated region
    $region34: #{attn_lstm_forward.1} parent=1 // pred_check
      _
    $region35: #{attn_lstm_forward.1} parent=1 // pred_check_branch
      %37 = sbr.rel (0) target = $region37
    $region36: #{attn_lstm_forward.1} parent=1 // pred_region
      _
    $region37: #{attn_lstm_forward.1} parent=1 // pred_fallthru
      _
    // Predicated region
    $region38: #{attn_lstm_forward.1} parent=1 // pred_check
      _
    $region39: #{attn_lstm_forward.1} parent=1 // pred_check_branch
      %39 = sbr.rel (0) target = $region41
    $region40: #{attn_lstm_forward.1} parent=1 // pred_region
      _
    $region41: #{attn_lstm_forward.1} parent=1 // pred_fallthru
      _
    // Predicated region
    $region42: #{attn_lstm_forward.1} parent=1 // pred_check
      _
    $region43: #{attn_lstm_forward.1} parent=1 // pred_check_branch
      %41 = sbr.rel (0) target = $region45
    $region44: #{attn_lstm_forward.1} parent=1 // pred_region
      _
    $region45: #{attn_lstm_forward.1} parent=1 // pred_fallthru
      _
    // Predicated region
    $region46: #{attn_lstm_forward.1} parent=1 // pred_check
      _
    $region47: #{attn_lstm_forward.1} parent=1 // pred_check_branch
      %43 = sbr.rel (0) target = $region49
    $region48: #{attn_lstm_forward.1} parent=1 // pred_region
      _
    $region49: #{attn_lstm_forward.1} parent=1 // pred_fallthru
      _
    // Predicated region
    $region50: #{attn_lstm_forward.1} parent=1 // pred_check
      _
    $region51: #{attn_lstm_forward.1} parent=1 // pred_check_branch
      %45 = sbr.rel (0) target = $region53
    $region52: #{attn_lstm_forward.1} parent=1 // pred_region
      _
    $region53: #{attn_lstm_forward.1} parent=1 // pred_fallthru
      _
    // Predicated region
    $region54: #{attn_lstm_forward.1} parent=1 // pred_check
      _
    $region55: #{attn_lstm_forward.1} parent=1 // pred_check_branch
      %47 = sbr.rel (0) target = $region57
    $region56: #{attn_lstm_forward.1} parent=1 // pred_region
      _
    $region57: #{attn_lstm_forward.1} parent=1 // pred_fallthru
      _
    %v48 = vld [vmem:[%s0] sm:$0xff]
    %v49 = vld [vmem:[%s0 + $0x8] sm:$0xff]
    %v50 = vld [vmem:[%s1] sm:$0xf]
    %v51 = vld [vmem:[%s3] sm:$0x1]
    %v53 = vlaneseq
    %v54 = vshrl.u32 %v53, 7
    %v55 = vsub.s32 0, %v54
    %v56 = vrot.slane %v51, %v55
    %vm58 = vcmask 31744
    %v60 = vsel %vm58, %v48, 0
    %v63 = vsel %vm58, %v49, 0
    %vm65 = vcmask 1043456
    %v67 = vsel %vm65, %v50, 0
    %69 = vmatprep.subr.mxu0 0.0
    %70 = vmatpush1.msra.mxu0 0.0
    %71 = vmatprep.subr.mxu0 0.0
    %72 = vmatpush1.msra.mxu0 0.0
    %73 = vmatprep.subr.mxu0 0.0
    %74 = vmatpush1.msra.mxu0 0.0
    %75 = vmatprep.subr.mxu0 0.0
    %76 = vmatpush1.msra.mxu0 0.0
    %77 = vmatprep.subr.mxu0 0.0
    %78 = vmatpush1.msra.mxu0 0.0
    %79 = vmatprep.subr.mxu0 0.0
    %80 = vmatpush1.msra.mxu0 0.0
    %81 = vmatprep.subr.mxu0 0.0
    %82 = vmatpush1.msra.mxu0 0.0
    %83 = vmatprep.subr.mxu0 0.0
    %84 = vmatpush1.msra.mxu0 0.0
    %85 = vmatprep.subr.mxu0 0.0
    %86 = vmatpush1.msra.mxu0 0.0
    %87 = vmatprep.subr.mxu0 0.0
    %88 = vmatpush1.msra.mxu0 0.0
    %89 = vmatprep.subr.mxu0 0.0
    %90 = vmatpush1.msra.mxu0 0.0
    %91 = vmatprep.subr.mxu0 0.0
    %92 = vmatpush1.msra.mxu0 0.0
    %93 = vmatprep.subr.mxu0 0.0
    %94 = vmatpush1.msra.mxu0 0.0
    %95 = vmatprep.subr.mxu0 0.0
    %96 = vmatpush1.msra.mxu0 0.0
    %97 = vmatprep.subr.mxu0 0.0
    %98 = vmatpush1.msra.mxu0 0.0
    %99 = vmatprep.subr.mxu0 0.0
    %100 = vmatpush1.msra.mxu0 %v67
    %101 = vmatprep.subr.mxu0 0.0
    %102 = vmatpush2.msra.mxu0 0.0
    %103 = vmatprep.subr.mxu0 0.0
    %104 = vmatpush2.msra.mxu0 0.0
    %105 = vmatprep.subr.mxu0 0.0
    %106 = vmatpush2.msra.mxu0 0.0
    %107 = vmatprep.subr.mxu0 0.0
    %108 = vmatpush2.msra.mxu0 0.0
    %109 = vmatprep.subr.mxu0 0.0
    %110 = vmatpush2.msra.mxu0 0.0
    %111 = vmatprep.subr.mxu0 0.0
    %112 = vmatpush2.msra.mxu0 0.0
    %113 = vmatprep.subr.mxu0 0.0
    %114 = vmatpush2.msra.mxu0 0.0
    %115 = vmatprep.subr.mxu0 0.0
    %116 = vmatpush2.msra.mxu0 0.0
    %117 = vmatprep.subr.mxu0 0.0
    %118 = vmatpush2.msra.mxu0 0.0
    %119 = vmatprep.subr.mxu0 0.0
    %120 = vmatpush2.msra.mxu0 0.0
    %121 = vmatprep.subr.mxu0 0.0
    %122 = vmatpush2.msra.mxu0 0.0
    %123 = vmatprep.subr.mxu0 0.0
    %124 = vmatpush2.msra.mxu0 0.0
    %125 = vmatprep.subr.mxu0 0.0
    %126 = vmatpush2.msra.mxu0 0.0
    %127 = vmatprep.subr.mxu0 0.0
    %128 = vmatpush2.msra.mxu0 0.0
    %129 = vmatprep.subr.mxu0 0.0
    %130 = vmatpush2.msra.mxu0 0.0
    %131 = vmatprep.subr.mxu0 0.0
    %132 = vmatpush2.msra.mxu0 0.0
    %133 = vmatprep.mubr.f32.mxu0 0.0
    %134 = vmatmul.mubr.f32.gmra.mxu0 %v60
    %v135 = vpop.f32.mrf.mxu0
    %v136 = vadd.f32 %v56, %v135
    %v137 = vpop.f32.mrf.mxu0
    %138 = vmatprep.mubr.f32.mxu0 0.0
    %139 = vmatmul.mubr.f32.gmra.mxu0 %v63
    %v140 = vpop.f32.mrf.mxu0
    %v141 = vadd.f32 %v56, %v140
    %v142 = vpop.f32.mrf.mxu0
    %143 = vdwg.mxu0
    %v144 = vld [vmem:[%s9] sm:$0xf]
    %v145 = vld [vmem:[%s10] sm:$0x1]
    %v147 = vlaneseq
    %v148 = vshrl.u32 %v147, 7
    %v149 = vsub.s32 0, %v148
    %v150 = vrot.slane %v145, %v149
    %v153 = vsel %vm65, %v144, 0
    %155 = vmatprep.subr.mxu0 0.0
    %156 = vmatpush1.msra.mxu0 0.0
    %157 = vmatprep.subr.mxu0 0.0
    %158 = vmatpush1.msra.mxu0 0.0
    %159 = vmatprep.subr.mxu0 0.0
    %160 = vmatpush1.msra.mxu0 0.0
    %161 = vmatprep.subr.mxu0 0.0
    %162 = vmatpush1.msra.mxu0 0.0
    %163 = vmatprep.subr.mxu0 0.0
    %164 = vmatpush1.msra.mxu0 0.0
    %165 = vmatprep.subr.mxu0 0.0
    %166 = vmatpush1.msra.mxu0 0.0
    %167 = vmatprep.subr.mxu0 0.0
    %168 = vmatpush1.msra.mxu0 0.0
    %169 = vmatprep.subr.mxu0 0.0
    %170 = vmatpush1.msra.mxu0 0.0
    %171 = vmatprep.subr.mxu0 0.0
    %172 = vmatpush1.msra.mxu0 0.0
    %173 = vmatprep.subr.mxu0 0.0
    %174 = vmatpush1.msra.mxu0 0.0
    %175 = vmatprep.subr.mxu0 0.0
    %176 = vmatpush1.msra.mxu0 0.0
    %177 = vmatprep.subr.mxu0 0.0
    %178 = vmatpush1.msra.mxu0 0.0
    %179 = vmatprep.subr.mxu0 0.0
    %180 = vmatpush1.msra.mxu0 0.0
    %181 = vmatprep.subr.mxu0 0.0
    %182 = vmatpush1.msra.mxu0 0.0
    %183 = vmatprep.subr.mxu0 0.0
    %184 = vmatpush1.msra.mxu0 0.0
    %185 = vmatprep.subr.mxu0 0.0
    %186 = vmatpush1.msra.mxu0 %v153
    %187 = vmatprep.subr.mxu0 0.0
    %188 = vmatpush2.msra.mxu0 0.0
    %189 = vmatprep.subr.mxu0 0.0
    %190 = vmatpush2.msra.mxu0 0.0
    %191 = vmatprep.subr.mxu0 0.0
    %192 = vmatpush2.msra.mxu0 0.0
    %193 = vmatprep.subr.mxu0 0.0
    %194 = vmatpush2.msra.mxu0 0.0
    %195 = vmatprep.subr.mxu0 0.0
    %196 = vmatpush2.msra.mxu0 0.0
    %197 = vmatprep.subr.mxu0 0.0
    %198 = vmatpush2.msra.mxu0 0.0
    %199 = vmatprep.subr.mxu0 0.0
    %200 = vmatpush2.msra.mxu0 0.0
    %201 = vmatprep.subr.mxu0 0.0
    %202 = vmatpush2.msra.mxu0 0.0
    %203 = vmatprep.subr.mxu0 0.0
    %204 = vmatpush2.msra.mxu0 0.0
    %205 = vmatprep.subr.mxu0 0.0
    %206 = vmatpush2.msra.mxu0 0.0
    %207 = vmatprep.subr.mxu0 0.0
    %208 = vmatpush2.msra.mxu0 0.0
    %209 = vmatprep.subr.mxu0 0.0
    %210 = vmatpush2.msra.mxu0 0.0
    %211 = vmatprep.subr.mxu0 0.0
    %212 = vmatpush2.msra.mxu0 0.0
    %213 = vmatprep.subr.mxu0 0.0
    %214 = vmatpush2.msra.mxu0 0.0
    %215 = vmatprep.subr.mxu0 0.0
    %216 = vmatpush2.msra.mxu0 0.0
    %217 = vmatprep.subr.mxu0 0.0
    %218 = vmatpush2.msra.mxu0 0.0
    %219 = vmatprep.mubr.f32.mxu0 0.0
    %220 = vmatmul.mubr.f32.gmra.mxu0 %v60
    %v221 = vpop.f32.mrf.mxu0
    %v222 = vadd.f32 %v150, %v221
    %v223 = vpop.f32.mrf.mxu0
    %224 = vmatprep.mubr.f32.mxu0 0.0
    %225 = vmatmul.mubr.f32.gmra.mxu0 %v63
    %v226 = vpop.f32.mrf.mxu0
    %v227 = vadd.f32 %v150, %v226
    %v228 = vpop.f32.mrf.mxu0
    %229 = vdwg.mxu0
    %v230 = vld [vmem:[%s2] sm:$0xff]
    %v231 = vld [vmem:[%s2 + $0x8] sm:$0xff]
    %v232 = vld [vmem:[%s2 + $0x10] sm:$0xff]
    %v233 = vld [vmem:[%s2 + $0x18] sm:$0xff]
    %vm234 = vcmask 261120
    %v236 = vsel %vm234, 0.0, 0
    %238 = vmatprep.subr.mxu0 0.0
    %239 = vmatpush1.msra.mxu0 0.0
    %240 = vmatprep.subr.mxu0 0.0
    %241 = vmatpush1.msra.mxu0 0.0
    %242 = vmatprep.subr.mxu0 0.0
    %243 = vmatpush1.msra.mxu0 0.0
    %244 = vmatprep.subr.mxu0 0.0
    %245 = vmatpush1.msra.mxu0 0.0
    %246 = vmatprep.subr.mxu0 0.0
    %247 = vmatpush1.msra.mxu0 0.0
    %248 = vmatprep.subr.mxu0 0.0
    %249 = vmatpush1.msra.mxu0 0.0
    %250 = vmatprep.subr.mxu0 0.0
    %251 = vmatpush1.msra.mxu0 0.0
    %252 = vmatprep.subr.mxu0 0.0
    %253 = vmatpush1.msra.mxu0 0.0
    %254 = vmatprep.subr.mxu0 0.0
    %255 = vmatpush1.msra.mxu0 0.0
    %256 = vmatprep.subr.mxu0 0.0
    %257 = vmatpush1.msra.mxu0 0.0
    %258 = vmatprep.subr.mxu0 0.0
    %259 = vmatpush1.msra.mxu0 0.0
    %260 = vmatprep.subr.mxu0 0.0
    %261 = vmatpush1.msra.mxu0 0.0
    %262 = vmatprep.subr.mxu0 0.0
    %263 = vmatpush1.msra.mxu0 %v233
    %264 = vmatprep.subr.mxu0 0.0
    %265 = vmatpush1.msra.mxu0 %v232
    %266 = vmatprep.subr.mxu0 0.0
    %267 = vmatpush1.msra.mxu0 %v231
    %268 = vmatprep.subr.mxu0 0.0
    %269 = vmatpush1.msra.mxu0 %v230
    %270 = vmatprep.subr.mxu0 0.0
    %271 = vmatpush2.msra.mxu0 0.0
    %272 = vmatprep.subr.mxu0 0.0
    %273 = vmatpush2.msra.mxu0 0.0
    %274 = vmatprep.subr.mxu0 0.0
    %275 = vmatpush2.msra.mxu0 0.0
    %276 = vmatprep.subr.mxu0 0.0
    %277 = vmatpush2.msra.mxu0 0.0
    %278 = vmatprep.subr.mxu0 0.0
    %279 = vmatpush2.msra.mxu0 0.0
    %280 = vmatprep.subr.mxu0 0.0
    %281 = vmatpush2.msra.mxu0 0.0
    %282 = vmatprep.subr.mxu0 0.0
    %283 = vmatpush2.msra.mxu0 0.0
    %284 = vmatprep.subr.mxu0 0.0
    %285 = vmatpush2.msra.mxu0 0.0
    %286 = vmatprep.subr.mxu0 0.0
    %287 = vmatpush2.msra.mxu0 0.0
    %288 = vmatprep.subr.mxu0 0.0
    %289 = vmatpush2.msra.mxu0 0.0
    %290 = vmatprep.subr.mxu0 0.0
    %291 = vmatpush2.msra.mxu0 0.0
    %292 = vmatprep.subr.mxu0 0.0
    %293 = vmatpush2.msra.mxu0 0.0
    %294 = vmatprep.subr.mxu0 0.0
    %295 = vmatpush2.msra.mxu0 0.0
    %296 = vmatprep.subr.mxu0 0.0
    %297 = vmatpush2.msra.mxu0 0.0
    %298 = vmatprep.subr.mxu0 0.0
    %299 = vmatpush2.msra.mxu0 0.0
    %300 = vmatprep.subr.mxu0 0.0
    %301 = vmatpush2.msra.mxu0 0.0
    %302 = vmatprep.mubr.f32.mxu0 0.0
    %303 = vmatmul.mubr.f32.gmra.mxu0 %v236
    %v304 = vpop.f32.mrf.mxu0
    %v305 = vadd.f32 0.0, %v304
    %v306 = vpop.f32.mrf.mxu0
    %307 = vdwg.mxu0
    %v309 = vrot.slane %v305, 1
    %v312 = vadd.f32 %v136, %v305
    %v313 = vadd.f32 %v141, %v309
    %v314 = vxor.u32 %v312, 2147483648
    %v315 = vxor.u32 %v313, 2147483648
    %v316 = vmul.f32 %v314, 1.442695
    %v317 = vpow.pop %v316
    %v318 = vmul.f32 %v315, 1.442695
    %v319 = vpow.pop %v318
    %v320 = vadd.f32 %v317, 1.0
    %v321 = vadd.f32 %v319, 1.0
    %v322 = vrcp.pop %v320
    %v323 = vmul.f32 1.0, %v322
    %v324 = vrcp.pop %v321
    %v325 = vmul.f32 1.0, %v324
    %v326 = vtanh.pop %v312
    %v327 = vtanh.pop %v313
    %v328 = vmul.f32 %v323, 0.0
    %v329 = vmul.f32 %v325, 0.0
    %332 = vrot.lane.b32.xlu0 %v326, 32
    %v333 = vpop.permute.xlu0 %332
    %334 = vrot.lane.b32.xlu0 %v327, 32
    %v335 = vpop.permute.xlu0 %334
    %v338 = vmul.f32 %v323, %v333
    %v339 = vmul.f32 %v325, %v335
    %342 = vrot.lane.b32.xlu0 %v338, 32
    %v343 = vpop.permute.xlu0 %342
    %344 = vrot.lane.b32.xlu0 %v339, 32
    %v345 = vpop.permute.xlu0 %344
    %v348 = vadd.f32 %v328, %v343
    %v349 = vadd.f32 %v329, %v345
    %v350 = vtanh.pop %v348
    %v351 = vtanh.pop %v349
    %354 = vrot.lane.b32.xlu0 %v350, 32
    %v355 = vpop.permute.xlu0 %354
    %356 = vrot.lane.b32.xlu0 %v351, 32
    %v357 = vpop.permute.xlu0 %356
    %v360 = vmul.f32 %v323, %v355
    %v361 = vmul.f32 %v325, %v357
    %364 = vrot.lane.b32.xlu0 %v360, 64
    %v365 = vpop.permute.xlu0 %364
    %366 = vrot.lane.b32.xlu0 %v361, 64
    %v367 = vpop.permute.xlu0 %366
    %vm370 = vcmask 253952
    %371 = vst.msk [vmem:[#allocation2] sm:$0x1] %vm370, %v365
    %372 = vst.msk [vmem:[#allocation2 + $0x8] sm:$0x1] %vm370, %v367
    %v373 = vld [vmem:[%s2] sm:$0xff]
    %v374 = vld [vmem:[%s2 + $0x8] sm:$0xff]
    %v375 = vld [vmem:[%s2 + $0x10] sm:$0xff]
    %v376 = vld [vmem:[%s2 + $0x18] sm:$0xff]
    %v377 = vrot.slane %v361, 7
    %vm378 = vcmask 1041409
    %v379 = vsel %vm378, %v377, %v360
    %380 = vrot.lane.b32.xlu0 %v379, 64
    %v381 = vpop.permute.xlu0 %380
    %v382 = vsel %vm234, %v381, 0
    %384 = vmatprep.subr.mxu0 0.0
    %385 = vmatpush1.msra.mxu0 0.0
    %386 = vmatprep.subr.mxu0 0.0
    %387 = vmatpush1.msra.mxu0 0.0
    %388 = vmatprep.subr.mxu0 0.0
    %389 = vmatpush1.msra.mxu0 0.0
    %390 = vmatprep.subr.mxu0 0.0
    %391 = vmatpush1.msra.mxu0 0.0
    %392 = vmatprep.subr.mxu0 0.0
    %393 = vmatpush1.msra.mxu0 0.0
    %394 = vmatprep.subr.mxu0 0.0
    %395 = vmatpush1.msra.mxu0 0.0
    %396 = vmatprep.subr.mxu0 0.0
    %397 = vmatpush1.msra.mxu0 0.0
    %398 = vmatprep.subr.mxu0 0.0
    %399 = vmatpush1.msra.mxu0 0.0
    %400 = vmatprep.subr.mxu0 0.0
    %401 = vmatpush1.msra.mxu0 0.0
    %402 = vmatprep.subr.mxu0 0.0
    %403 = vmatpush1.msra.mxu0 0.0
    %404 = vmatprep.subr.mxu0 0.0
    %405 = vmatpush1.msra.mxu0 0.0
    %406 = vmatprep.subr.mxu0 0.0
    %407 = vmatpush1.msra.mxu0 0.0
    %408 = vmatprep.subr.mxu0 0.0
    %409 = vmatpush1.msra.mxu0 %v376
    %410 = vmatprep.subr.mxu0 0.0
    %411 = vmatpush1.msra.mxu0 %v375
    %412 = vmatprep.subr.mxu0 0.0
    %413 = vmatpush1.msra.mxu0 %v374
    %414 = vmatprep.subr.mxu0 0.0
    %415 = vmatpush1.msra.mxu0 %v373
    %416 = vmatprep.subr.mxu0 0.0
    %417 = vmatpush2.msra.mxu0 0.0
    %418 = vmatprep.subr.mxu0 0.0
    %419 = vmatpush2.msra.mxu0 0.0
    %420 = vmatprep.subr.mxu0 0.0
    %421 = vmatpush2.msra.mxu0 0.0
    %422 = vmatprep.subr.mxu0 0.0
    %423 = vmatpush2.msra.mxu0 0.0
    %424 = vmatprep.subr.mxu0 0.0
    %425 = vmatpush2.msra.mxu0 0.0
    %426 = vmatprep.subr.mxu0 0.0
    %427 = vmatpush2.msra.mxu0 0.0
    %428 = vmatprep.subr.mxu0 0.0
    %429 = vmatpush2.msra.mxu0 0.0
    %430 = vmatprep.subr.mxu0 0.0
    %431 = vmatpush2.msra.mxu0 0.0
    %432 = vmatprep.subr.mxu0 0.0
    %433 = vmatpush2.msra.mxu0 0.0
    %434 = vmatprep.subr.mxu0 0.0
    %435 = vmatpush2.msra.mxu0 0.0
    %436 = vmatprep.subr.mxu0 0.0
    %437 = vmatpush2.msra.mxu0 0.0
    %438 = vmatprep.subr.mxu0 0.0
    %439 = vmatpush2.msra.mxu0 0.0
    %440 = vmatprep.subr.mxu0 0.0
    %441 = vmatpush2.msra.mxu0 0.0
    %442 = vmatprep.subr.mxu0 0.0
    %443 = vmatpush2.msra.mxu0 0.0
    %444 = vmatprep.subr.mxu0 0.0
    %445 = vmatpush2.msra.mxu0 0.0
    %446 = vmatprep.subr.mxu0 0.0
    %447 = vmatpush2.msra.mxu0 0.0
    %448 = vmatprep.mubr.f32.mxu0 0.0
    %449 = vmatmul.mubr.f32.gmra.mxu0 %v382
    %v450 = vpop.f32.mrf.mxu0
    %v451 = vadd.f32 0.0, %v450
    %v452 = vpop.f32.mrf.mxu0
    %453 = vdwg.mxu0
    %v455 = vrot.slane %v451, 7
    %v458 = vadd.f32 %v136, %v455
    %v459 = vadd.f32 %v141, %v451
    %v460 = vxor.u32 %v458, 2147483648
    %v461 = vxor.u32 %v459, 2147483648
    %v462 = vmul.f32 %v460, 1.442695
    %v463 = vpow.pop %v462
    %v464 = vmul.f32 %v461, 1.442695
    %v465 = vpow.pop %v464
    %v466 = vadd.f32 %v463, 1.0
    %v467 = vadd.f32 %v465, 1.0
    %v468 = vrcp.pop %v466
    %v469 = vmul.f32 1.0, %v468
    %v470 = vrcp.pop %v467
    %v471 = vmul.f32 1.0, %v470
    %v472 = vtanh.pop %v458
    %v473 = vtanh.pop %v459
    %v476 = vrot.slane %v348, 7
    %v477 = vrot.slane %v349, 7
    %v480 = vmul.f32 %v469, %v476
    %v481 = vmul.f32 %v471, %v477
    %484 = vrot.lane.b32.xlu0 %v472, 32
    %v485 = vpop.permute.xlu0 %484
    %486 = vrot.lane.b32.xlu0 %v473, 32
    %v487 = vpop.permute.xlu0 %486
    %v490 = vmul.f32 %v469, %v485
    %v491 = vmul.f32 %v471, %v487
    %494 = vrot.lane.b32.xlu0 %v490, 32
    %v495 = vpop.permute.xlu0 %494
    %496 = vrot.lane.b32.xlu0 %v491, 32
    %v497 = vpop.permute.xlu0 %496
    %v500 = vadd.f32 %v480, %v495
    %v501 = vadd.f32 %v481, %v497
    %v502 = vtanh.pop %v500
    %v503 = vtanh.pop %v501
    %506 = vrot.lane.b32.xlu0 %v502, 32
    %v507 = vpop.permute.xlu0 %506
    %508 = vrot.lane.b32.xlu0 %v503, 32
    %v509 = vpop.permute.xlu0 %508
    %v512 = vmul.f32 %v469, %v507
    %v513 = vmul.f32 %v471, %v509
    %516 = vrot.lane.b32.xlu0 %v512, 64
    %v517 = vpop.permute.xlu0 %516
    %518 = vrot.lane.b32.xlu0 %v513, 64
    %v519 = vpop.permute.xlu0 %518
    %vm522 = vcmask 254977
    %523 = vst.msk [vmem:[#allocation2] sm:$0x2] %vm522, %v517
    %524 = vst.msk [vmem:[#allocation2 + $0x8] sm:$0x2] %vm522, %v519
    %v525 = vld [vmem:[%s2] sm:$0xff]
    %v526 = vld [vmem:[%s2 + $0x8] sm:$0xff]
    %v527 = vld [vmem:[%s2 + $0x10] sm:$0xff]
    %v528 = vld [vmem:[%s2 + $0x18] sm:$0xff]
    %v529 = vrot.slane %v512, 1
    %v530 = vsel %vm378, %v513, %v529
    %531 = vrot.lane.b32.xlu0 %v530, 64
    %v532 = vpop.permute.xlu0 %531
    %v533 = vsel %vm234, %v532, 0
    %535 = vmatprep.subr.mxu0 0.0
    %536 = vmatpush1.msra.mxu0 0.0
    %537 = vmatprep.subr.mxu0 0.0
    %538 = vmatpush1.msra.mxu0 0.0
    %539 = vmatprep.subr.mxu0 0.0
    %540 = vmatpush1.msra.mxu0 0.0
    %541 = vmatprep.subr.mxu0 0.0
    %542 = vmatpush1.msra.mxu0 0.0
    %543 = vmatprep.subr.mxu0 0.0
    %544 = vmatpush1.msra.mxu0 0.0
    %545 = vmatprep.subr.mxu0 0.0
    %546 = vmatpush1.msra.mxu0 0.0
    %547 = vmatprep.subr.mxu0 0.0
    %548 = vmatpush1.msra.mxu0 0.0
    %549 = vmatprep.subr.mxu0 0.0
    %550 = vmatpush1.msra.mxu0 0.0
    %551 = vmatprep.subr.mxu0 0.0
    %552 = vmatpush1.msra.mxu0 0.0
    %553 = vmatprep.subr.mxu0 0.0
    %554 = vmatpush1.msra.mxu0 0.0
    %555 = vmatprep.subr.mxu0 0.0
    %556 = vmatpush1.msra.mxu0 0.0
    %557 = vmatprep.subr.mxu0 0.0
    %558 = vmatpush1.msra.mxu0 0.0
    %559 = vmatprep.subr.mxu0 0.0
    %560 = vmatpush1.msra.mxu0 %v528
    %561 = vmatprep.subr.mxu0 0.0
    %562 = vmatpush1.msra.mxu0 %v527
    %563 = vmatprep.subr.mxu0 0.0
    %564 = vmatpush1.msra.mxu0 %v526
    %565 = vmatprep.subr.mxu0 0.0
    %566 = vmatpush1.msra.mxu0 %v525
    %567 = vmatprep.subr.mxu0 0.0
    %568 = vmatpush2.msra.mxu0 0.0
    %569 = vmatprep.subr.mxu0 0.0
    %570 = vmatpush2.msra.mxu0 0.0
    %571 = vmatprep.subr.mxu0 0.0
    %572 = vmatpush2.msra.mxu0 0.0
    %573 = vmatprep.subr.mxu0 0.0
    %574 = vmatpush2.msra.mxu0 0.0
    %575 = vmatprep.subr.mxu0 0.0
    %576 = vmatpush2.msra.mxu0 0.0
    %577 = vmatprep.subr.mxu0 0.0
    %578 = vmatpush2.msra.mxu0 0.0
    %579 = vmatprep.subr.mxu0 0.0
    %580 = vmatpush2.msra.mxu0 0.0
    %581 = vmatprep.subr.mxu0 0.0
    %582 = vmatpush2.msra.mxu0 0.0
    %583 = vmatprep.subr.mxu0 0.0
    %584 = vmatpush2.msra.mxu0 0.0
    %585 = vmatprep.subr.mxu0 0.0
    %586 = vmatpush2.msra.mxu0 0.0
    %587 = vmatprep.subr.mxu0 0.0
    %588 = vmatpush2.msra.mxu0 0.0
    %589 = vmatprep.subr.mxu0 0.0
    %590 = vmatpush2.msra.mxu0 0.0
    %591 = vmatprep.subr.mxu0 0.0
    %592 = vmatpush2.msra.mxu0 0.0
    %593 = vmatprep.subr.mxu0 0.0
    %594 = vmatpush2.msra.mxu0 0.0
    %595 = vmatprep.subr.mxu0 0.0
    %596 = vmatpush2.msra.mxu0 0.0
    %597 = vmatprep.subr.mxu0 0.0
    %598 = vmatpush2.msra.mxu0 0.0
    %599 = vmatprep.mubr.f32.mxu0 0.0
    %600 = vmatmul.mubr.f32.gmra.mxu0 %v533
    %v601 = vpop.f32.mrf.mxu0
    %v602 = vadd.f32 0.0, %v601
    %v603 = vpop.f32.mrf.mxu0
    %604 = vdwg.mxu0
    %v606 = vrot.slane %v602, 6
    %v607 = vrot.slane %v602, 7
    %v610 = vadd.f32 %v136, %v606
    %v611 = vadd.f32 %v141, %v607
    %v612 = vxor.u32 %v610, 2147483648
    %v613 = vxor.u32 %v611, 2147483648
    %v614 = vmul.f32 %v612, 1.442695
    %v615 = vpow.pop %v614
    %v616 = vmul.f32 %v613, 1.442695
    %v617 = vpow.pop %v616
    %v618 = vadd.f32 %v615, 1.0
    %v619 = vadd.f32 %v617, 1.0
    %v620 = vrcp.pop %v618
    %v621 = vmul.f32 1.0, %v620
    %v622 = vrcp.pop %v619
    %v623 = vmul.f32 1.0, %v622
    %v624 = vtanh.pop %v610
    %v625 = vtanh.pop %v611
    %v628 = vrot.slane %v500, 7
    %v629 = vrot.slane %v501, 7
    %v632 = vmul.f32 %v621, %v628
    %v633 = vmul.f32 %v623, %v629
    %636 = vrot.lane.b32.xlu0 %v624, 32
    %v637 = vpop.permute.xlu0 %636
    %638 = vrot.lane.b32.xlu0 %v625, 32
    %v639 = vpop.permute.xlu0 %638
    %v642 = vmul.f32 %v621, %v637
    %v643 = vmul.f32 %v623, %v639
    %646 = vrot.lane.b32.xlu0 %v642, 32
    %v647 = vpop.permute.xlu0 %646
    %648 = vrot.lane.b32.xlu0 %v643, 32
    %v649 = vpop.permute.xlu0 %648
    %v652 = vadd.f32 %v632, %v647
    %v653 = vadd.f32 %v633, %v649
    %v654 = vtanh.pop %v652
    %v655 = vtanh.pop %v653
    %658 = vrot.lane.b32.xlu0 %v654, 32
    %v659 = vpop.permute.xlu0 %658
    %660 = vrot.lane.b32.xlu0 %v655, 32
    %v661 = vpop.permute.xlu0 %660
    %v664 = vmul.f32 %v621, %v659
    %v665 = vmul.f32 %v623, %v661
    %668 = vrot.lane.b32.xlu0 %v664, 64
    %v669 = vpop.permute.xlu0 %668
    %670 = vrot.lane.b32.xlu0 %v665, 64
    %v671 = vpop.permute.xlu0 %670
    %vm674 = vcmask 256002
    %675 = vst.msk [vmem:[#allocation2] sm:$0x4] %vm674, %v669
    %676 = vst.msk [vmem:[#allocation2 + $0x8] sm:$0x4] %vm674, %v671
    %v677 = vld [vmem:[%s2] sm:$0xff]
    %v678 = vld [vmem:[%s2 + $0x8] sm:$0xff]
    %v679 = vld [vmem:[%s2 + $0x10] sm:$0xff]
    %v680 = vld [vmem:[%s2 + $0x18] sm:$0xff]
    %v681 = vrot.slane %v664, 2
    %v682 = vrot.slane %v665, 1
    %v683 = vsel %vm378, %v682, %v681
    %684 = vrot.lane.b32.xlu0 %v683, 64
    %v685 = vpop.permute.xlu0 %684
    %v686 = vsel %vm234, %v685, 0
    %688 = vmatprep.subr.mxu0 0.0
    %689 = vmatpush1.msra.mxu0 0.0
    %690 = vmatprep.subr.mxu0 0.0
    %691 = vmatpush1.msra.mxu0 0.0
    %692 = vmatprep.subr.mxu0 0.0
    %693 = vmatpush1.msra.mxu0 0.0
    %694 = vmatprep.subr.mxu0 0.0
    %695 = vmatpush1.msra.mxu0 0.0
    %696 = vmatprep.subr.mxu0 0.0
    %697 = vmatpush1.msra.mxu0 0.0
    %698 = vmatprep.subr.mxu0 0.0
    %699 = vmatpush1.msra.mxu0 0.0
    %700 = vmatprep.subr.mxu0 0.0
    %701 = vmatpush1.msra.mxu0 0.0
    %702 = vmatprep.subr.mxu0 0.0
    %703 = vmatpush1.msra.mxu0 0.0
    %704 = vmatprep.subr.mxu0 0.0
    %705 = vmatpush1.msra.mxu0 0.0
    %706 = vmatprep.subr.mxu0 0.0
    %707 = vmatpush1.msra.mxu0 0.0
    %708 = vmatprep.subr.mxu0 0.0
    %709 = vmatpush1.msra.mxu0 0.0
    %710 = vmatprep.subr.mxu0 0.0
    %711 = vmatpush1.msra.mxu0 0.0
    %712 = vmatprep.subr.mxu0 0.0
    %713 = vmatpush1.msra.mxu0 %v680
    %714 = vmatprep.subr.mxu0 0.0
    %715 = vmatpush1.msra.mxu0 %v679
    %716 = vmatprep.subr.mxu0 0.0
    %717 = vmatpush1.msra.mxu0 %v678
    %718 = vmatprep.subr.mxu0 0.0
    %719 = vmatpush1.msra.mxu0 %v677
    %720 = vmatprep.subr.mxu0 0.0
    %721 = vmatpush2.msra.mxu0 0.0
    %722 = vmatprep.subr.mxu0 0.0
    %723 = vmatpush2.msra.mxu0 0.0
    %724 = vmatprep.subr.mxu0 0.0
    %725 = vmatpush2.msra.mxu0 0.0
    %726 = vmatprep.subr.mxu0 0.0
    %727 = vmatpush2.msra.mxu0 0.0
    %728 = vmatprep.subr.mxu0 0.0
    %729 = vmatpush2.msra.mxu0 0.0
    %730 = vmatprep.subr.mxu0 0.0
    %731 = vmatpush2.msra.mxu0 0.0
    %732 = vmatprep.subr.mxu0 0.0
    %733 = vmatpush2.msra.mxu0 0.0
    %734 = vmatprep.subr.mxu0 0.0
    %735 = vmatpush2.msra.mxu0 0.0
    %736 = vmatprep.subr.mxu0 0.0
    %737 = vmatpush2.msra.mxu0 0.0
    %738 = vmatprep.subr.mxu0 0.0
    %739 = vmatpush2.msra.mxu0 0.0
    %740 = vmatprep.subr.mxu0 0.0
    %741 = vmatpush2.msra.mxu0 0.0
    %742 = vmatprep.subr.mxu0 0.0
    %743 = vmatpush2.msra.mxu0 0.0
    %744 = vmatprep.subr.mxu0 0.0
    %745 = vmatpush2.msra.mxu0 0.0
    %746 = vmatprep.subr.mxu0 0.0
    %747 = vmatpush2.msra.mxu0 0.0
    %748 = vmatprep.subr.mxu0 0.0
    %749 = vmatpush2.msra.mxu0 0.0
    %750 = vmatprep.subr.mxu0 0.0
    %751 = vmatpush2.msra.mxu0 0.0
    %752 = vmatprep.mubr.f32.mxu0 0.0
    %753 = vmatmul.mubr.f32.gmra.mxu0 %v686
    %v754 = vpop.f32.mrf.mxu0
    %v755 = vadd.f32 0.0, %v754
    %v756 = vpop.f32.mrf.mxu0
    %757 = vdwg.mxu0
    %v759 = vrot.slane %v755, 5
    %v760 = vrot.slane %v755, 6
    %v763 = vadd.f32 %v136, %v759
    %v764 = vadd.f32 %v141, %v760
    %v765 = vxor.u32 %v763, 2147483648
    %v766 = vxor.u32 %v764, 2147483648
    %v767 = vmul.f32 %v765, 1.442695
    %v768 = vpow.pop %v767
    %v769 = vmul.f32 %v766, 1.442695
    %v770 = vpow.pop %v769
    %v771 = vadd.f32 %v768, 1.0
    %v772 = vadd.f32 %v770, 1.0
    %v773 = vrcp.pop %v771
    %v774 = vmul.f32 1.0, %v773
    %v775 = vrcp.pop %v772
    %v776 = vmul.f32 1.0, %v775
    %v777 = vtanh.pop %v763
    %v778 = vtanh.pop %v764
    %v781 = vrot.slane %v652, 7
    %v782 = vrot.slane %v653, 7
    %v785 = vmul.f32 %v774, %v781
    %v786 = vmul.f32 %v776, %v782
    %789 = vrot.lane.b32.xlu0 %v777, 32
    %v790 = vpop.permute.xlu0 %789
    %791 = vrot.lane.b32.xlu0 %v778, 32
    %v792 = vpop.permute.xlu0 %791
    %v795 = vmul.f32 %v774, %v790
    %v796 = vmul.f32 %v776, %v792
    %799 = vrot.lane.b32.xlu0 %v795, 32
    %v800 = vpop.permute.xlu0 %799
    %801 = vrot.lane.b32.xlu0 %v796, 32
    %v802 = vpop.permute.xlu0 %801
    %v805 = vadd.f32 %v785, %v800
    %v806 = vadd.f32 %v786, %v802
    %v807 = vtanh.pop %v805
    %v808 = vtanh.pop %v806
    %811 = vrot.lane.b32.xlu0 %v807, 32
    %v812 = vpop.permute.xlu0 %811
    %813 = vrot.lane.b32.xlu0 %v808, 32
    %v814 = vpop.permute.xlu0 %813
    %v817 = vmul.f32 %v774, %v812
    %v818 = vmul.f32 %v776, %v814
    %821 = vrot.lane.b32.xlu0 %v817, 64
    %v822 = vpop.permute.xlu0 %821
    %823 = vrot.lane.b32.xlu0 %v818, 64
    %v824 = vpop.permute.xlu0 %823
    %vm827 = vcmask 257027
    %828 = vst.msk [vmem:[#allocation2] sm:$0x8] %vm827, %v822
    %829 = vst.msk [vmem:[#allocation2 + $0x8] sm:$0x8] %vm827, %v824
    %v830 = vld [vmem:[%s2] sm:$0xff]
    %v831 = vld [vmem:[%s2 + $0x8] sm:$0xff]
    %v832 = vld [vmem:[%s2 + $0x10] sm:$0xff]
    %v833 = vld [vmem:[%s2 + $0x18] sm:$0xff]
    %v834 = vrot.slane %v817, 3
    %v835 = vrot.slane %v818, 2
    %v836 = vsel %vm378, %v835, %v834
    %837 = vrot.lane.b32.xlu0 %v836, 64
    %v838 = vpop.permute.xlu0 %837
    %v839 = vsel %vm234, %v838, 0
    %841 = vmatprep.subr.mxu0 0.0
    %842 = vmatpush1.msra.mxu0 0.0
    %843 = vmatprep.subr.mxu0 0.0
    %844 = vmatpush1.msra.mxu0 0.0
    %845 = vmatprep.subr.mxu0 0.0
    %846 = vmatpush1.msra.mxu0 0.0
    %847 = vmatprep.subr.mxu0 0.0
    %848 = vmatpush1.msra.mxu0 0.0
    %849 = vmatprep.subr.mxu0 0.0
    %850 = vmatpush1.msra.mxu0 0.0
    %851 = vmatprep.subr.mxu0 0.0
    %852 = vmatpush1.msra.mxu0 0.0
    %853 = vmatprep.subr.mxu0 0.0
    %854 = vmatpush1.msra.mxu0 0.0
    %855 = vmatprep.subr.mxu0 0.0
    %856 = vmatpush1.msra.mxu0 0.0
    %857 = vmatprep.subr.mxu0 0.0
    %858 = vmatpush1.msra.mxu0 0.0
    %859 = vmatprep.subr.mxu0 0.0
    %860 = vmatpush1.msra.mxu0 0.0
    %861 = vmatprep.subr.mxu0 0.0
    %862 = vmatpush1.msra.mxu0 0.0
    %863 = vmatprep.subr.mxu0 0.0
    %864 = vmatpush1.msra.mxu0 0.0
    %865 = vmatprep.subr.mxu0 0.0
    %866 = vmatpush1.msra.mxu0 %v833
    %867 = vmatprep.subr.mxu0 0.0
    %868 = vmatpush1.msra.mxu0 %v832
    %869 = vmatprep.subr.mxu0 0.0
    %870 = vmatpush1.msra.mxu0 %v831
    %871 = vmatprep.subr.mxu0 0.0
    %872 = vmatpush1.msra.mxu0 %v830
    %873 = vmatprep.subr.mxu0 0.0
    %874 = vmatpush2.msra.mxu0 0.0
    %875 = vmatprep.subr.mxu0 0.0
    %876 = vmatpush2.msra.mxu0 0.0
    %877 = vmatprep.subr.mxu0 0.0
    %878 = vmatpush2.msra.mxu0 0.0
    %879 = vmatprep.subr.mxu0 0.0
    %880 = vmatpush2.msra.mxu0 0.0
    %881 = vmatprep.subr.mxu0 0.0
    %882 = vmatpush2.msra.mxu0 0.0
    %883 = vmatprep.subr.mxu0 0.0
    %884 = vmatpush2.msra.mxu0 0.0
    %885 = vmatprep.subr.mxu0 0.0
    %886 = vmatpush2.msra.mxu0 0.0
    %887 = vmatprep.subr.mxu0 0.0
    %888 = vmatpush2.msra.mxu0 0.0
    %889 = vmatprep.subr.mxu0 0.0
    %890 = vmatpush2.msra.mxu0 0.0
    %891 = vmatprep.subr.mxu0 0.0
    %892 = vmatpush2.msra.mxu0 0.0
    %893 = vmatprep.subr.mxu0 0.0
    %894 = vmatpush2.msra.mxu0 0.0
    %895 = vmatprep.subr.mxu0 0.0
    %896 = vmatpush2.msra.mxu0 0.0
    %897 = vmatprep.subr.mxu0 0.0
    %898 = vmatpush2.msra.mxu0 0.0
    %899 = vmatprep.subr.mxu0 0.0
    %900 = vmatpush2.msra.mxu0 0.0
    %901 = vmatprep.subr.mxu0 0.0
    %902 = vmatpush2.msra.mxu0 0.0
    %903 = vmatprep.subr.mxu0 0.0
    %904 = vmatpush2.msra.mxu0 0.0
    %905 = vmatprep.mubr.f32.mxu0 0.0
    %906 = vmatmul.mubr.f32.gmra.mxu0 %v839
    %v907 = vpop.f32.mrf.mxu0
    %v908 = vadd.f32 0.0, %v907
    %v909 = vpop.f32.mrf.mxu0
    %910 = vdwg.mxu0
    %v912 = vrot.slane %v908, 4
    %v913 = vrot.slane %v908, 5
    %v916 = vadd.f32 %v136, %v912
    %v917 = vadd.f32 %v141, %v913
    %v918 = vxor.u32 %v916, 2147483648
    %v919 = vxor.u32 %v917, 2147483648
    %v920 = vmul.f32 %v918, 1.442695
    %v921 = vpow.pop %v920
    %v922 = vmul.f32 %v919, 1.442695
    %v923 = vpow.pop %v922
    %v924 = vadd.f32 %v921, 1.0
    %v925 = vadd.f32 %v923, 1.0
    %v926 = vrcp.pop %v924
    %v927 = vmul.f32 1.0, %v926
    %v928 = vrcp.pop %v925
    %v929 = vmul.f32 1.0, %v928
    %v930 = vtanh.pop %v916
    %v931 = vtanh.pop %v917
    %v934 = vrot.slane %v805, 7
    %v935 = vrot.slane %v806, 7
    %v938 = vmul.f32 %v927, %v934
    %v939 = vmul.f32 %v929, %v935
    %942 = vrot.lane.b32.xlu0 %v930, 32
    %v943 = vpop.permute.xlu0 %942
    %944 = vrot.lane.b32.xlu0 %v931, 32
    %v945 = vpop.permute.xlu0 %944
    %v948 = vmul.f32 %v927, %v943
    %v949 = vmul.f32 %v929, %v945
    %952 = vrot.lane.b32.xlu0 %v948, 32
    %v953 = vpop.permute.xlu0 %952
    %954 = vrot.lane.b32.xlu0 %v949, 32
    %v955 = vpop.permute.xlu0 %954
    %v958 = vadd.f32 %v938, %v953
    %v959 = vadd.f32 %v939, %v955
    %v960 = vtanh.pop %v958
    %v961 = vtanh.pop %v959
    %964 = vrot.lane.b32.xlu0 %v960, 32
    %v965 = vpop.permute.xlu0 %964
    %966 = vrot.lane.b32.xlu0 %v961, 32
    %v967 = vpop.permute.xlu0 %966
    %v970 = vmul.f32 %v927, %v965
    %v971 = vmul.f32 %v929, %v967
    %974 = vrot.lane.b32.xlu0 %v970, 64
    %v975 = vpop.permute.xlu0 %974
    %976 = vrot.lane.b32.xlu0 %v971, 64
    %v977 = vpop.permute.xlu0 %976
    %vm980 = vcmask 258052
    %981 = vst.msk [vmem:[#allocation2] sm:$0x10] %vm980, %v975
    %982 = vst.msk [vmem:[#allocation2 + $0x8] sm:$0x10] %vm980, %v977
    %v983 = vld [vmem:[%s2] sm:$0xff]
    %v984 = vld [vmem:[%s2 + $0x8] sm:$0xff]
    %v985 = vld [vmem:[%s2 + $0x10] sm:$0xff]
    %v986 = vld [vmem:[%s2 + $0x18] sm:$0xff]
    %v987 = vrot.slane %v970, 4
    %v988 = vrot.slane %v971, 3
    %v989 = vsel %vm378, %v988, %v987
    %990 = vrot.lane.b32.xlu0 %v989, 64
    %v991 = vpop.permute.xlu0 %990
    %v992 = vsel %vm234, %v991, 0
    %994 = vmatprep.subr.mxu0 0.0
    %995 = vmatpush1.msra.mxu0 0.0
    %996 = vmatprep.subr.mxu0 0.0
    %997 = vmatpush1.msra.mxu0 0.0
    %998 = vmatprep.subr.mxu0 0.0
    %999 = vmatpush1.msra.mxu0 0.0
    %1000 = vmatprep.subr.mxu0 0.0
    %1001 = vmatpush1.msra.mxu0 0.0
    %1002 = vmatprep.subr.mxu0 0.0
    %1003 = vmatpush1.msra.mxu0 0.0
    %1004 = vmatprep.subr.mxu0 0.0
    %1005 = vmatpush1.msra.mxu0 0.0
    %1006 = vmatprep.subr.mxu0 0.0
    %1007 = vmatpush1.msra.mxu0 0.0
    %1008 = vmatprep.subr.mxu0 0.0
    %1009 = vmatpush1.msra.mxu0 0.0
    %1010 = vmatprep.subr.mxu0 0.0
    %1011 = vmatpush1.msra.mxu0 0.0
    %1012 = vmatprep.subr.mxu0 0.0
    %1013 = vmatpush1.msra.mxu0 0.0
    %1014 = vmatprep.subr.mxu0 0.0
    %1015 = vmatpush1.msra.mxu0 0.0
    %1016 = vmatprep.subr.mxu0 0.0
    %1017 = vmatpush1.msra.mxu0 0.0
    %1018 = vmatprep.subr.mxu0 0.0
    %1019 = vmatpush1.msra.mxu0 %v986
    %1020 = vmatprep.subr.mxu0 0.0
    %1021 = vmatpush1.msra.mxu0 %v985
    %1022 = vmatprep.subr.mxu0 0.0
    %1023 = vmatpush1.msra.mxu0 %v984
    %1024 = vmatprep.subr.mxu0 0.0
    %1025 = vmatpush1.msra.mxu0 %v983
    %1026 = vmatprep.subr.mxu0 0.0
    %1027 = vmatpush2.msra.mxu0 0.0
    %1028 = vmatprep.subr.mxu0 0.0
    %1029 = vmatpush2.msra.mxu0 0.0
    %1030 = vmatprep.subr.mxu0 0.0
    %1031 = vmatpush2.msra.mxu0 0.0
    %1032 = vmatprep.subr.mxu0 0.0
    %1033 = vmatpush2.msra.mxu0 0.0
    %1034 = vmatprep.subr.mxu0 0.0
    %1035 = vmatpush2.msra.mxu0 0.0
    %1036 = vmatprep.subr.mxu0 0.0
    %1037 = vmatpush2.msra.mxu0 0.0
    %1038 = vmatprep.subr.mxu0 0.0
    %1039 = vmatpush2.msra.mxu0 0.0
    %1040 = vmatprep.subr.mxu0 0.0
    %1041 = vmatpush2.msra.mxu0 0.0
    %1042 = vmatprep.subr.mxu0 0.0
    %1043 = vmatpush2.msra.mxu0 0.0
    %1044 = vmatprep.subr.mxu0 0.0
    %1045 = vmatpush2.msra.mxu0 0.0
    %1046 = vmatprep.subr.mxu0 0.0
    %1047 = vmatpush2.msra.mxu0 0.0
    %1048 = vmatprep.subr.mxu0 0.0
    %1049 = vmatpush2.msra.mxu0 0.0
    %1050 = vmatprep.subr.mxu0 0.0
    %1051 = vmatpush2.msra.mxu0 0.0
    %1052 = vmatprep.subr.mxu0 0.0
    %1053 = vmatpush2.msra.mxu0 0.0
    %1054 = vmatprep.subr.mxu0 0.0
    %1055 = vmatpush2.msra.mxu0 0.0
    %1056 = vmatprep.subr.mxu0 0.0
    %1057 = vmatpush2.msra.mxu0 0.0
    %1058 = vmatprep.mubr.f32.mxu0 0.0
    %1059 = vmatmul.mubr.f32.gmra.mxu0 %v992
    %v1060 = vpop.f32.mrf.mxu0
    %v1061 = vadd.f32 0.0, %v1060
    %v1062 = vpop.f32.mrf.mxu0
    %1063 = vdwg.mxu0
    %v1065 = vrot.slane %v1061, 3
    %v1066 = vrot.slane %v1061, 4
    %v1069 = vadd.f32 %v136, %v1065
    %v1070 = vadd.f32 %v141, %v1066
    %v1071 = vxor.u32 %v1069, 2147483648
    %v1072 = vxor.u32 %v1070, 2147483648
    %v1073 = vmul.f32 %v1071, 1.442695
    %v1074 = vpow.pop %v1073
    %v1075 = vmul.f32 %v1072, 1.442695
    %v1076 = vpow.pop %v1075
    %v1077 = vadd.f32 %v1074, 1.0
    %v1078 = vadd.f32 %v1076, 1.0
    %v1079 = vrcp.pop %v1077
    %v1080 = vmul.f32 1.0, %v1079
    %v1081 = vrcp.pop %v1078
    %v1082 = vmul.f32 1.0, %v1081
    %v1083 = vtanh.pop %v1069
    %v1084 = vtanh.pop %v1070
    %v1087 = vrot.slane %v958, 7
    %v1088 = vrot.slane %v959, 7
    %v1091 = vmul.f32 %v1080, %v1087
    %v1092 = vmul.f32 %v1082, %v1088
    %1095 = vrot.lane.b32.xlu0 %v1083, 32
    %v1096 = vpop.permute.xlu0 %1095
    %1097 = vrot.lane.b32.xlu0 %v1084, 32
    %v1098 = vpop.permute.xlu0 %1097
    %v1101 = vmul.f32 %v1080, %v1096
    %v1102 = vmul.f32 %v1082, %v1098
    %1105 = vrot.lane.b32.xlu0 %v1101, 32
    %v1106 = vpop.permute.xlu0 %1105
    %1107 = vrot.lane.b32.xlu0 %v1102, 32
    %v1108 = vpop.permute.xlu0 %1107
    %v1111 = vadd.f32 %v1091, %v1106
    %v1112 = vadd.f32 %v1092, %v1108
    %v1113 = vtanh.pop %v1111
    %v1114 = vtanh.pop %v1112
    %1117 = vrot.lane.b32.xlu0 %v1113, 32
    %v1118 = vpop.permute.xlu0 %1117
    %1119 = vrot.lane.b32.xlu0 %v1114, 32
    %v1120 = vpop.permute.xlu0 %1119
    %v1123 = vmul.f32 %v1080, %v1118
    %v1124 = vmul.f32 %v1082, %v1120
    %1127 = vrot.lane.b32.xlu0 %v1123, 64
    %v1128 = vpop.permute.xlu0 %1127
    %1129 = vrot.lane.b32.xlu0 %v1124, 64
    %v1130 = vpop.permute.xlu0 %1129
    %vm1133 = vcmask 259077
    %1134 = vst.msk [vmem:[#allocation2] sm:$0x20] %vm1133, %v1128
    %1135 = vst.msk [vmem:[#allocation2 + $0x8] sm:$0x20] %vm1133, %v1130
    %v1136 = vld [vmem:[%s2] sm:$0xff]
    %v1137 = vld [vmem:[%s2 + $0x8] sm:$0xff]
    %v1138 = vld [vmem:[%s2 + $0x10] sm:$0xff]
    %v1139 = vld [vmem:[%s2 + $0x18] sm:$0xff]
    %v1140 = vrot.slane %v1123, 5
    %v1141 = vrot.slane %v1124, 4
    %v1142 = vsel %vm378, %v1141, %v1140
    %1143 = vrot.lane.b32.xlu0 %v1142, 64
    %v1144 = vpop.permute.xlu0 %1143
    %v1145 = vsel %vm234, %v1144, 0
    %1147 = vmatprep.subr.mxu0 0.0
    %1148 = vmatpush1.msra.mxu0 0.0
    %1149 = vmatprep.subr.mxu0 0.0
    %1150 = vmatpush1.msra.mxu0 0.0
    %1151 = vmatprep.subr.mxu0 0.0
    %1152 = vmatpush1.msra.mxu0 0.0
    %1153 = vmatprep.subr.mxu0 0.0
    %1154 = vmatpush1.msra.mxu0 0.0
    %1155 = vmatprep.subr.mxu0 0.0
    %1156 = vmatpush1.msra.mxu0 0.0
    %1157 = vmatprep.subr.mxu0 0.0
    %1158 = vmatpush1.msra.mxu0 0.0
    %1159 = vmatprep.subr.mxu0 0.0
    %1160 = vmatpush1.msra.mxu0 0.0
    %1161 = vmatprep.subr.mxu0 0.0
    %1162 = vmatpush1.msra.mxu0 0.0
    %1163 = vmatprep.subr.mxu0 0.0
    %1164 = vmatpush1.msra.mxu0 0.0
    %1165 = vmatprep.subr.mxu0 0.0
    %1166 = vmatpush1.msra.mxu0 0.0
    %1167 = vmatprep.subr.mxu0 0.0
    %1168 = vmatpush1.msra.mxu0 0.0
    %1169 = vmatprep.subr.mxu0 0.0
    %1170 = vmatpush1.msra.mxu0 0.0
    %1171 = vmatprep.subr.mxu0 0.0
    %1172 = vmatpush1.msra.mxu0 %v1139
    %1173 = vmatprep.subr.mxu0 0.0
    %1174 = vmatpush1.msra.mxu0 %v1138
    %1175 = vmatprep.subr.mxu0 0.0
    %1176 = vmatpush1.msra.mxu0 %v1137
    %1177 = vmatprep.subr.mxu0 0.0
    %1178 = vmatpush1.msra.mxu0 %v1136
    %1179 = vmatprep.subr.mxu0 0.0
    %1180 = vmatpush2.msra.mxu0 0.0
    %1181 = vmatprep.subr.mxu0 0.0
    %1182 = vmatpush2.msra.mxu0 0.0
    %1183 = vmatprep.subr.mxu0 0.0
    %1184 = vmatpush2.msra.mxu0 0.0
    %1185 = vmatprep.subr.mxu0 0.0
    %1186 = vmatpush2.msra.mxu0 0.0
    %1187 = vmatprep.subr.mxu0 0.0
    %1188 = vmatpush2.msra.mxu0 0.0
    %1189 = vmatprep.subr.mxu0 0.0
    %1190 = vmatpush2.msra.mxu0 0.0
    %1191 = vmatprep.subr.mxu0 0.0
    %1192 = vmatpush2.msra.mxu0 0.0
    %1193 = vmatprep.subr.mxu0 0.0
    %1194 = vmatpush2.msra.mxu0 0.0
    %1195 = vmatprep.subr.mxu0 0.0
    %1196 = vmatpush2.msra.mxu0 0.0
    %1197 = vmatprep.subr.mxu0 0.0
    %1198 = vmatpush2.msra.mxu0 0.0
    %1199 = vmatprep.subr.mxu0 0.0
    %1200 = vmatpush2.msra.mxu0 0.0
    %1201 = vmatprep.subr.mxu0 0.0
    %1202 = vmatpush2.msra.mxu0 0.0
    %1203 = vmatprep.subr.mxu0 0.0
    %1204 = vmatpush2.msra.mxu0 0.0
    %1205 = vmatprep.subr.mxu0 0.0
    %1206 = vmatpush2.msra.mxu0 0.0
    %1207 = vmatprep.subr.mxu0 0.0
    %1208 = vmatpush2.msra.mxu0 0.0
    %1209 = vmatprep.subr.mxu0 0.0
    %1210 = vmatpush2.msra.mxu0 0.0
    %1211 = vmatprep.mubr.f32.mxu0 0.0
    %1212 = vmatmul.mubr.f32.gmra.mxu0 %v1145
    %v1213 = vpop.f32.mrf.mxu0
    %v1214 = vadd.f32 0.0, %v1213
    %v1215 = vpop.f32.mrf.mxu0
    %1216 = vdwg.mxu0
    %v1218 = vrot.slane %v1214, 2
    %v1219 = vrot.slane %v1214, 3
    %v1222 = vadd.f32 %v136, %v1218
    %v1223 = vadd.f32 %v141, %v1219
    %v1224 = vxor.u32 %v1222, 2147483648
    %v1225 = vxor.u32 %v1223, 2147483648
    %v1226 = vmul.f32 %v1224, 1.442695
    %v1227 = vpow.pop %v1226
    %v1228 = vmul.f32 %v1225, 1.442695
    %v1229 = vpow.pop %v1228
    %v1230 = vadd.f32 %v1227, 1.0
    %v1231 = vadd.f32 %v1229, 1.0
    %v1232 = vrcp.pop %v1230
    %v1233 = vmul.f32 1.0, %v1232
    %v1234 = vrcp.pop %v1231
    %v1235 = vmul.f32 1.0, %v1234
    %v1236 = vtanh.pop %v1222
    %v1237 = vtanh.pop %v1223
    %v1240 = vrot.slane %v1111, 7
    %v1241 = vrot.slane %v1112, 7
    %v1244 = vmul.f32 %v1233, %v1240
    %v1245 = vmul.f32 %v1235, %v1241
    %1248 = vrot.lane.b32.xlu0 %v1236, 32
    %v1249 = vpop.permute.xlu0 %1248
    %1250 = vrot.lane.b32.xlu0 %v1237, 32
    %v1251 = vpop.permute.xlu0 %1250
    %v1254 = vmul.f32 %v1233, %v1249
    %v1255 = vmul.f32 %v1235, %v1251
    %1258 = vrot.lane.b32.xlu0 %v1254, 32
    %v1259 = vpop.permute.xlu0 %1258
    %1260 = vrot.lane.b32.xlu0 %v1255, 32
    %v1261 = vpop.permute.xlu0 %1260
    %v1264 = vadd.f32 %v1244, %v1259
    %v1265 = vadd.f32 %v1245, %v1261
    %v1266 = vtanh.pop %v1264
    %v1267 = vtanh.pop %v1265
    %1270 = vrot.lane.b32.xlu0 %v1266, 32
    %v1271 = vpop.permute.xlu0 %1270
    %1272 = vrot.lane.b32.xlu0 %v1267, 32
    %v1273 = vpop.permute.xlu0 %1272
    %v1276 = vmul.f32 %v1233, %v1271
    %v1277 = vmul.f32 %v1235, %v1273
    %1280 = vrot.lane.b32.xlu0 %v1276, 64
    %v1281 = vpop.permute.xlu0 %1280
    %1282 = vrot.lane.b32.xlu0 %v1277, 64
    %v1283 = vpop.permute.xlu0 %1282
    %vm1286 = vcmask 260102
    %1287 = vst.msk [vmem:[#allocation2] sm:$0x40] %vm1286, %v1281
    %1288 = vst.msk [vmem:[#allocation2 + $0x8] sm:$0x40] %vm1286, %v1283
    %v1289 = vld [vmem:[%s2] sm:$0xff]
    %v1290 = vld [vmem:[%s2 + $0x8] sm:$0xff]
    %v1291 = vld [vmem:[%s2 + $0x10] sm:$0xff]
    %v1292 = vld [vmem:[%s2 + $0x18] sm:$0xff]
    %v1293 = vrot.slane %v1276, 6
    %v1294 = vrot.slane %v1277, 5
    %v1295 = vsel %vm378, %v1294, %v1293
    %1296 = vrot.lane.b32.xlu0 %v1295, 64
    %v1297 = vpop.permute.xlu0 %1296
    %v1298 = vsel %vm234, %v1297, 0
    %1300 = vmatprep.subr.mxu0 0.0
    %1301 = vmatpush1.msra.mxu0 0.0
    %1302 = vmatprep.subr.mxu0 0.0
    %1303 = vmatpush1.msra.mxu0 0.0
    %1304 = vmatprep.subr.mxu0 0.0
    %1305 = vmatpush1.msra.mxu0 0.0
    %1306 = vmatprep.subr.mxu0 0.0
    %1307 = vmatpush1.msra.mxu0 0.0
    %1308 = vmatprep.subr.mxu0 0.0
    %1309 = vmatpush1.msra.mxu0 0.0
    %1310 = vmatprep.subr.mxu0 0.0
    %1311 = vmatpush1.msra.mxu0 0.0
    %1312 = vmatprep.subr.mxu0 0.0
    %1313 = vmatpush1.msra.mxu0 0.0
    %1314 = vmatprep.subr.mxu0 0.0
    %1315 = vmatpush1.msra.mxu0 0.0
    %1316 = vmatprep.subr.mxu0 0.0
    %1317 = vmatpush1.msra.mxu0 0.0
    %1318 = vmatprep.subr.mxu0 0.0
    %1319 = vmatpush1.msra.mxu0 0.0
    %1320 = vmatprep.subr.mxu0 0.0
    %1321 = vmatpush1.msra.mxu0 0.0
    %1322 = vmatprep.subr.mxu0 0.0
    %1323 = vmatpush1.msra.mxu0 0.0
    %1324 = vmatprep.subr.mxu0 0.0
    %1325 = vmatpush1.msra.mxu0 %v1292
    %1326 = vmatprep.subr.mxu0 0.0
    %1327 = vmatpush1.msra.mxu0 %v1291
    %1328 = vmatprep.subr.mxu0 0.0
    %1329 = vmatpush1.msra.mxu0 %v1290
    %1330 = vmatprep.subr.mxu0 0.0
    %1331 = vmatpush1.msra.mxu0 %v1289
    %1332 = vmatprep.subr.mxu0 0.0
    %1333 = vmatpush2.msra.mxu0 0.0
    %1334 = vmatprep.subr.mxu0 0.0
    %1335 = vmatpush2.msra.mxu0 0.0
    %1336 = vmatprep.subr.mxu0 0.0
    %1337 = vmatpush2.msra.mxu0 0.0
    %1338 = vmatprep.subr.mxu0 0.0
    %1339 = vmatpush2.msra.mxu0 0.0
    %1340 = vmatprep.subr.mxu0 0.0
    %1341 = vmatpush2.msra.mxu0 0.0
    %1342 = vmatprep.subr.mxu0 0.0
    %1343 = vmatpush2.msra.mxu0 0.0
    %1344 = vmatprep.subr.mxu0 0.0
    %1345 = vmatpush2.msra.mxu0 0.0
    %1346 = vmatprep.subr.mxu0 0.0
    %1347 = vmatpush2.msra.mxu0 0.0
    %1348 = vmatprep.subr.mxu0 0.0
    %1349 = vmatpush2.msra.mxu0 0.0
    %1350 = vmatprep.subr.mxu0 0.0
    %1351 = vmatpush2.msra.mxu0 0.0
    %1352 = vmatprep.subr.mxu0 0.0
    %1353 = vmatpush2.msra.mxu0 0.0
    %1354 = vmatprep.subr.mxu0 0.0
    %1355 = vmatpush2.msra.mxu0 0.0
    %1356 = vmatprep.subr.mxu0 0.0
    %1357 = vmatpush2.msra.mxu0 0.0
    %1358 = vmatprep.subr.mxu0 0.0
    %1359 = vmatpush2.msra.mxu0 0.0
    %1360 = vmatprep.subr.mxu0 0.0
    %1361 = vmatpush2.msra.mxu0 0.0
    %1362 = vmatprep.subr.mxu0 0.0
    %1363 = vmatpush2.msra.mxu0 0.0
    %1364 = vmatprep.mubr.f32.mxu0 0.0
    %1365 = vmatmul.mubr.f32.gmra.mxu0 %v1298
    %v1366 = vpop.f32.mrf.mxu0
    %v1367 = vadd.f32 0.0, %v1366
    %v1368 = vpop.f32.mrf.mxu0
    %1369 = vdwg.mxu0
    %v1371 = vrot.slane %v1367, 1
    %v1372 = vrot.slane %v1367, 2
    %v1375 = vadd.f32 %v136, %v1371
    %v1376 = vadd.f32 %v141, %v1372
    %v1377 = vxor.u32 %v1375, 2147483648
    %v1378 = vxor.u32 %v1376, 2147483648
    %v1379 = vmul.f32 %v1377, 1.442695
    %v1380 = vpow.pop %v1379
    %v1381 = vmul.f32 %v1378, 1.442695
    %v1382 = vpow.pop %v1381
    %v1383 = vadd.f32 %v1380, 1.0
    %v1384 = vadd.f32 %v1382, 1.0
    %v1385 = vrcp.pop %v1383
    %v1386 = vmul.f32 1.0, %v1385
    %v1387 = vrcp.pop %v1384
    %v1388 = vmul.f32 1.0, %v1387
    %v1389 = vtanh.pop %v1375
    %v1390 = vtanh.pop %v1376
    %v1393 = vrot.slane %v1264, 7
    %v1394 = vrot.slane %v1265, 7
    %v1397 = vmul.f32 %v1386, %v1393
    %v1398 = vmul.f32 %v1388, %v1394
    %1401 = vrot.lane.b32.xlu0 %v1389, 32
    %v1402 = vpop.permute.xlu0 %1401
    %1403 = vrot.lane.b32.xlu0 %v1390, 32
    %v1404 = vpop.permute.xlu0 %1403
    %v1407 = vmul.f32 %v1386, %v1402
    %v1408 = vmul.f32 %v1388, %v1404
    %1411 = vrot.lane.b32.xlu0 %v1407, 32
    %v1412 = vpop.permute.xlu0 %1411
    %1413 = vrot.lane.b32.xlu0 %v1408, 32
    %v1414 = vpop.permute.xlu0 %1413
    %v1417 = vadd.f32 %v1397, %v1412
    %v1418 = vadd.f32 %v1398, %v1414
    %v1419 = vtanh.pop %v1417
    %v1420 = vtanh.pop %v1418
    %1423 = vrot.lane.b32.xlu0 %v1419, 32
    %v1424 = vpop.permute.xlu0 %1423
    %1425 = vrot.lane.b32.xlu0 %v1420, 32
    %v1426 = vpop.permute.xlu0 %1425
    %v1429 = vmul.f32 %v1386, %v1424
    %v1430 = vmul.f32 %v1388, %v1426
    %1433 = vrot.lane.b32.xlu0 %v1429, 64
    %v1434 = vpop.permute.xlu0 %1433
    %1435 = vrot.lane.b32.xlu0 %v1430, 64
    %v1436 = vpop.permute.xlu0 %1435
    %vm1439 = vcmask 261127
    %1440 = vst.msk [vmem:[#allocation2] sm:$0x80] %vm1439, %v1434
    %1441 = vst.msk [vmem:[#allocation2 + $0x8] sm:$0x80] %vm1439, %v1436
    %v1442 = vld [vmem:[#allocation2] sm:$0xff]
    %v1443 = vld [vmem:[#allocation2 + $0x8] sm:$0xff]
    %v1444 = vld [vmem:[%s5] sm:$0xff]
    %v1445 = vld [vmem:[%s5 + $0x8] sm:$0xff]
    %v1446 = vld [vmem:[%s5 + $0x10] sm:$0xff]
    %v1447 = vld [vmem:[%s5 + $0x18] sm:$0xff]
    %v1448 = vld [vmem:[%s6] sm:$0x1]
    %v1450 = vlaneseq
    %v1451 = vshrl.u32 %v1450, 7
    %v1452 = vsub.s32 0, %v1451
    %v1453 = vrot.slane %v1448, %v1452
    %v1456 = vsel %vm234, %v1442, 0
    %v1459 = vsel %vm234, %v1443, 0
    %1461 = vmatprep.subr.mxu0 0.0
    %1462 = vmatpush1.msra.mxu0 0.0
    %1463 = vmatprep.subr.mxu0 0.0
    %1464 = vmatpush1.msra.mxu0 0.0
    %1465 = vmatprep.subr.mxu0 0.0
    %1466 = vmatpush1.msra.mxu0 0.0
    %1467 = vmatprep.subr.mxu0 0.0
    %1468 = vmatpush1.msra.mxu0 0.0
    %1469 = vmatprep.subr.mxu0 0.0
    %1470 = vmatpush1.msra.mxu0 0.0
    %1471 = vmatprep.subr.mxu0 0.0
    %1472 = vmatpush1.msra.mxu0 0.0
    %1473 = vmatprep.subr.mxu0 0.0
    %1474 = vmatpush1.msra.mxu0 0.0
    %1475 = vmatprep.subr.mxu0 0.0
    %1476 = vmatpush1.msra.mxu0 0.0
    %1477 = vmatprep.subr.mxu0 0.0
    %1478 = vmatpush1.msra.mxu0 0.0
    %1479 = vmatprep.subr.mxu0 0.0
    %1480 = vmatpush1.msra.mxu0 0.0
    %1481 = vmatprep.subr.mxu0 0.0
    %1482 = vmatpush1.msra.mxu0 0.0
    %1483 = vmatprep.subr.mxu0 0.0
    %1484 = vmatpush1.msra.mxu0 0.0
    %1485 = vmatprep.subr.mxu0 0.0
    %1486 = vmatpush1.msra.mxu0 %v1447
    %1487 = vmatprep.subr.mxu0 0.0
    %1488 = vmatpush1.msra.mxu0 %v1446
    %1489 = vmatprep.subr.mxu0 0.0
    %1490 = vmatpush1.msra.mxu0 %v1445
    %1491 = vmatprep.subr.mxu0 0.0
    %1492 = vmatpush1.msra.mxu0 %v1444
    %1493 = vmatprep.subr.mxu0 0.0
    %1494 = vmatpush2.msra.mxu0 0.0
    %1495 = vmatprep.subr.mxu0 0.0
    %1496 = vmatpush2.msra.mxu0 0.0
    %1497 = vmatprep.subr.mxu0 0.0
    %1498 = vmatpush2.msra.mxu0 0.0
    %1499 = vmatprep.subr.mxu0 0.0
    %1500 = vmatpush2.msra.mxu0 0.0
    %1501 = vmatprep.subr.mxu0 0.0
    %1502 = vmatpush2.msra.mxu0 0.0
    %1503 = vmatprep.subr.mxu0 0.0
    %1504 = vmatpush2.msra.mxu0 0.0
    %1505 = vmatprep.subr.mxu0 0.0
    %1506 = vmatpush2.msra.mxu0 0.0
    %1507 = vmatprep.subr.mxu0 0.0
    %1508 = vmatpush2.msra.mxu0 0.0
    %1509 = vmatprep.subr.mxu0 0.0
    %1510 = vmatpush2.msra.mxu0 0.0
    %1511 = vmatprep.subr.mxu0 0.0
    %1512 = vmatpush2.msra.mxu0 0.0
    %1513 = vmatprep.subr.mxu0 0.0
    %1514 = vmatpush2.msra.mxu0 0.0
    %1515 = vmatprep.subr.mxu0 0.0
    %1516 = vmatpush2.msra.mxu0 0.0
    %1517 = vmatprep.subr.mxu0 0.0
    %1518 = vmatpush2.msra.mxu0 0.0
    %1519 = vmatprep.subr.mxu0 0.0
    %1520 = vmatpush2.msra.mxu0 0.0
    %1521 = vmatprep.subr.mxu0 0.0
    %1522 = vmatpush2.msra.mxu0 0.0
    %1523 = vmatprep.subr.mxu0 0.0
    %1524 = vmatpush2.msra.mxu0 0.0
    %1525 = vmatprep.mubr.f32.mxu0 0.0
    %1526 = vmatmul.mubr.f32.gmra.mxu0 %v1456
    %v1527 = vpop.f32.mrf.mxu0
    %v1528 = vadd.f32 %v1453, %v1527
    %v1529 = vpop.f32.mrf.mxu0
    %1530 = vmatprep.mubr.f32.mxu0 0.0
    %1531 = vmatmul.mubr.f32.gmra.mxu0 %v1459
    %v1532 = vpop.f32.mrf.mxu0
    %v1533 = vadd.f32 %v1453, %v1532
    %v1534 = vpop.f32.mrf.mxu0
    %1535 = vdwg.mxu0
    %1536 = vst.msk [vmem:[#allocation3] sm:$0xff] %vm234, %v1528
    %1537 = vst.msk [vmem:[#allocation3 + $0x8] sm:$0xff] %vm234, %v1533
    %v1538 = vld [vmem:[#allocation2] sm:$0xff]
    %v1539 = vld [vmem:[#allocation2 + $0x8] sm:$0xff]
    %v1540 = vld [vmem:[#allocation3] sm:$0xff]
    %v1541 = vld [vmem:[#allocation3 + $0x8] sm:$0xff]
    %v1542 = vld [vmem:[%s4] sm:$0xff]
    %v1543 = vld [vmem:[%s4 + $0x8] sm:$0xff]
    %v1544 = vld [vmem:[%s4 + $0x10] sm:$0xff]
    %v1545 = vld [vmem:[%s4 + $0x18] sm:$0xff]
    %v1546 = vld [vmem:[%s4 + $0x20] sm:$0xff]
    %v1547 = vld [vmem:[%s4 + $0x28] sm:$0xff]
    %v1548 = vld [vmem:[%s4 + $0x30] sm:$0xff]
    %v1549 = vld [vmem:[%s4 + $0x38] sm:$0xff]
    %vm1550 = vcmask 523264
    %v1551 = vsel %vm1550, 0.0, 0
    %1553 = vmatprep.subr.mxu0 0.0
    %1554 = vmatpush1.msra.mxu0 0.0
    %1555 = vmatprep.subr.mxu0 0.0
    %1556 = vmatpush1.msra.mxu0 0.0
    %1557 = vmatprep.subr.mxu0 0.0
    %1558 = vmatpush1.msra.mxu0 0.0
    %1559 = vmatprep.subr.mxu0 0.0
    %1560 = vmatpush1.msra.mxu0 0.0
    %1561 = vmatprep.subr.mxu0 0.0
    %1562 = vmatpush1.msra.mxu0 0.0
    %1563 = vmatprep.subr.mxu0 0.0
    %1564 = vmatpush1.msra.mxu0 0.0
    %1565 = vmatprep.subr.mxu0 0.0
    %1566 = vmatpush1.msra.mxu0 0.0
    %1567 = vmatprep.subr.mxu0 0.0
    %1568 = vmatpush1.msra.mxu0 0.0
    %1569 = vmatprep.subr.mxu0 0.0
    %1570 = vmatpush1.msra.mxu0 %v1549
    %1571 = vmatprep.subr.mxu0 0.0
    %1572 = vmatpush1.msra.mxu0 %v1548
    %1573 = vmatprep.subr.mxu0 0.0
    %1574 = vmatpush1.msra.mxu0 %v1547
    %1575 = vmatprep.subr.mxu0 0.0
    %1576 = vmatpush1.msra.mxu0 %v1546
    %1577 = vmatprep.subr.mxu0 0.0
    %1578 = vmatpush1.msra.mxu0 %v1545
    %1579 = vmatprep.subr.mxu0 0.0
    %1580 = vmatpush1.msra.mxu0 %v1544
    %1581 = vmatprep.subr.mxu0 0.0
    %1582 = vmatpush1.msra.mxu0 %v1543
    %1583 = vmatprep.subr.mxu0 0.0
    %1584 = vmatpush1.msra.mxu0 %v1542
    %1585 = vmatprep.subr.mxu0 0.0
    %1586 = vmatpush2.msra.mxu0 0.0
    %1587 = vmatprep.subr.mxu0 0.0
    %1588 = vmatpush2.msra.mxu0 0.0
    %1589 = vmatprep.subr.mxu0 0.0
    %1590 = vmatpush2.msra.mxu0 0.0
    %1591 = vmatprep.subr.mxu0 0.0
    %1592 = vmatpush2.msra.mxu0 0.0
    %1593 = vmatprep.subr.mxu0 0.0
    %1594 = vmatpush2.msra.mxu0 0.0
    %1595 = vmatprep.subr.mxu0 0.0
    %1596 = vmatpush2.msra.mxu0 0.0
    %1597 = vmatprep.subr.mxu0 0.0
    %1598 = vmatpush2.msra.mxu0 0.0
    %1599 = vmatprep.subr.mxu0 0.0
    %1600 = vmatpush2.msra.mxu0 0.0
    %1601 = vmatprep.subr.mxu0 0.0
    %1602 = vmatpush2.msra.mxu0 0.0
    %1603 = vmatprep.subr.mxu0 0.0
    %1604 = vmatpush2.msra.mxu0 0.0
    %1605 = vmatprep.subr.mxu0 0.0
    %1606 = vmatpush2.msra.mxu0 0.0
    %1607 = vmatprep.subr.mxu0 0.0
    %1608 = vmatpush2.msra.mxu0 0.0
    %1609 = vmatprep.subr.mxu0 0.0
    %1610 = vmatpush2.msra.mxu0 0.0
    %1611 = vmatprep.subr.mxu0 0.0
    %1612 = vmatpush2.msra.mxu0 0.0
    %1613 = vmatprep.subr.mxu0 0.0
    %1614 = vmatpush2.msra.mxu0 0.0
    %1615 = vmatprep.subr.mxu0 0.0
    %1616 = vmatpush2.msra.mxu0 0.0
    %1617 = vmatprep.mubr.f32.mxu0 0.0
    %1618 = vmatmul.mubr.f32.gmra.mxu0 %v1551
    %v1619 = vpop.f32.mrf.mxu0
    %v1620 = vadd.f32 0.0, %v1619
    %v1621 = vpop.f32.mrf.mxu0
    %1622 = vdwg.mxu0
    %v1625 = vunpack.c.l.s4 1966171168
    %v1626 = vunpack.c.0.s8 %v1625
    %v1627 = vlaneseq
    %v1628 = vshrl.u32 %v1627, 7
    %v1629 = vsub.s32 %v1626, %v1628
    %v1630 = vrot.slane %v1620, %v1629
    %v1631 = vcombine.high %v1630, %v1630
    %v1633 = vunpack.c.l.s4 1966171168
    %v1634 = vunpack.c.0.s8 %v1633
    %v1635 = vlaneseq
    %v1636 = vshrl.u32 %v1635, 7
    %v1637 = vsub.s32 %v1634, %v1636
    %v1638 = vrot.slane %v1630, %v1637
    %v1640 = vunpack.c.l.s4 1966171168
    %v1641 = vunpack.c.0.s8 %v1640
    %v1642 = vlaneseq
    %v1643 = vshrl.u32 %v1642, 7
    %v1644 = vsub.s32 %v1641, %v1643
    %v1645 = vrot.slane %v1631, %v1644
    %v1646 = vlaneseq
    %v1647 = vshrl.u32 %v1646, 7
    %v1648 = vsub.s32 0, %v1647
    %v1649 = vrot.slane %v1638, %v1648
    %v1650 = vlaneseq
    %v1651 = vshrl.u32 %v1650, 7
    %v1652 = vsub.s32 0, %v1651
    %v1653 = vrot.slane %v1645, %v1652
    %v1656 = vadd.f32 %v1649, %v1540
    %v1657 = vadd.f32 %v1653, %v1541
    %v1658 = vtanh.pop %v1656
    %v1659 = vtanh.pop %v1657
    %v1660 = vld [vmem:[%s7] sm:$0x1]
    %v1662 = vlaneseq
    %v1663 = vshrl.u32 %v1662, 7
    %v1664 = vsub.s32 0, %v1663
    %v1665 = vrot.slane %v1660, %v1664
    %v1667 = vmul.f32 %v1658, %v1665
    %v1668 = vmul.f32 %v1659, %v1665
    %v1669 = vsel %vm234, %v1667, 0.0
    %1670 = vadd.xlane.f32.xlu0 %v1669
    %v1671 = vpop.xlane.xlu0 %1670
    %v1672 = vsel %vm234, %v1668, 0.0
    %1673 = vadd.xlane.f32.xlu0 %v1672
    %v1674 = vpop.xlane.xlu0 %1673
    %v1675 = vrot.slane %v1671, 4
    %v1676 = vmax.f32 %v1671, %v1675
    %v1677 = vrot.slane %v1676, 2
    %v1678 = vmax.f32 %v1676, %v1677
    %v1679 = vrot.slane %v1678, 1
    %v1680 = vmax.f32 %v1678, %v1679
    %v1681 = vrot.slane %v1674, 4
    %v1682 = vmax.f32 %v1674, %v1681
    %v1683 = vrot.slane %v1682, 2
    %v1684 = vmax.f32 %v1682, %v1683
    %v1685 = vrot.slane %v1684, 1
    %v1686 = vmax.f32 %v1684, %v1685
    %v1687 = vsub.f32 %v1671, %v1680
    %v1688 = vsub.f32 %v1674, %v1686
    %v1689 = vmul.f32 %v1687, 1.442695
    %v1690 = vpow.pop %v1689
    %v1691 = vmul.f32 %v1688, 1.442695
    %v1692 = vpow.pop %v1691
    %v1693 = vrot.slane %v1690, 4
    %v1694 = vadd.f32 %v1690, %v1693
    %v1695 = vrot.slane %v1694, 2
    %v1696 = vadd.f32 %v1694, %v1695
    %v1697 = vrot.slane %v1696, 1
    %v1698 = vadd.f32 %v1696, %v1697
    %v1699 = vrot.slane %v1692, 4
    %v1700 = vadd.f32 %v1692, %v1699
    %v1701 = vrot.slane %v1700, 2
    %v1702 = vadd.f32 %v1700, %v1701
    %v1703 = vrot.slane %v1702, 1
    %v1704 = vadd.f32 %v1702, %v1703
    %v1705 = vrcp.pop %v1698
    %v1706 = vrcp.pop %v1704
    %v1707 = vmul.f32 %v1690, %v1538
    %v1708 = vmul.f32 %v1692, %v1539
    %v1709 = vsel %vm234, %v1707, 0.0
    %v1710 = vrot.slane %v1709, 4
    %v1711 = vadd.f32 %v1709, %v1710
    %v1712 = vrot.slane %v1711, 2
    %v1713 = vadd.f32 %v1711, %v1712
    %v1714 = vrot.slane %v1713, 1
    %v1715 = vadd.f32 %v1713, %v1714
    %v1716 = vsel %vm234, %v1708, 0.0
    %v1717 = vrot.slane %v1716, 4
    %v1718 = vadd.f32 %v1716, %v1717
    %v1719 = vrot.slane %v1718, 2
    %v1720 = vadd.f32 %v1718, %v1719
    %v1721 = vrot.slane %v1720, 1
    %v1722 = vadd.f32 %v1720, %v1721
    %v1723 = vmul.f32 %v1715, %v1705
    %v1724 = vmul.f32 %v1722, %v1706
    %v1725 = vld [vmem:[%s8] sm:$0xff]
    %v1726 = vld [vmem:[%s8 + $0x8] sm:$0xff]
    %v1727 = vld [vmem:[%s8 + $0x10] sm:$0xff]
    %v1728 = vld [vmem:[%s8 + $0x18] sm:$0xff]
    %v1729 = vld [vmem:[%s11] sm:$0xff]
    %v1730 = vld [vmem:[%s11 + $0x8] sm:$0xff]
    %v1731 = vld [vmem:[%s11 + $0x10] sm:$0xff]
    %v1732 = vld [vmem:[%s11 + $0x18] sm:$0xff]
    %1733 = vmatprep.subr.mxu0 0.0
    %1734 = vmatpush1.msra.mxu0 0.0
    %1735 = vmatprep.subr.mxu0 0.0
    %1736 = vmatpush1.msra.mxu0 0.0
    %1737 = vmatprep.subr.mxu0 0.0
    %1738 = vmatpush1.msra.mxu0 0.0
    %1739 = vmatprep.subr.mxu0 0.0
    %1740 = vmatpush1.msra.mxu0 0.0
    %1741 = vmatprep.subr.mxu0 0.0
    %1742 = vmatpush1.msra.mxu0 0.0
    %1743 = vmatprep.subr.mxu0 0.0
    %1744 = vmatpush1.msra.mxu0 0.0
    %1745 = vmatprep.subr.mxu0 0.0
    %1746 = vmatpush1.msra.mxu0 0.0
    %1747 = vmatprep.subr.mxu0 0.0
    %1748 = vmatpush1.msra.mxu0 0.0
    %1749 = vmatprep.subr.mxu0 0.0
    %1750 = vmatpush1.msra.mxu0 0.0
    %1751 = vmatprep.subr.mxu0 0.0
    %1752 = vmatpush1.msra.mxu0 0.0
    %1753 = vmatprep.subr.mxu0 0.0
    %1754 = vmatpush1.msra.mxu0 0.0
    %1755 = vmatprep.subr.mxu0 0.0
    %1756 = vmatpush1.msra.mxu0 0.0
    %1757 = vmatprep.subr.mxu0 0.0
    %1758 = vmatpush1.msra.mxu0 %v1732
    %1759 = vmatprep.subr.mxu0 0.0
    %1760 = vmatpush1.msra.mxu0 %v1731
    %1761 = vmatprep.subr.mxu0 0.0
    %1762 = vmatpush1.msra.mxu0 %v1730
    %1763 = vmatprep.subr.mxu0 0.0
    %1764 = vmatpush1.msra.mxu0 %v1729
    %1765 = vmatprep.subr.mxu0 0.0
    %1766 = vmatpush2.msra.mxu0 0.0
    %1767 = vmatprep.subr.mxu0 0.0
    %1768 = vmatpush2.msra.mxu0 0.0
    %1769 = vmatprep.subr.mxu0 0.0
    %1770 = vmatpush2.msra.mxu0 0.0
    %1771 = vmatprep.subr.mxu0 0.0
    %1772 = vmatpush2.msra.mxu0 0.0
    %1773 = vmatprep.subr.mxu0 0.0
    %1774 = vmatpush2.msra.mxu0 0.0
    %1775 = vmatprep.subr.mxu0 0.0
    %1776 = vmatpush2.msra.mxu0 0.0
    %1777 = vmatprep.subr.mxu0 0.0
    %1778 = vmatpush2.msra.mxu0 0.0
    %1779 = vmatprep.subr.mxu0 0.0
    %1780 = vmatpush2.msra.mxu0 0.0
    %1781 = vmatprep.subr.mxu0 0.0
    %1782 = vmatpush2.msra.mxu0 0.0
    %1783 = vmatprep.subr.mxu0 0.0
    %1784 = vmatpush2.msra.mxu0 0.0
    %1785 = vmatprep.subr.mxu0 0.0
    %1786 = vmatpush2.msra.mxu0 0.0
    %1787 = vmatprep.subr.mxu0 0.0
    %1788 = vmatpush2.msra.mxu0 0.0
    %1789 = vmatprep.subr.mxu0 0.0
    %1790 = vmatpush2.msra.mxu0 0.0
    %1791 = vmatprep.subr.mxu0 0.0
    %1792 = vmatpush2.msra.mxu0 0.0
    %1793 = vmatprep.subr.mxu0 0.0
    %1794 = vmatpush2.msra.mxu0 0.0
    %1795 = vmatprep.subr.mxu0 0.0
    %1796 = vmatpush2.msra.mxu0 0.0
    %1797 = vmatprep.mubr.f32.mxu0 0.0
    %1798 = vmatmul.mubr.f32.gmra.mxu0 %v236
    %v1799 = vpop.f32.mrf.mxu0
    %v1800 = vadd.f32 0.0, %v1799
    %v1801 = vpop.f32.mrf.mxu0
    %1802 = vdwg.mxu0
    %v1805 = vsel %vm378, %v1724, %v1723
    %v1806 = vsel %vm234, %v1805, 0
    %1808 = vmatprep.subr.mxu0 0.0
    %1809 = vmatpush1.msra.mxu0 0.0
    %1810 = vmatprep.subr.mxu0 0.0
    %1811 = vmatpush1.msra.mxu0 0.0
    %1812 = vmatprep.subr.mxu0 0.0
    %1813 = vmatpush1.msra.mxu0 0.0
    %1814 = vmatprep.subr.mxu0 0.0
    %1815 = vmatpush1.msra.mxu0 0.0
    %1816 = vmatprep.subr.mxu0 0.0
    %1817 = vmatpush1.msra.mxu0 0.0
    %1818 = vmatprep.subr.mxu0 0.0
    %1819 = vmatpush1.msra.mxu0 0.0
    %1820 = vmatprep.subr.mxu0 0.0
    %1821 = vmatpush1.msra.mxu0 0.0
    %1822 = vmatprep.subr.mxu0 0.0
    %1823 = vmatpush1.msra.mxu0 0.0
    %1824 = vmatprep.subr.mxu0 0.0
    %1825 = vmatpush1.msra.mxu0 0.0
    %1826 = vmatprep.subr.mxu0 0.0
    %1827 = vmatpush1.msra.mxu0 0.0
    %1828 = vmatprep.subr.mxu0 0.0
    %1829 = vmatpush1.msra.mxu0 0.0
    %1830 = vmatprep.subr.mxu0 0.0
    %1831 = vmatpush1.msra.mxu0 0.0
    %1832 = vmatprep.subr.mxu0 0.0
    %1833 = vmatpush1.msra.mxu0 %v1728
    %1834 = vmatprep.subr.mxu0 0.0
    %1835 = vmatpush1.msra.mxu0 %v1727
    %1836 = vmatprep.subr.mxu0 0.0
    %1837 = vmatpush1.msra.mxu0 %v1726
    %1838 = vmatprep.subr.mxu0 0.0
    %1839 = vmatpush1.msra.mxu0 %v1725
    %1840 = vmatprep.subr.mxu0 0.0
    %1841 = vmatpush2.msra.mxu0 0.0
    %1842 = vmatprep.subr.mxu0 0.0
    %1843 = vmatpush2.msra.mxu0 0.0
    %1844 = vmatprep.subr.mxu0 0.0
    %1845 = vmatpush2.msra.mxu0 0.0
    %1846 = vmatprep.subr.mxu0 0.0
    %1847 = vmatpush2.msra.mxu0 0.0
    %1848 = vmatprep.subr.mxu0 0.0
    %1849 = vmatpush2.msra.mxu0 0.0
    %1850 = vmatprep.subr.mxu0 0.0
    %1851 = vmatpush2.msra.mxu0 0.0
    %1852 = vmatprep.subr.mxu0 0.0
    %1853 = vmatpush2.msra.mxu0 0.0
    %1854 = vmatprep.subr.mxu0 0.0
    %1855 = vmatpush2.msra.mxu0 0.0
    %1856 = vmatprep.subr.mxu0 0.0
    %1857 = vmatpush2.msra.mxu0 0.0
    %1858 = vmatprep.subr.mxu0 0.0
    %1859 = vmatpush2.msra.mxu0 0.0
    %1860 = vmatprep.subr.mxu0 0.0
    %1861 = vmatpush2.msra.mxu0 0.0
    %1862 = vmatprep.subr.mxu0 0.0
    %1863 = vmatpush2.msra.mxu0 0.0
    %1864 = vmatprep.subr.mxu0 0.0
    %1865 = vmatpush2.msra.mxu0 0.0
    %1866 = vmatprep.subr.mxu0 0.0
    %1867 = vmatpush2.msra.mxu0 0.0
    %1868 = vmatprep.subr.mxu0 0.0
    %1869 = vmatpush2.msra.mxu0 0.0
    %1870 = vmatprep.subr.mxu0 0.0
    %1871 = vmatpush2.msra.mxu0 0.0
    %1872 = vmatprep.mubr.f32.mxu0 0.0
    %1873 = vmatmul.mubr.f32.gmra.mxu0 %v1806
    %v1874 = vpop.f32.mrf.mxu0
    %v1875 = vadd.f32 %v1800, %v1874
    %v1876 = vpop.f32.mrf.mxu0
    %1877 = vdwg.mxu0
    %v1880 = vrot.slane %v227, 7
    %v1881 = vsel %vm378, %v1880, %v222
    %v1883 = vadd.f32 %v1875, %v1881
    %v1884 = vxor.u32 %v1883, 2147483648
    %v1885 = vmul.f32 %v1884, 1.442695
    %v1886 = vpow.pop %v1885
    %v1887 = vadd.f32 %v1886, 1.0
    %v1888 = vrcp.pop %v1887
    %v1889 = vmul.f32 1.0, %v1888
    %v1890 = vtanh.pop %v1883
    %v1891 = vmul.f32 %v1889, 0.0
    %1893 = vrot.lane.b32.xlu0 %v1890, 32
    %v1894 = vpop.permute.xlu0 %1893
    %v1896 = vmul.f32 %v1889, %v1894
    %1898 = vrot.lane.b32.xlu0 %v1896, 32
    %v1899 = vpop.permute.xlu0 %1898
    %v1901 = vadd.f32 %v1891, %v1899
    %v1902 = vtanh.pop %v1901
    %1904 = vrot.lane.b32.xlu0 %v1902, 32
    %v1905 = vpop.permute.xlu0 %1904
    %v1907 = vmul.f32 %v1889, %v1905
    %1909 = vrot.lane.b32.xlu0 %v1907, 64
    %v1910 = vpop.permute.xlu0 %1909
    %v1912 = vsel %vm234, %v1910, %v1901
    %v1914 = vsel %vm1550, %v1912, 0
    %1916 = vmatprep.subr.mxu0 0.0
    %1917 = vmatpush1.msra.mxu0 0.0
    %1918 = vmatprep.subr.mxu0 0.0
    %1919 = vmatpush1.msra.mxu0 0.0
    %1920 = vmatprep.subr.mxu0 0.0
    %1921 = vmatpush1.msra.mxu0 0.0
    %1922 = vmatprep.subr.mxu0 0.0
    %1923 = vmatpush1.msra.mxu0 0.0
    %1924 = vmatprep.subr.mxu0 0.0
    %1925 = vmatpush1.msra.mxu0 0.0
    %1926 = vmatprep.subr.mxu0 0.0
    %1927 = vmatpush1.msra.mxu0 0.0
    %1928 = vmatprep.subr.mxu0 0.0
    %1929 = vmatpush1.msra.mxu0 0.0
    %1930 = vmatprep.subr.mxu0 0.0
    %1931 = vmatpush1.msra.mxu0 0.0
    %1932 = vmatprep.subr.mxu0 0.0
    %1933 = vmatpush1.msra.mxu0 %v1549
    %1934 = vmatprep.subr.mxu0 0.0
    %1935 = vmatpush1.msra.mxu0 %v1548
    %1936 = vmatprep.subr.mxu0 0.0
    %1937 = vmatpush1.msra.mxu0 %v1547
    %1938 = vmatprep.subr.mxu0 0.0
    %1939 = vmatpush1.msra.mxu0 %v1546
    %1940 = vmatprep.subr.mxu0 0.0
    %1941 = vmatpush1.msra.mxu0 %v1545
    %1942 = vmatprep.subr.mxu0 0.0
    %1943 = vmatpush1.msra.mxu0 %v1544
    %1944 = vmatprep.subr.mxu0 0.0
    %1945 = vmatpush1.msra.mxu0 %v1543
    %1946 = vmatprep.subr.mxu0 0.0
    %1947 = vmatpush1.msra.mxu0 %v1542
    %1948 = vmatprep.subr.mxu0 0.0
    %1949 = vmatpush2.msra.mxu0 0.0
    %1950 = vmatprep.subr.mxu0 0.0
    %1951 = vmatpush2.msra.mxu0 0.0
    %1952 = vmatprep.subr.mxu0 0.0
    %1953 = vmatpush2.msra.mxu0 0.0
    %1954 = vmatprep.subr.mxu0 0.0
    %1955 = vmatpush2.msra.mxu0 0.0
    %1956 = vmatprep.subr.mxu0 0.0
    %1957 = vmatpush2.msra.mxu0 0.0
    %1958 = vmatprep.subr.mxu0 0.0
    %1959 = vmatpush2.msra.mxu0 0.0
    %1960 = vmatprep.subr.mxu0 0.0
    %1961 = vmatpush2.msra.mxu0 0.0
    %1962 = vmatprep.subr.mxu0 0.0
    %1963 = vmatpush2.msra.mxu0 0.0
    %1964 = vmatprep.subr.mxu0 0.0
    %1965 = vmatpush2.msra.mxu0 0.0
    %1966 = vmatprep.subr.mxu0 0.0
    %1967 = vmatpush2.msra.mxu0 0.0
    %1968 = vmatprep.subr.mxu0 0.0
    %1969 = vmatpush2.msra.mxu0 0.0
    %1970 = vmatprep.subr.mxu0 0.0
    %1971 = vmatpush2.msra.mxu0 0.0
    %1972 = vmatprep.subr.mxu0 0.0
    %1973 = vmatpush2.msra.mxu0 0.0
    %1974 = vmatprep.subr.mxu0 0.0
    %1975 = vmatpush2.msra.mxu0 0.0
    %1976 = vmatprep.subr.mxu0 0.0
    %1977 = vmatpush2.msra.mxu0 0.0
    %1978 = vmatprep.subr.mxu0 0.0
    %1979 = vmatpush2.msra.mxu0 0.0
    %1980 = vmatprep.mubr.f32.mxu0 0.0
    %1981 = vmatmul.mubr.f32.gmra.mxu0 %v1914
    %v1982 = vpop.f32.mrf.mxu0
    %v1983 = vadd.f32 0.0, %v1982
    %v1984 = vpop.f32.mrf.mxu0
    %1985 = vdwg.mxu0
    %v1988 = vunpack.c.l.s4 1966171168
    %v1989 = vunpack.c.0.s8 %v1988
    %v1990 = vlaneseq
    %v1991 = vshrl.u32 %v1990, 7
    %v1992 = vsub.s32 %v1989, %v1991
    %v1993 = vrot.slane %v1983, %v1992
    %v1994 = vcombine.high %v1993, %v1993
    %v1996 = vunpack.c.l.s4 1966171168
    %v1997 = vunpack.c.0.s8 %v1996
    %v1998 = vlaneseq
    %v1999 = vshrl.u32 %v1998, 7
    %v2000 = vsub.s32 %v1997, %v1999
    %v2001 = vrot.slane %v1993, %v2000
    %v2003 = vunpack.c.l.s4 1966171168
    %v2004 = vunpack.c.0.s8 %v2003
    %v2005 = vlaneseq
    %v2006 = vshrl.u32 %v2005, 7
    %v2007 = vsub.s32 %v2004, %v2006
    %v2008 = vrot.slane %v1994, %v2007
    %v2009 = vlaneseq
    %v2010 = vshrl.u32 %v2009, 7
    %v2011 = vsub.s32 0, %v2010
    %v2012 = vrot.slane %v2001, %v2011
    %v2013 = vlaneseq
    %v2014 = vshrl.u32 %v2013, 7
    %v2015 = vsub.s32 0, %v2014
    %v2016 = vrot.slane %v2008, %v2015
    %v2019 = vadd.f32 %v2012, %v1540
    %v2020 = vadd.f32 %v2016, %v1541
    %v2021 = vtanh.pop %v2019
    %v2022 = vtanh.pop %v2020
    %v2023 = vmul.f32 %v2021, %v1665
    %v2024 = vmul.f32 %v2022, %v1665
    %v2025 = vsel %vm234, %v2023, 0.0
    %2026 = vadd.xlane.f32.xlu0 %v2025
    %v2027 = vpop.xlane.xlu0 %2026
    %v2028 = vsel %vm234, %v2024, 0.0
    %2029 = vadd.xlane.f32.xlu0 %v2028
    %v2030 = vpop.xlane.xlu0 %2029
    %v2031 = vrot.slane %v2027, 4
    %v2032 = vmax.f32 %v2027, %v2031
    %v2033 = vrot.slane %v2032, 2
    %v2034 = vmax.f32 %v2032, %v2033
    %v2035 = vrot.slane %v2034, 1
    %v2036 = vmax.f32 %v2034, %v2035
    %v2037 = vrot.slane %v2030, 4
    %v2038 = vmax.f32 %v2030, %v2037
    %v2039 = vrot.slane %v2038, 2
    %v2040 = vmax.f32 %v2038, %v2039
    %v2041 = vrot.slane %v2040, 1
    %v2042 = vmax.f32 %v2040, %v2041
    %v2043 = vsub.f32 %v2027, %v2036
    %v2044 = vsub.f32 %v2030, %v2042
    %v2045 = vmul.f32 %v2043, 1.442695
    %v2046 = vpow.pop %v2045
    %v2047 = vmul.f32 %v2044, 1.442695
    %v2048 = vpow.pop %v2047
    %v2049 = vrot.slane %v2046, 4
    %v2050 = vadd.f32 %v2046, %v2049
    %v2051 = vrot.slane %v2050, 2
    %v2052 = vadd.f32 %v2050, %v2051
    %v2053 = vrot.slane %v2052, 1
    %v2054 = vadd.f32 %v2052, %v2053
    %v2055 = vrot.slane %v2048, 4
    %v2056 = vadd.f32 %v2048, %v2055
    %v2057 = vrot.slane %v2056, 2
    %v2058 = vadd.f32 %v2056, %v2057
    %v2059 = vrot.slane %v2058, 1
    %v2060 = vadd.f32 %v2058, %v2059
    %v2061 = vrcp.pop %v2054
    %v2062 = vrcp.pop %v2060
    %v2063 = vmul.f32 %v2046, %v1538
    %v2064 = vmul.f32 %v2048, %v1539
    %v2065 = vsel %vm234, %v2063, 0.0
    %v2066 = vrot.slane %v2065, 4
    %v2067 = vadd.f32 %v2065, %v2066
    %v2068 = vrot.slane %v2067, 2
    %v2069 = vadd.f32 %v2067, %v2068
    %v2070 = vrot.slane %v2069, 1
    %v2071 = vadd.f32 %v2069, %v2070
    %v2072 = vsel %vm234, %v2064, 0.0
    %v2073 = vrot.slane %v2072, 4
    %v2074 = vadd.f32 %v2072, %v2073
    %v2075 = vrot.slane %v2074, 2
    %v2076 = vadd.f32 %v2074, %v2075
    %v2077 = vrot.slane %v2076, 1
    %v2078 = vadd.f32 %v2076, %v2077
    %v2079 = vmul.f32 %v2071, %v2061
    %v2080 = vmul.f32 %v2078, %v2062
    %v2081 = vsel %vm234, %v1910, 0
    %2083 = vmatprep.subr.mxu0 0.0
    %2084 = vmatpush1.msra.mxu0 0.0
    %2085 = vmatprep.subr.mxu0 0.0
    %2086 = vmatpush1.msra.mxu0 0.0
    %2087 = vmatprep.subr.mxu0 0.0
    %2088 = vmatpush1.msra.mxu0 0.0
    %2089 = vmatprep.subr.mxu0 0.0
    %2090 = vmatpush1.msra.mxu0 0.0
    %2091 = vmatprep.subr.mxu0 0.0
    %2092 = vmatpush1.msra.mxu0 0.0
    %2093 = vmatprep.subr.mxu0 0.0
    %2094 = vmatpush1.msra.mxu0 0.0
    %2095 = vmatprep.subr.mxu0 0.0
    %2096 = vmatpush1.msra.mxu0 0.0
    %2097 = vmatprep.subr.mxu0 0.0
    %2098 = vmatpush1.msra.mxu0 0.0
    %2099 = vmatprep.subr.mxu0 0.0
    %2100 = vmatpush1.msra.mxu0 0.0
    %2101 = vmatprep.subr.mxu0 0.0
    %2102 = vmatpush1.msra.mxu0 0.0
    %2103 = vmatprep.subr.mxu0 0.0
    %2104 = vmatpush1.msra.mxu0 0.0
    %2105 = vmatprep.subr.mxu0 0.0
    %2106 = vmatpush1.msra.mxu0 0.0
    %2107 = vmatprep.subr.mxu0 0.0
    %2108 = vmatpush1.msra.mxu0 %v1732
    %2109 = vmatprep.subr.mxu0 0.0
    %2110 = vmatpush1.msra.mxu0 %v1731
    %2111 = vmatprep.subr.mxu0 0.0
    %2112 = vmatpush1.msra.mxu0 %v1730
    %2113 = vmatprep.subr.mxu0 0.0
    %2114 = vmatpush1.msra.mxu0 %v1729
    %2115 = vmatprep.subr.mxu0 0.0
    %2116 = vmatpush2.msra.mxu0 0.0
    %2117 = vmatprep.subr.mxu0 0.0
    %2118 = vmatpush2.msra.mxu0 0.0
    %2119 = vmatprep.subr.mxu0 0.0
    %2120 = vmatpush2.msra.mxu0 0.0
    %2121 = vmatprep.subr.mxu0 0.0
    %2122 = vmatpush2.msra.mxu0 0.0
    %2123 = vmatprep.subr.mxu0 0.0
    %2124 = vmatpush2.msra.mxu0 0.0
    %2125 = vmatprep.subr.mxu0 0.0
    %2126 = vmatpush2.msra.mxu0 0.0
    %2127 = vmatprep.subr.mxu0 0.0
    %2128 = vmatpush2.msra.mxu0 0.0
    %2129 = vmatprep.subr.mxu0 0.0
    %2130 = vmatpush2.msra.mxu0 0.0
    %2131 = vmatprep.subr.mxu0 0.0
    %2132 = vmatpush2.msra.mxu0 0.0
    %2133 = vmatprep.subr.mxu0 0.0
    %2134 = vmatpush2.msra.mxu0 0.0
    %2135 = vmatprep.subr.mxu0 0.0
    %2136 = vmatpush2.msra.mxu0 0.0
    %2137 = vmatprep.subr.mxu0 0.0
    %2138 = vmatpush2.msra.mxu0 0.0
    %2139 = vmatprep.subr.mxu0 0.0
    %2140 = vmatpush2.msra.mxu0 0.0
    %2141 = vmatprep.subr.mxu0 0.0
    %2142 = vmatpush2.msra.mxu0 0.0
    %2143 = vmatprep.subr.mxu0 0.0
    %2144 = vmatpush2.msra.mxu0 0.0
    %2145 = vmatprep.subr.mxu0 0.0
    %2146 = vmatpush2.msra.mxu0 0.0
    %2147 = vmatprep.mubr.f32.mxu0 0.0
    %2148 = vmatmul.mubr.f32.gmra.mxu0 %v2081
    %v2149 = vpop.f32.mrf.mxu0
    %v2150 = vadd.f32 0.0, %v2149
    %v2151 = vpop.f32.mrf.mxu0
    %2152 = vdwg.mxu0
    %v2155 = vsel %vm378, %v2080, %v2079
    %v2156 = vsel %vm234, %v2155, 0
    %2158 = vmatprep.subr.mxu0 0.0
    %2159 = vmatpush1.msra.mxu0 0.0
    %2160 = vmatprep.subr.mxu0 0.0
    %2161 = vmatpush1.msra.mxu0 0.0
    %2162 = vmatprep.subr.mxu0 0.0
    %2163 = vmatpush1.msra.mxu0 0.0
    %2164 = vmatprep.subr.mxu0 0.0
    %2165 = vmatpush1.msra.mxu0 0.0
    %2166 = vmatprep.subr.mxu0 0.0
    %2167 = vmatpush1.msra.mxu0 0.0
    %2168 = vmatprep.subr.mxu0 0.0
    %2169 = vmatpush1.msra.mxu0 0.0
    %2170 = vmatprep.subr.mxu0 0.0
    %2171 = vmatpush1.msra.mxu0 0.0
    %2172 = vmatprep.subr.mxu0 0.0
    %2173 = vmatpush1.msra.mxu0 0.0
    %2174 = vmatprep.subr.mxu0 0.0
    %2175 = vmatpush1.msra.mxu0 0.0
    %2176 = vmatprep.subr.mxu0 0.0
    %2177 = vmatpush1.msra.mxu0 0.0
    %2178 = vmatprep.subr.mxu0 0.0
    %2179 = vmatpush1.msra.mxu0 0.0
    %2180 = vmatprep.subr.mxu0 0.0
    %2181 = vmatpush1.msra.mxu0 0.0
    %2182 = vmatprep.subr.mxu0 0.0
    %2183 = vmatpush1.msra.mxu0 %v1728
    %2184 = vmatprep.subr.mxu0 0.0
    %2185 = vmatpush1.msra.mxu0 %v1727
    %2186 = vmatprep.subr.mxu0 0.0
    %2187 = vmatpush1.msra.mxu0 %v1726
    %2188 = vmatprep.subr.mxu0 0.0
    %2189 = vmatpush1.msra.mxu0 %v1725
    %2190 = vmatprep.subr.mxu0 0.0
    %2191 = vmatpush2.msra.mxu0 0.0
    %2192 = vmatprep.subr.mxu0 0.0
    %2193 = vmatpush2.msra.mxu0 0.0
    %2194 = vmatprep.subr.mxu0 0.0
    %2195 = vmatpush2.msra.mxu0 0.0
    %2196 = vmatprep.subr.mxu0 0.0
    %2197 = vmatpush2.msra.mxu0 0.0
    %2198 = vmatprep.subr.mxu0 0.0
    %2199 = vmatpush2.msra.mxu0 0.0
    %2200 = vmatprep.subr.mxu0 0.0
    %2201 = vmatpush2.msra.mxu0 0.0
    %2202 = vmatprep.subr.mxu0 0.0
    %2203 = vmatpush2.msra.mxu0 0.0
    %2204 = vmatprep.subr.mxu0 0.0
    %2205 = vmatpush2.msra.mxu0 0.0
    %2206 = vmatprep.subr.mxu0 0.0
    %2207 = vmatpush2.msra.mxu0 0.0
    %2208 = vmatprep.subr.mxu0 0.0
    %2209 = vmatpush2.msra.mxu0 0.0
    %2210 = vmatprep.subr.mxu0 0.0
    %2211 = vmatpush2.msra.mxu0 0.0
    %2212 = vmatprep.subr.mxu0 0.0
    %2213 = vmatpush2.msra.mxu0 0.0
    %2214 = vmatprep.subr.mxu0 0.0
    %2215 = vmatpush2.msra.mxu0 0.0
    %2216 = vmatprep.subr.mxu0 0.0
    %2217 = vmatpush2.msra.mxu0 0.0
    %2218 = vmatprep.subr.mxu0 0.0
    %2219 = vmatpush2.msra.mxu0 0.0
    %2220 = vmatprep.subr.mxu0 0.0
    %2221 = vmatpush2.msra.mxu0 0.0
    %2222 = vmatprep.mubr.f32.mxu0 0.0
    %2223 = vmatmul.mubr.f32.gmra.mxu0 %v2156
    %v2224 = vpop.f32.mrf.mxu0
    %v2225 = vadd.f32 %v2150, %v2224
    %v2226 = vpop.f32.mrf.mxu0
    %2227 = vdwg.mxu0
    %v2228 = vrot.slane %v222, 1
    %v2229 = vsel %vm378, %v227, %v2228
    %v2231 = vadd.f32 %v2225, %v2229
    %v2232 = vxor.u32 %v2231, 2147483648
    %v2233 = vmul.f32 %v2232, 1.442695
    %v2234 = vpow.pop %v2233
    %v2235 = vadd.f32 %v2234, 1.0
    %v2236 = vrcp.pop %v2235
    %v2237 = vmul.f32 1.0, %v2236
    %v2238 = vtanh.pop %v2231
    %v2239 = vmul.f32 %v2237, %v1901
    %2241 = vrot.lane.b32.xlu0 %v2238, 32
    %v2242 = vpop.permute.xlu0 %2241
    %v2244 = vmul.f32 %v2237, %v2242
    %2246 = vrot.lane.b32.xlu0 %v2244, 32
    %v2247 = vpop.permute.xlu0 %2246
    %v2249 = vadd.f32 %v2239, %v2247
    %v2250 = vtanh.pop %v2249
    %2252 = vrot.lane.b32.xlu0 %v2250, 32
    %v2253 = vpop.permute.xlu0 %2252
    %v2255 = vmul.f32 %v2237, %v2253
    %2257 = vrot.lane.b32.xlu0 %v2255, 64
    %v2258 = vpop.permute.xlu0 %2257
    %v2260 = vsel %vm234, %v2258, %v2249
    %v2262 = vsel %vm1550, %v2260, 0
    %2264 = vmatprep.subr.mxu0 0.0
    %2265 = vmatpush1.msra.mxu0 0.0
    %2266 = vmatprep.subr.mxu0 0.0
    %2267 = vmatpush1.msra.mxu0 0.0
    %2268 = vmatprep.subr.mxu0 0.0
    %2269 = vmatpush1.msra.mxu0 0.0
    %2270 = vmatprep.subr.mxu0 0.0
    %2271 = vmatpush1.msra.mxu0 0.0
    %2272 = vmatprep.subr.mxu0 0.0
    %2273 = vmatpush1.msra.mxu0 0.0
    %2274 = vmatprep.subr.mxu0 0.0
    %2275 = vmatpush1.msra.mxu0 0.0
    %2276 = vmatprep.subr.mxu0 0.0
    %2277 = vmatpush1.msra.mxu0 0.0
    %2278 = vmatprep.subr.mxu0 0.0
    %2279 = vmatpush1.msra.mxu0 0.0
    %2280 = vmatprep.subr.mxu0 0.0
    %2281 = vmatpush1.msra.mxu0 %v1549
    %2282 = vmatprep.subr.mxu0 0.0
    %2283 = vmatpush1.msra.mxu0 %v1548
    %2284 = vmatprep.subr.mxu0 0.0
    %2285 = vmatpush1.msra.mxu0 %v1547
    %2286 = vmatprep.subr.mxu0 0.0
    %2287 = vmatpush1.msra.mxu0 %v1546
    %2288 = vmatprep.subr.mxu0 0.0
    %2289 = vmatpush1.msra.mxu0 %v1545
    %2290 = vmatprep.subr.mxu0 0.0
    %2291 = vmatpush1.msra.mxu0 %v1544
    %2292 = vmatprep.subr.mxu0 0.0
    %2293 = vmatpush1.msra.mxu0 %v1543
    %2294 = vmatprep.subr.mxu0 0.0
    %2295 = vmatpush1.msra.mxu0 %v1542
    %2296 = vmatprep.subr.mxu0 0.0
    %2297 = vmatpush2.msra.mxu0 0.0
    %2298 = vmatprep.subr.mxu0 0.0
    %2299 = vmatpush2.msra.mxu0 0.0
    %2300 = vmatprep.subr.mxu0 0.0
    %2301 = vmatpush2.msra.mxu0 0.0
    %2302 = vmatprep.subr.mxu0 0.0
    %2303 = vmatpush2.msra.mxu0 0.0
    %2304 = vmatprep.subr.mxu0 0.0
    %2305 = vmatpush2.msra.mxu0 0.0
    %2306 = vmatprep.subr.mxu0 0.0
    %2307 = vmatpush2.msra.mxu0 0.0
    %2308 = vmatprep.subr.mxu0 0.0
    %2309 = vmatpush2.msra.mxu0 0.0
    %2310 = vmatprep.subr.mxu0 0.0
    %2311 = vmatpush2.msra.mxu0 0.0
    %2312 = vmatprep.subr.mxu0 0.0
    %2313 = vmatpush2.msra.mxu0 0.0
    %2314 = vmatprep.subr.mxu0 0.0
    %2315 = vmatpush2.msra.mxu0 0.0
    %2316 = vmatprep.subr.mxu0 0.0
    %2317 = vmatpush2.msra.mxu0 0.0
    %2318 = vmatprep.subr.mxu0 0.0
    %2319 = vmatpush2.msra.mxu0 0.0
    %2320 = vmatprep.subr.mxu0 0.0
    %2321 = vmatpush2.msra.mxu0 0.0
    %2322 = vmatprep.subr.mxu0 0.0
    %2323 = vmatpush2.msra.mxu0 0.0
    %2324 = vmatprep.subr.mxu0 0.0
    %2325 = vmatpush2.msra.mxu0 0.0
    %2326 = vmatprep.subr.mxu0 0.0
    %2327 = vmatpush2.msra.mxu0 0.0
    %2328 = vmatprep.mubr.f32.mxu0 0.0
    %2329 = vmatmul.mubr.f32.gmra.mxu0 %v2262
    %v2330 = vpop.f32.mrf.mxu0
    %v2331 = vadd.f32 0.0, %v2330
    %v2332 = vpop.f32.mrf.mxu0
    %2333 = vdwg.mxu0
    %v2336 = vunpack.c.l.s4 1966171168
    %v2337 = vunpack.c.0.s8 %v2336
    %v2338 = vlaneseq
    %v2339 = vshrl.u32 %v2338, 7
    %v2340 = vsub.s32 %v2337, %v2339
    %v2341 = vrot.slane %v2331, %v2340
    %v2342 = vcombine.high %v2341, %v2341
    %v2344 = vunpack.c.l.s4 1966171168
    %v2345 = vunpack.c.0.s8 %v2344
    %v2346 = vlaneseq
    %v2347 = vshrl.u32 %v2346, 7
    %v2348 = vsub.s32 %v2345, %v2347
    %v2349 = vrot.slane %v2341, %v2348
    %v2351 = vunpack.c.l.s4 1966171168
    %v2352 = vunpack.c.0.s8 %v2351
    %v2353 = vlaneseq
    %v2354 = vshrl.u32 %v2353, 7
    %v2355 = vsub.s32 %v2352, %v2354
    %v2356 = vrot.slane %v2342, %v2355
    %v2357 = vlaneseq
    %v2358 = vshrl.u32 %v2357, 7
    %v2359 = vsub.s32 0, %v2358
    %v2360 = vrot.slane %v2349, %v2359
    %v2361 = vlaneseq
    %v2362 = vshrl.u32 %v2361, 7
    %v2363 = vsub.s32 0, %v2362
    %v2364 = vrot.slane %v2356, %v2363
    %v2367 = vadd.f32 %v2360, %v1540
    %v2368 = vadd.f32 %v2364, %v1541
    %v2369 = vtanh.pop %v2367
    %v2370 = vtanh.pop %v2368
    %v2371 = vmul.f32 %v2369, %v1665
    %v2372 = vmul.f32 %v2370, %v1665
    %v2373 = vsel %vm234, %v2371, 0.0
    %2374 = vadd.xlane.f32.xlu0 %v2373
    %v2375 = vpop.xlane.xlu0 %2374
    %v2376 = vsel %vm234, %v2372, 0.0
    %2377 = vadd.xlane.f32.xlu0 %v2376
    %v2378 = vpop.xlane.xlu0 %2377
    %v2379 = vrot.slane %v2375, 4
    %v2380 = vmax.f32 %v2375, %v2379
    %v2381 = vrot.slane %v2380, 2
    %v2382 = vmax.f32 %v2380, %v2381
    %v2383 = vrot.slane %v2382, 1
    %v2384 = vmax.f32 %v2382, %v2383
    %v2385 = vrot.slane %v2378, 4
    %v2386 = vmax.f32 %v2378, %v2385
    %v2387 = vrot.slane %v2386, 2
    %v2388 = vmax.f32 %v2386, %v2387
    %v2389 = vrot.slane %v2388, 1
    %v2390 = vmax.f32 %v2388, %v2389
    %v2391 = vsub.f32 %v2375, %v2384
    %v2392 = vsub.f32 %v2378, %v2390
    %v2393 = vmul.f32 %v2391, 1.442695
    %v2394 = vpow.pop %v2393
    %v2395 = vmul.f32 %v2392, 1.442695
    %v2396 = vpow.pop %v2395
    %v2397 = vrot.slane %v2394, 4
    %v2398 = vadd.f32 %v2394, %v2397
    %v2399 = vrot.slane %v2398, 2
    %v2400 = vadd.f32 %v2398, %v2399
    %v2401 = vrot.slane %v2400, 1
    %v2402 = vadd.f32 %v2400, %v2401
    %v2403 = vrot.slane %v2396, 4
    %v2404 = vadd.f32 %v2396, %v2403
    %v2405 = vrot.slane %v2404, 2
    %v2406 = vadd.f32 %v2404, %v2405
    %v2407 = vrot.slane %v2406, 1
    %v2408 = vadd.f32 %v2406, %v2407
    %v2409 = vrcp.pop %v2402
    %v2410 = vrcp.pop %v2408
    %v2411 = vmul.f32 %v2394, %v1538
    %v2412 = vmul.f32 %v2396, %v1539
    %v2413 = vsel %vm234, %v2411, 0.0
    %v2414 = vrot.slane %v2413, 4
    %v2415 = vadd.f32 %v2413, %v2414
    %v2416 = vrot.slane %v2415, 2
    %v2417 = vadd.f32 %v2415, %v2416
    %v2418 = vrot.slane %v2417, 1
    %v2419 = vadd.f32 %v2417, %v2418
    %v2420 = vsel %vm234, %v2412, 0.0
    %v2421 = vrot.slane %v2420, 4
    %v2422 = vadd.f32 %v2420, %v2421
    %v2423 = vrot.slane %v2422, 2
    %v2424 = vadd.f32 %v2422, %v2423
    %v2425 = vrot.slane %v2424, 1
    %v2426 = vadd.f32 %v2424, %v2425
    %v2427 = vmul.f32 %v2419, %v2409
    %v2428 = vmul.f32 %v2426, %v2410
    %v2429 = vsel %vm234, %v2258, 0
    %2431 = vmatprep.subr.mxu0 0.0
    %2432 = vmatpush1.msra.mxu0 0.0
    %2433 = vmatprep.subr.mxu0 0.0
    %2434 = vmatpush1.msra.mxu0 0.0
    %2435 = vmatprep.subr.mxu0 0.0
    %2436 = vmatpush1.msra.mxu0 0.0
    %2437 = vmatprep.subr.mxu0 0.0
    %2438 = vmatpush1.msra.mxu0 0.0
    %2439 = vmatprep.subr.mxu0 0.0
    %2440 = vmatpush1.msra.mxu0 0.0
    %2441 = vmatprep.subr.mxu0 0.0
    %2442 = vmatpush1.msra.mxu0 0.0
    %2443 = vmatprep.subr.mxu0 0.0
    %2444 = vmatpush1.msra.mxu0 0.0
    %2445 = vmatprep.subr.mxu0 0.0
    %2446 = vmatpush1.msra.mxu0 0.0
    %2447 = vmatprep.subr.mxu0 0.0
    %2448 = vmatpush1.msra.mxu0 0.0
    %2449 = vmatprep.subr.mxu0 0.0
    %2450 = vmatpush1.msra.mxu0 0.0
    %2451 = vmatprep.subr.mxu0 0.0
    %2452 = vmatpush1.msra.mxu0 0.0
    %2453 = vmatprep.subr.mxu0 0.0
    %2454 = vmatpush1.msra.mxu0 0.0
    %2455 = vmatprep.subr.mxu0 0.0
    %2456 = vmatpush1.msra.mxu0 %v1732
    %2457 = vmatprep.subr.mxu0 0.0
    %2458 = vmatpush1.msra.mxu0 %v1731
    %2459 = vmatprep.subr.mxu0 0.0
    %2460 = vmatpush1.msra.mxu0 %v1730
    %2461 = vmatprep.subr.mxu0 0.0
    %2462 = vmatpush1.msra.mxu0 %v1729
    %2463 = vmatprep.subr.mxu0 0.0
    %2464 = vmatpush2.msra.mxu0 0.0
    %2465 = vmatprep.subr.mxu0 0.0
    %2466 = vmatpush2.msra.mxu0 0.0
    %2467 = vmatprep.subr.mxu0 0.0
    %2468 = vmatpush2.msra.mxu0 0.0
    %2469 = vmatprep.subr.mxu0 0.0
    %2470 = vmatpush2.msra.mxu0 0.0
    %2471 = vmatprep.subr.mxu0 0.0
    %2472 = vmatpush2.msra.mxu0 0.0
    %2473 = vmatprep.subr.mxu0 0.0
    %2474 = vmatpush2.msra.mxu0 0.0
    %2475 = vmatprep.subr.mxu0 0.0
    %2476 = vmatpush2.msra.mxu0 0.0
    %2477 = vmatprep.subr.mxu0 0.0
    %2478 = vmatpush2.msra.mxu0 0.0
    %2479 = vmatprep.subr.mxu0 0.0
    %2480 = vmatpush2.msra.mxu0 0.0
    %2481 = vmatprep.subr.mxu0 0.0
    %2482 = vmatpush2.msra.mxu0 0.0
    %2483 = vmatprep.subr.mxu0 0.0
    %2484 = vmatpush2.msra.mxu0 0.0
    %2485 = vmatprep.subr.mxu0 0.0
    %2486 = vmatpush2.msra.mxu0 0.0
    %2487 = vmatprep.subr.mxu0 0.0
    %2488 = vmatpush2.msra.mxu0 0.0
    %2489 = vmatprep.subr.mxu0 0.0
    %2490 = vmatpush2.msra.mxu0 0.0
    %2491 = vmatprep.subr.mxu0 0.0
    %2492 = vmatpush2.msra.mxu0 0.0
    %2493 = vmatprep.subr.mxu0 0.0
    %2494 = vmatpush2.msra.mxu0 0.0
    %2495 = vmatprep.mubr.f32.mxu0 0.0
    %2496 = vmatmul.mubr.f32.gmra.mxu0 %v2429
    %v2497 = vpop.f32.mrf.mxu0
    %v2498 = vadd.f32 0.0, %v2497
    %v2499 = vpop.f32.mrf.mxu0
    %2500 = vdwg.mxu0
    %v2503 = vsel %vm378, %v2428, %v2427
    %v2504 = vsel %vm234, %v2503, 0
    %2506 = vmatprep.subr.mxu0 0.0
    %2507 = vmatpush1.msra.mxu0 0.0
    %2508 = vmatprep.subr.mxu0 0.0
    %2509 = vmatpush1.msra.mxu0 0.0
    %2510 = vmatprep.subr.mxu0 0.0
    %2511 = vmatpush1.msra.mxu0 0.0
    %2512 = vmatprep.subr.mxu0 0.0
    %2513 = vmatpush1.msra.mxu0 0.0
    %2514 = vmatprep.subr.mxu0 0.0
    %2515 = vmatpush1.msra.mxu0 0.0
    %2516 = vmatprep.subr.mxu0 0.0
    %2517 = vmatpush1.msra.mxu0 0.0
    %2518 = vmatprep.subr.mxu0 0.0
    %2519 = vmatpush1.msra.mxu0 0.0
    %2520 = vmatprep.subr.mxu0 0.0
    %2521 = vmatpush1.msra.mxu0 0.0
    %2522 = vmatprep.subr.mxu0 0.0
    %2523 = vmatpush1.msra.mxu0 0.0
    %2524 = vmatprep.subr.mxu0 0.0
    %2525 = vmatpush1.msra.mxu0 0.0
    %2526 = vmatprep.subr.mxu0 0.0
    %2527 = vmatpush1.msra.mxu0 0.0
    %2528 = vmatprep.subr.mxu0 0.0
    %2529 = vmatpush1.msra.mxu0 0.0
    %2530 = vmatprep.subr.mxu0 0.0
    %2531 = vmatpush1.msra.mxu0 %v1728
    %2532 = vmatprep.subr.mxu0 0.0
    %2533 = vmatpush1.msra.mxu0 %v1727
    %2534 = vmatprep.subr.mxu0 0.0
    %2535 = vmatpush1.msra.mxu0 %v1726
    %2536 = vmatprep.subr.mxu0 0.0
    %2537 = vmatpush1.msra.mxu0 %v1725
    %2538 = vmatprep.subr.mxu0 0.0
    %2539 = vmatpush2.msra.mxu0 0.0
    %2540 = vmatprep.subr.mxu0 0.0
    %2541 = vmatpush2.msra.mxu0 0.0
    %2542 = vmatprep.subr.mxu0 0.0
    %2543 = vmatpush2.msra.mxu0 0.0
    %2544 = vmatprep.subr.mxu0 0.0
    %2545 = vmatpush2.msra.mxu0 0.0
    %2546 = vmatprep.subr.mxu0 0.0
    %2547 = vmatpush2.msra.mxu0 0.0
    %2548 = vmatprep.subr.mxu0 0.0
    %2549 = vmatpush2.msra.mxu0 0.0
    %2550 = vmatprep.subr.mxu0 0.0
    %2551 = vmatpush2.msra.mxu0 0.0
    %2552 = vmatprep.subr.mxu0 0.0
    %2553 = vmatpush2.msra.mxu0 0.0
    %2554 = vmatprep.subr.mxu0 0.0
    %2555 = vmatpush2.msra.mxu0 0.0
    %2556 = vmatprep.subr.mxu0 0.0
    %2557 = vmatpush2.msra.mxu0 0.0
    %2558 = vmatprep.subr.mxu0 0.0
    %2559 = vmatpush2.msra.mxu0 0.0
    %2560 = vmatprep.subr.mxu0 0.0
    %2561 = vmatpush2.msra.mxu0 0.0
    %2562 = vmatprep.subr.mxu0 0.0
    %2563 = vmatpush2.msra.mxu0 0.0
    %2564 = vmatprep.subr.mxu0 0.0
    %2565 = vmatpush2.msra.mxu0 0.0
    %2566 = vmatprep.subr.mxu0 0.0
    %2567 = vmatpush2.msra.mxu0 0.0
    %2568 = vmatprep.subr.mxu0 0.0
    %2569 = vmatpush2.msra.mxu0 0.0
    %2570 = vmatprep.mubr.f32.mxu0 0.0
    %2571 = vmatmul.mubr.f32.gmra.mxu0 %v2504
    %v2572 = vpop.f32.mrf.mxu0
    %v2573 = vadd.f32 %v2498, %v2572
    %v2574 = vpop.f32.mrf.mxu0
    %2575 = vdwg.mxu0
    %v2576 = vrot.slane %v222, 2
    %v2577 = vrot.slane %v227, 1
    %v2578 = vsel %vm378, %v2577, %v2576
    %v2580 = vadd.f32 %v2573, %v2578
    %v2581 = vxor.u32 %v2580, 2147483648
    %v2582 = vmul.f32 %v2581, 1.442695
    %v2583 = vpow.pop %v2582
    %v2584 = vadd.f32 %v2583, 1.0
    %v2585 = vrcp.pop %v2584
    %v2586 = vmul.f32 1.0, %v2585
    %v2587 = vtanh.pop %v2580
    %v2588 = vmul.f32 %v2586, %v2249
    %2590 = vrot.lane.b32.xlu0 %v2587, 32
    %v2591 = vpop.permute.xlu0 %2590
    %v2593 = vmul.f32 %v2586, %v2591
    %2595 = vrot.lane.b32.xlu0 %v2593, 32
    %v2596 = vpop.permute.xlu0 %2595
    %v2598 = vadd.f32 %v2588, %v2596
    %v2599 = vtanh.pop %v2598
    %2601 = vrot.lane.b32.xlu0 %v2599, 32
    %v2602 = vpop.permute.xlu0 %2601
    %v2604 = vmul.f32 %v2586, %v2602
    %2606 = vrot.lane.b32.xlu0 %v2604, 64
    %v2607 = vpop.permute.xlu0 %2606
    %v2609 = vsel %vm234, %v2607, %v2598
    %v2611 = vsel %vm1550, %v2609, 0
    %2613 = vmatprep.subr.mxu0 0.0
    %2614 = vmatpush1.msra.mxu0 0.0
    %2615 = vmatprep.subr.mxu0 0.0
    %2616 = vmatpush1.msra.mxu0 0.0
    %2617 = vmatprep.subr.mxu0 0.0
    %2618 = vmatpush1.msra.mxu0 0.0
    %2619 = vmatprep.subr.mxu0 0.0
    %2620 = vmatpush1.msra.mxu0 0.0
    %2621 = vmatprep.subr.mxu0 0.0
    %2622 = vmatpush1.msra.mxu0 0.0
    %2623 = vmatprep.subr.mxu0 0.0
    %2624 = vmatpush1.msra.mxu0 0.0
    %2625 = vmatprep.subr.mxu0 0.0
    %2626 = vmatpush1.msra.mxu0 0.0
    %2627 = vmatprep.subr.mxu0 0.0
    %2628 = vmatpush1.msra.mxu0 0.0
    %2629 = vmatprep.subr.mxu0 0.0
    %2630 = vmatpush1.msra.mxu0 %v1549
    %2631 = vmatprep.subr.mxu0 0.0
    %2632 = vmatpush1.msra.mxu0 %v1548
    %2633 = vmatprep.subr.mxu0 0.0
    %2634 = vmatpush1.msra.mxu0 %v1547
    %2635 = vmatprep.subr.mxu0 0.0
    %2636 = vmatpush1.msra.mxu0 %v1546
    %2637 = vmatprep.subr.mxu0 0.0
    %2638 = vmatpush1.msra.mxu0 %v1545
    %2639 = vmatprep.subr.mxu0 0.0
    %2640 = vmatpush1.msra.mxu0 %v1544
    %2641 = vmatprep.subr.mxu0 0.0
    %2642 = vmatpush1.msra.mxu0 %v1543
    %2643 = vmatprep.subr.mxu0 0.0
    %2644 = vmatpush1.msra.mxu0 %v1542
    %2645 = vmatprep.subr.mxu0 0.0
    %2646 = vmatpush2.msra.mxu0 0.0
    %2647 = vmatprep.subr.mxu0 0.0
    %2648 = vmatpush2.msra.mxu0 0.0
    %2649 = vmatprep.subr.mxu0 0.0
    %2650 = vmatpush2.msra.mxu0 0.0
    %2651 = vmatprep.subr.mxu0 0.0
    %2652 = vmatpush2.msra.mxu0 0.0
    %2653 = vmatprep.subr.mxu0 0.0
    %2654 = vmatpush2.msra.mxu0 0.0
    %2655 = vmatprep.subr.mxu0 0.0
    %2656 = vmatpush2.msra.mxu0 0.0
    %2657 = vmatprep.subr.mxu0 0.0
    %2658 = vmatpush2.msra.mxu0 0.0
    %2659 = vmatprep.subr.mxu0 0.0
    %2660 = vmatpush2.msra.mxu0 0.0
    %2661 = vmatprep.subr.mxu0 0.0
    %2662 = vmatpush2.msra.mxu0 0.0
    %2663 = vmatprep.subr.mxu0 0.0
    %2664 = vmatpush2.msra.mxu0 0.0
    %2665 = vmatprep.subr.mxu0 0.0
    %2666 = vmatpush2.msra.mxu0 0.0
    %2667 = vmatprep.subr.mxu0 0.0
    %2668 = vmatpush2.msra.mxu0 0.0
    %2669 = vmatprep.subr.mxu0 0.0
    %2670 = vmatpush2.msra.mxu0 0.0
    %2671 = vmatprep.subr.mxu0 0.0
    %2672 = vmatpush2.msra.mxu0 0.0
    %2673 = vmatprep.subr.mxu0 0.0
    %2674 = vmatpush2.msra.mxu0 0.0
    %2675 = vmatprep.subr.mxu0 0.0
    %2676 = vmatpush2.msra.mxu0 0.0
    %2677 = vmatprep.mubr.f32.mxu0 0.0
    %2678 = vmatmul.mubr.f32.gmra.mxu0 %v2611
    %v2679 = vpop.f32.mrf.mxu0
    %v2680 = vadd.f32 0.0, %v2679
    %v2681 = vpop.f32.mrf.mxu0
    %2682 = vdwg.mxu0
    %v2685 = vunpack.c.l.s4 1966171168
    %v2686 = vunpack.c.0.s8 %v2685
    %v2687 = vlaneseq
    %v2688 = vshrl.u32 %v2687, 7
    %v2689 = vsub.s32 %v2686, %v2688
    %v2690 = vrot.slane %v2680, %v2689
    %v2691 = vcombine.high %v2690, %v2690
    %v2693 = vunpack.c.l.s4 1966171168
    %v2694 = vunpack.c.0.s8 %v2693
    %v2695 = vlaneseq
    %v2696 = vshrl.u32 %v2695, 7
    %v2697 = vsub.s32 %v2694, %v2696
    %v2698 = vrot.slane %v2690, %v2697
    %v2700 = vunpack.c.l.s4 1966171168
    %v2701 = vunpack.c.0.s8 %v2700
    %v2702 = vlaneseq
    %v2703 = vshrl.u32 %v2702, 7
    %v2704 = vsub.s32 %v2701, %v2703
    %v2705 = vrot.slane %v2691, %v2704
    %v2706 = vlaneseq
    %v2707 = vshrl.u32 %v2706, 7
    %v2708 = vsub.s32 0, %v2707
    %v2709 = vrot.slane %v2698, %v2708
    %v2710 = vlaneseq
    %v2711 = vshrl.u32 %v2710, 7
    %v2712 = vsub.s32 0, %v2711
    %v2713 = vrot.slane %v2705, %v2712
    %v2716 = vadd.f32 %v2709, %v1540
    %v2717 = vadd.f32 %v2713, %v1541
    %v2718 = vtanh.pop %v2716
    %v2719 = vtanh.pop %v2717
    %v2720 = vmul.f32 %v2718, %v1665
    %v2721 = vmul.f32 %v2719, %v1665
    %v2722 = vsel %vm234, %v2720, 0.0
    %2723 = vadd.xlane.f32.xlu0 %v2722
    %v2724 = vpop.xlane.xlu0 %2723
    %v2725 = vsel %vm234, %v2721, 0.0
    %2726 = vadd.xlane.f32.xlu0 %v2725
    %v2727 = vpop.xlane.xlu0 %2726
    %v2728 = vrot.slane %v2724, 4
    %v2729 = vmax.f32 %v2724, %v2728
    %v2730 = vrot.slane %v2729, 2
    %v2731 = vmax.f32 %v2729, %v2730
    %v2732 = vrot.slane %v2731, 1
    %v2733 = vmax.f32 %v2731, %v2732
    %v2734 = vrot.slane %v2727, 4
    %v2735 = vmax.f32 %v2727, %v2734
    %v2736 = vrot.slane %v2735, 2
    %v2737 = vmax.f32 %v2735, %v2736
    %v2738 = vrot.slane %v2737, 1
    %v2739 = vmax.f32 %v2737, %v2738
    %v2740 = vsub.f32 %v2724, %v2733
    %v2741 = vsub.f32 %v2727, %v2739
    %v2742 = vmul.f32 %v2740, 1.442695
    %v2743 = vpow.pop %v2742
    %v2744 = vmul.f32 %v2741, 1.442695
    %v2745 = vpow.pop %v2744
    %v2746 = vrot.slane %v2743, 4
    %v2747 = vadd.f32 %v2743, %v2746
    %v2748 = vrot.slane %v2747, 2
    %v2749 = vadd.f32 %v2747, %v2748
    %v2750 = vrot.slane %v2749, 1
    %v2751 = vadd.f32 %v2749, %v2750
    %v2752 = vrot.slane %v2745, 4
    %v2753 = vadd.f32 %v2745, %v2752
    %v2754 = vrot.slane %v2753, 2
    %v2755 = vadd.f32 %v2753, %v2754
    %v2756 = vrot.slane %v2755, 1
    %v2757 = vadd.f32 %v2755, %v2756
    %v2758 = vrcp.pop %v2751
    %v2759 = vrcp.pop %v2757
    %v2760 = vmul.f32 %v2743, %v1538
    %v2761 = vmul.f32 %v2745, %v1539
    %v2762 = vsel %vm234, %v2760, 0.0
    %v2763 = vrot.slane %v2762, 4
    %v2764 = vadd.f32 %v2762, %v2763
    %v2765 = vrot.slane %v2764, 2
    %v2766 = vadd.f32 %v2764, %v2765
    %v2767 = vrot.slane %v2766, 1
    %v2768 = vadd.f32 %v2766, %v2767
    %v2769 = vsel %vm234, %v2761, 0.0
    %v2770 = vrot.slane %v2769, 4
    %v2771 = vadd.f32 %v2769, %v2770
    %v2772 = vrot.slane %v2771, 2
    %v2773 = vadd.f32 %v2771, %v2772
    %v2774 = vrot.slane %v2773, 1
    %v2775 = vadd.f32 %v2773, %v2774
    %v2776 = vmul.f32 %v2768, %v2758
    %v2777 = vmul.f32 %v2775, %v2759
    %v2778 = vsel %vm234, %v2607, 0
    %2780 = vmatprep.subr.mxu0 0.0
    %2781 = vmatpush1.msra.mxu0 0.0
    %2782 = vmatprep.subr.mxu0 0.0
    %2783 = vmatpush1.msra.mxu0 0.0
    %2784 = vmatprep.subr.mxu0 0.0
    %2785 = vmatpush1.msra.mxu0 0.0
    %2786 = vmatprep.subr.mxu0 0.0
    %2787 = vmatpush1.msra.mxu0 0.0
    %2788 = vmatprep.subr.mxu0 0.0
    %2789 = vmatpush1.msra.mxu0 0.0
    %2790 = vmatprep.subr.mxu0 0.0
    %2791 = vmatpush1.msra.mxu0 0.0
    %2792 = vmatprep.subr.mxu0 0.0
    %2793 = vmatpush1.msra.mxu0 0.0
    %2794 = vmatprep.subr.mxu0 0.0
    %2795 = vmatpush1.msra.mxu0 0.0
    %2796 = vmatprep.subr.mxu0 0.0
    %2797 = vmatpush1.msra.mxu0 0.0
    %2798 = vmatprep.subr.mxu0 0.0
    %2799 = vmatpush1.msra.mxu0 0.0
    %2800 = vmatprep.subr.mxu0 0.0
    %2801 = vmatpush1.msra.mxu0 0.0
    %2802 = vmatprep.subr.mxu0 0.0
    %2803 = vmatpush1.msra.mxu0 0.0
    %2804 = vmatprep.subr.mxu0 0.0
    %2805 = vmatpush1.msra.mxu0 %v1732
    %2806 = vmatprep.subr.mxu0 0.0
    %2807 = vmatpush1.msra.mxu0 %v1731
    %2808 = vmatprep.subr.mxu0 0.0
    %2809 = vmatpush1.msra.mxu0 %v1730
    %2810 = vmatprep.subr.mxu0 0.0
    %2811 = vmatpush1.msra.mxu0 %v1729
    %2812 = vmatprep.subr.mxu0 0.0
    %2813 = vmatpush2.msra.mxu0 0.0
    %2814 = vmatprep.subr.mxu0 0.0
    %2815 = vmatpush2.msra.mxu0 0.0
    %2816 = vmatprep.subr.mxu0 0.0
    %2817 = vmatpush2.msra.mxu0 0.0
    %2818 = vmatprep.subr.mxu0 0.0
    %2819 = vmatpush2.msra.mxu0 0.0
    %2820 = vmatprep.subr.mxu0 0.0
    %2821 = vmatpush2.msra.mxu0 0.0
    %2822 = vmatprep.subr.mxu0 0.0
    %2823 = vmatpush2.msra.mxu0 0.0
    %2824 = vmatprep.subr.mxu0 0.0
    %2825 = vmatpush2.msra.mxu0 0.0
    %2826 = vmatprep.subr.mxu0 0.0
    %2827 = vmatpush2.msra.mxu0 0.0
    %2828 = vmatprep.subr.mxu0 0.0
    %2829 = vmatpush2.msra.mxu0 0.0
    %2830 = vmatprep.subr.mxu0 0.0
    %2831 = vmatpush2.msra.mxu0 0.0
    %2832 = vmatprep.subr.mxu0 0.0
    %2833 = vmatpush2.msra.mxu0 0.0
    %2834 = vmatprep.subr.mxu0 0.0
    %2835 = vmatpush2.msra.mxu0 0.0
    %2836 = vmatprep.subr.mxu0 0.0
    %2837 = vmatpush2.msra.mxu0 0.0
    %2838 = vmatprep.subr.mxu0 0.0
    %2839 = vmatpush2.msra.mxu0 0.0
    %2840 = vmatprep.subr.mxu0 0.0
    %2841 = vmatpush2.msra.mxu0 0.0
    %2842 = vmatprep.subr.mxu0 0.0
    %2843 = vmatpush2.msra.mxu0 0.0
    %2844 = vmatprep.mubr.f32.mxu0 0.0
    %2845 = vmatmul.mubr.f32.gmra.mxu0 %v2778
    %v2846 = vpop.f32.mrf.mxu0
    %v2847 = vadd.f32 0.0, %v2846
    %v2848 = vpop.f32.mrf.mxu0
    %2849 = vdwg.mxu0
    %v2852 = vsel %vm378, %v2777, %v2776
    %v2853 = vsel %vm234, %v2852, 0
    %2855 = vmatprep.subr.mxu0 0.0
    %2856 = vmatpush1.msra.mxu0 0.0
    %2857 = vmatprep.subr.mxu0 0.0
    %2858 = vmatpush1.msra.mxu0 0.0
    %2859 = vmatprep.subr.mxu0 0.0
    %2860 = vmatpush1.msra.mxu0 0.0
    %2861 = vmatprep.subr.mxu0 0.0
    %2862 = vmatpush1.msra.mxu0 0.0
    %2863 = vmatprep.subr.mxu0 0.0
    %2864 = vmatpush1.msra.mxu0 0.0
    %2865 = vmatprep.subr.mxu0 0.0
    %2866 = vmatpush1.msra.mxu0 0.0
    %2867 = vmatprep.subr.mxu0 0.0
    %2868 = vmatpush1.msra.mxu0 0.0
    %2869 = vmatprep.subr.mxu0 0.0
    %2870 = vmatpush1.msra.mxu0 0.0
    %2871 = vmatprep.subr.mxu0 0.0
    %2872 = vmatpush1.msra.mxu0 0.0
    %2873 = vmatprep.subr.mxu0 0.0
    %2874 = vmatpush1.msra.mxu0 0.0
    %2875 = vmatprep.subr.mxu0 0.0
    %2876 = vmatpush1.msra.mxu0 0.0
    %2877 = vmatprep.subr.mxu0 0.0
    %2878 = vmatpush1.msra.mxu0 0.0
    %2879 = vmatprep.subr.mxu0 0.0
    %2880 = vmatpush1.msra.mxu0 %v1728
    %2881 = vmatprep.subr.mxu0 0.0
    %2882 = vmatpush1.msra.mxu0 %v1727
    %2883 = vmatprep.subr.mxu0 0.0
    %2884 = vmatpush1.msra.mxu0 %v1726
    %2885 = vmatprep.subr.mxu0 0.0
    %2886 = vmatpush1.msra.mxu0 %v1725
    %2887 = vmatprep.subr.mxu0 0.0
    %2888 = vmatpush2.msra.mxu0 0.0
    %2889 = vmatprep.subr.mxu0 0.0
    %2890 = vmatpush2.msra.mxu0 0.0
    %2891 = vmatprep.subr.mxu0 0.0
    %2892 = vmatpush2.msra.mxu0 0.0
    %2893 = vmatprep.subr.mxu0 0.0
    %2894 = vmatpush2.msra.mxu0 0.0
    %2895 = vmatprep.subr.mxu0 0.0
    %2896 = vmatpush2.msra.mxu0 0.0
    %2897 = vmatprep.subr.mxu0 0.0
    %2898 = vmatpush2.msra.mxu0 0.0
    %2899 = vmatprep.subr.mxu0 0.0
    %2900 = vmatpush2.msra.mxu0 0.0
    %2901 = vmatprep.subr.mxu0 0.0
    %2902 = vmatpush2.msra.mxu0 0.0
    %2903 = vmatprep.subr.mxu0 0.0
    %2904 = vmatpush2.msra.mxu0 0.0
    %2905 = vmatprep.subr.mxu0 0.0
    %2906 = vmatpush2.msra.mxu0 0.0
    %2907 = vmatprep.subr.mxu0 0.0
    %2908 = vmatpush2.msra.mxu0 0.0
    %2909 = vmatprep.subr.mxu0 0.0
    %2910 = vmatpush2.msra.mxu0 0.0
    %2911 = vmatprep.subr.mxu0 0.0
    %2912 = vmatpush2.msra.mxu0 0.0
    %2913 = vmatprep.subr.mxu0 0.0
    %2914 = vmatpush2.msra.mxu0 0.0
    %2915 = vmatprep.subr.mxu0 0.0
    %2916 = vmatpush2.msra.mxu0 0.0
    %2917 = vmatprep.subr.mxu0 0.0
    %2918 = vmatpush2.msra.mxu0 0.0
    %2919 = vmatprep.mubr.f32.mxu0 0.0
    %2920 = vmatmul.mubr.f32.gmra.mxu0 %v2853
    %v2921 = vpop.f32.mrf.mxu0
    %v2922 = vadd.f32 %v2847, %v2921
    %v2923 = vpop.f32.mrf.mxu0
    %2924 = vdwg.mxu0
    %v2925 = vrot.slane %v222, 3
    %v2926 = vrot.slane %v227, 2
    %v2927 = vsel %vm378, %v2926, %v2925
    %v2929 = vadd.f32 %v2922, %v2927
    %v2930 = vxor.u32 %v2929, 2147483648
    %v2931 = vmul.f32 %v2930, 1.442695
    %v2932 = vpow.pop %v2931
    %v2933 = vadd.f32 %v2932, 1.0
    %v2934 = vrcp.pop %v2933
    %v2935 = vmul.f32 1.0, %v2934
    %v2936 = vtanh.pop %v2929
    %v2937 = vmul.f32 %v2935, %v2598
    %2939 = vrot.lane.b32.xlu0 %v2936, 32
    %v2940 = vpop.permute.xlu0 %2939
    %v2942 = vmul.f32 %v2935, %v2940
    %2944 = vrot.lane.b32.xlu0 %v2942, 32
    %v2945 = vpop.permute.xlu0 %2944
    %v2947 = vadd.f32 %v2937, %v2945
    %v2948 = vtanh.pop %v2947
    %2950 = vrot.lane.b32.xlu0 %v2948, 32
    %v2951 = vpop.permute.xlu0 %2950
    %v2953 = vmul.f32 %v2935, %v2951
    %2955 = vrot.lane.b32.xlu0 %v2953, 64
    %v2956 = vpop.permute.xlu0 %2955
    %v2958 = vsel %vm234, %v2956, %v2947
    %v2960 = vsel %vm1550, %v2958, 0
    %2962 = vmatprep.subr.mxu0 0.0
    %2963 = vmatpush1.msra.mxu0 0.0
    %2964 = vmatprep.subr.mxu0 0.0
    %2965 = vmatpush1.msra.mxu0 0.0
    %2966 = vmatprep.subr.mxu0 0.0
    %2967 = vmatpush1.msra.mxu0 0.0
    %2968 = vmatprep.subr.mxu0 0.0
    %2969 = vmatpush1.msra.mxu0 0.0
    %2970 = vmatprep.subr.mxu0 0.0
    %2971 = vmatpush1.msra.mxu0 0.0
    %2972 = vmatprep.subr.mxu0 0.0
    %2973 = vmatpush1.msra.mxu0 0.0
    %2974 = vmatprep.subr.mxu0 0.0
    %2975 = vmatpush1.msra.mxu0 0.0
    %2976 = vmatprep.subr.mxu0 0.0
    %2977 = vmatpush1.msra.mxu0 0.0
    %2978 = vmatprep.subr.mxu0 0.0
    %2979 = vmatpush1.msra.mxu0 %v1549
    %2980 = vmatprep.subr.mxu0 0.0
    %2981 = vmatpush1.msra.mxu0 %v1548
    %2982 = vmatprep.subr.mxu0 0.0
    %2983 = vmatpush1.msra.mxu0 %v1547
    %2984 = vmatprep.subr.mxu0 0.0
    %2985 = vmatpush1.msra.mxu0 %v1546
    %2986 = vmatprep.subr.mxu0 0.0
    %2987 = vmatpush1.msra.mxu0 %v1545
    %2988 = vmatprep.subr.mxu0 0.0
    %2989 = vmatpush1.msra.mxu0 %v1544
    %2990 = vmatprep.subr.mxu0 0.0
    %2991 = vmatpush1.msra.mxu0 %v1543
    %2992 = vmatprep.subr.mxu0 0.0
    %2993 = vmatpush1.msra.mxu0 %v1542
    %2994 = vmatprep.subr.mxu0 0.0
    %2995 = vmatpush2.msra.mxu0 0.0
    %2996 = vmatprep.subr.mxu0 0.0
    %2997 = vmatpush2.msra.mxu0 0.0
    %2998 = vmatprep.subr.mxu0 0.0
    %2999 = vmatpush2.msra.mxu0 0.0
    %3000 = vmatprep.subr.mxu0 0.0
    %3001 = vmatpush2.msra.mxu0 0.0
    %3002 = vmatprep.subr.mxu0 0.0
    %3003 = vmatpush2.msra.mxu0 0.0
    %3004 = vmatprep.subr.mxu0 0.0
    %3005 = vmatpush2.msra.mxu0 0.0
    %3006 = vmatprep.subr.mxu0 0.0
    %3007 = vmatpush2.msra.mxu0 0.0
    %3008 = vmatprep.subr.mxu0 0.0
    %3009 = vmatpush2.msra.mxu0 0.0
    %3010 = vmatprep.subr.mxu0 0.0
    %3011 = vmatpush2.msra.mxu0 0.0
    %3012 = vmatprep.subr.mxu0 0.0
    %3013 = vmatpush2.msra.mxu0 0.0
    %3014 = vmatprep.subr.mxu0 0.0
    %3015 = vmatpush2.msra.mxu0 0.0
    %3016 = vmatprep.subr.mxu0 0.0
    %3017 = vmatpush2.msra.mxu0 0.0
    %3018 = vmatprep.subr.mxu0 0.0
    %3019 = vmatpush2.msra.mxu0 0.0
    %3020 = vmatprep.subr.mxu0 0.0
    %3021 = vmatpush2.msra.mxu0 0.0
    %3022 = vmatprep.subr.mxu0 0.0
    %3023 = vmatpush2.msra.mxu0 0.0
    %3024 = vmatprep.subr.mxu0 0.0
    %3025 = vmatpush2.msra.mxu0 0.0
    %3026 = vmatprep.mubr.f32.mxu0 0.0
    %3027 = vmatmul.mubr.f32.gmra.mxu0 %v2960
    %v3028 = vpop.f32.mrf.mxu0
    %v3029 = vadd.f32 0.0, %v3028
    %v3030 = vpop.f32.mrf.mxu0
    %3031 = vdwg.mxu0
    %v3034 = vunpack.c.l.s4 1966171168
    %v3035 = vunpack.c.0.s8 %v3034
    %v3036 = vlaneseq
    %v3037 = vshrl.u32 %v3036, 7
    %v3038 = vsub.s32 %v3035, %v3037
    %v3039 = vrot.slane %v3029, %v3038
    %v3040 = vcombine.high %v3039, %v3039
    %v3042 = vunpack.c.l.s4 1966171168
    %v3043 = vunpack.c.0.s8 %v3042
    %v3044 = vlaneseq
    %v3045 = vshrl.u32 %v3044, 7
    %v3046 = vsub.s32 %v3043, %v3045
    %v3047 = vrot.slane %v3039, %v3046
    %v3049 = vunpack.c.l.s4 1966171168
    %v3050 = vunpack.c.0.s8 %v3049
    %v3051 = vlaneseq
    %v3052 = vshrl.u32 %v3051, 7
    %v3053 = vsub.s32 %v3050, %v3052
    %v3054 = vrot.slane %v3040, %v3053
    %v3055 = vlaneseq
    %v3056 = vshrl.u32 %v3055, 7
    %v3057 = vsub.s32 0, %v3056
    %v3058 = vrot.slane %v3047, %v3057
    %v3059 = vlaneseq
    %v3060 = vshrl.u32 %v3059, 7
    %v3061 = vsub.s32 0, %v3060
    %v3062 = vrot.slane %v3054, %v3061
    %v3065 = vadd.f32 %v3058, %v1540
    %v3066 = vadd.f32 %v3062, %v1541
    %v3067 = vtanh.pop %v3065
    %v3068 = vtanh.pop %v3066
    %v3069 = vmul.f32 %v3067, %v1665
    %v3070 = vmul.f32 %v3068, %v1665
    %v3071 = vsel %vm234, %v3069, 0.0
    %3072 = vadd.xlane.f32.xlu0 %v3071
    %v3073 = vpop.xlane.xlu0 %3072
    %v3074 = vsel %vm234, %v3070, 0.0
    %3075 = vadd.xlane.f32.xlu0 %v3074
    %v3076 = vpop.xlane.xlu0 %3075
    %v3077 = vrot.slane %v3073, 4
    %v3078 = vmax.f32 %v3073, %v3077
    %v3079 = vrot.slane %v3078, 2
    %v3080 = vmax.f32 %v3078, %v3079
    %v3081 = vrot.slane %v3080, 1
    %v3082 = vmax.f32 %v3080, %v3081
    %v3083 = vrot.slane %v3076, 4
    %v3084 = vmax.f32 %v3076, %v3083
    %v3085 = vrot.slane %v3084, 2
    %v3086 = vmax.f32 %v3084, %v3085
    %v3087 = vrot.slane %v3086, 1
    %v3088 = vmax.f32 %v3086, %v3087
    %v3089 = vsub.f32 %v3073, %v3082
    %v3090 = vsub.f32 %v3076, %v3088
    %v3091 = vmul.f32 %v3089, 1.442695
    %v3092 = vpow.pop %v3091
    %v3093 = vmul.f32 %v3090, 1.442695
    %v3094 = vpow.pop %v3093
    %v3095 = vrot.slane %v3092, 4
    %v3096 = vadd.f32 %v3092, %v3095
    %v3097 = vrot.slane %v3096, 2
    %v3098 = vadd.f32 %v3096, %v3097
    %v3099 = vrot.slane %v3098, 1
    %v3100 = vadd.f32 %v3098, %v3099
    %v3101 = vrot.slane %v3094, 4
    %v3102 = vadd.f32 %v3094, %v3101
    %v3103 = vrot.slane %v3102, 2
    %v3104 = vadd.f32 %v3102, %v3103
    %v3105 = vrot.slane %v3104, 1
    %v3106 = vadd.f32 %v3104, %v3105
    %v3107 = vrcp.pop %v3100
    %v3108 = vrcp.pop %v3106
    %v3109 = vmul.f32 %v3092, %v1538
    %v3110 = vmul.f32 %v3094, %v1539
    %v3111 = vsel %vm234, %v3109, 0.0
    %v3112 = vrot.slane %v3111, 4
    %v3113 = vadd.f32 %v3111, %v3112
    %v3114 = vrot.slane %v3113, 2
    %v3115 = vadd.f32 %v3113, %v3114
    %v3116 = vrot.slane %v3115, 1
    %v3117 = vadd.f32 %v3115, %v3116
    %v3118 = vsel %vm234, %v3110, 0.0
    %v3119 = vrot.slane %v3118, 4
    %v3120 = vadd.f32 %v3118, %v3119
    %v3121 = vrot.slane %v3120, 2
    %v3122 = vadd.f32 %v3120, %v3121
    %v3123 = vrot.slane %v3122, 1
    %v3124 = vadd.f32 %v3122, %v3123
    %v3125 = vmul.f32 %v3117, %v3107
    %v3126 = vmul.f32 %v3124, %v3108
    %v3127 = vsel %vm234, %v2956, 0
    %3129 = vmatprep.subr.mxu0 0.0
    %3130 = vmatpush1.msra.mxu0 0.0
    %3131 = vmatprep.subr.mxu0 0.0
    %3132 = vmatpush1.msra.mxu0 0.0
    %3133 = vmatprep.subr.mxu0 0.0
    %3134 = vmatpush1.msra.mxu0 0.0
    %3135 = vmatprep.subr.mxu0 0.0
    %3136 = vmatpush1.msra.mxu0 0.0
    %3137 = vmatprep.subr.mxu0 0.0
    %3138 = vmatpush1.msra.mxu0 0.0
    %3139 = vmatprep.subr.mxu0 0.0
    %3140 = vmatpush1.msra.mxu0 0.0
    %3141 = vmatprep.subr.mxu0 0.0
    %3142 = vmatpush1.msra.mxu0 0.0
    %3143 = vmatprep.subr.mxu0 0.0
    %3144 = vmatpush1.msra.mxu0 0.0
    %3145 = vmatprep.subr.mxu0 0.0
    %3146 = vmatpush1.msra.mxu0 0.0
    %3147 = vmatprep.subr.mxu0 0.0
    %3148 = vmatpush1.msra.mxu0 0.0
    %3149 = vmatprep.subr.mxu0 0.0
    %3150 = vmatpush1.msra.mxu0 0.0
    %3151 = vmatprep.subr.mxu0 0.0
    %3152 = vmatpush1.msra.mxu0 0.0
    %3153 = vmatprep.subr.mxu0 0.0
    %3154 = vmatpush1.msra.mxu0 %v1732
    %3155 = vmatprep.subr.mxu0 0.0
    %3156 = vmatpush1.msra.mxu0 %v1731
    %3157 = vmatprep.subr.mxu0 0.0
    %3158 = vmatpush1.msra.mxu0 %v1730
    %3159 = vmatprep.subr.mxu0 0.0
    %3160 = vmatpush1.msra.mxu0 %v1729
    %3161 = vmatprep.subr.mxu0 0.0
    %3162 = vmatpush2.msra.mxu0 0.0
    %3163 = vmatprep.subr.mxu0 0.0
    %3164 = vmatpush2.msra.mxu0 0.0
    %3165 = vmatprep.subr.mxu0 0.0
    %3166 = vmatpush2.msra.mxu0 0.0
    %3167 = vmatprep.subr.mxu0 0.0
    %3168 = vmatpush2.msra.mxu0 0.0
    %3169 = vmatprep.subr.mxu0 0.0
    %3170 = vmatpush2.msra.mxu0 0.0
    %3171 = vmatprep.subr.mxu0 0.0
    %3172 = vmatpush2.msra.mxu0 0.0
    %3173 = vmatprep.subr.mxu0 0.0
    %3174 = vmatpush2.msra.mxu0 0.0
    %3175 = vmatprep.subr.mxu0 0.0
    %3176 = vmatpush2.msra.mxu0 0.0
    %3177 = vmatprep.subr.mxu0 0.0
    %3178 = vmatpush2.msra.mxu0 0.0
    %3179 = vmatprep.subr.mxu0 0.0
    %3180 = vmatpush2.msra.mxu0 0.0
    %3181 = vmatprep.subr.mxu0 0.0
    %3182 = vmatpush2.msra.mxu0 0.0
    %3183 = vmatprep.subr.mxu0 0.0
    %3184 = vmatpush2.msra.mxu0 0.0
    %3185 = vmatprep.subr.mxu0 0.0
    %3186 = vmatpush2.msra.mxu0 0.0
    %3187 = vmatprep.subr.mxu0 0.0
    %3188 = vmatpush2.msra.mxu0 0.0
    %3189 = vmatprep.subr.mxu0 0.0
    %3190 = vmatpush2.msra.mxu0 0.0
    %3191 = vmatprep.subr.mxu0 0.0
    %3192 = vmatpush2.msra.mxu0 0.0
    %3193 = vmatprep.mubr.f32.mxu0 0.0
    %3194 = vmatmul.mubr.f32.gmra.mxu0 %v3127
    %v3195 = vpop.f32.mrf.mxu0
    %v3196 = vadd.f32 0.0, %v3195
    %v3197 = vpop.f32.mrf.mxu0
    %3198 = vdwg.mxu0
    %v3201 = vsel %vm378, %v3126, %v3125
    %v3202 = vsel %vm234, %v3201, 0
    %3204 = vmatprep.subr.mxu0 0.0
    %3205 = vmatpush1.msra.mxu0 0.0
    %3206 = vmatprep.subr.mxu0 0.0
    %3207 = vmatpush1.msra.mxu0 0.0
    %3208 = vmatprep.subr.mxu0 0.0
    %3209 = vmatpush1.msra.mxu0 0.0
    %3210 = vmatprep.subr.mxu0 0.0
    %3211 = vmatpush1.msra.mxu0 0.0
    %3212 = vmatprep.subr.mxu0 0.0
    %3213 = vmatpush1.msra.mxu0 0.0
    %3214 = vmatprep.subr.mxu0 0.0
    %3215 = vmatpush1.msra.mxu0 0.0
    %3216 = vmatprep.subr.mxu0 0.0
    %3217 = vmatpush1.msra.mxu0 0.0
    %3218 = vmatprep.subr.mxu0 0.0
    %3219 = vmatpush1.msra.mxu0 0.0
    %3220 = vmatprep.subr.mxu0 0.0
    %3221 = vmatpush1.msra.mxu0 0.0
    %3222 = vmatprep.subr.mxu0 0.0
    %3223 = vmatpush1.msra.mxu0 0.0
    %3224 = vmatprep.subr.mxu0 0.0
    %3225 = vmatpush1.msra.mxu0 0.0
    %3226 = vmatprep.subr.mxu0 0.0
    %3227 = vmatpush1.msra.mxu0 0.0
    %3228 = vmatprep.subr.mxu0 0.0
    %3229 = vmatpush1.msra.mxu0 %v1728
    %3230 = vmatprep.subr.mxu0 0.0
    %3231 = vmatpush1.msra.mxu0 %v1727
    %3232 = vmatprep.subr.mxu0 0.0
    %3233 = vmatpush1.msra.mxu0 %v1726
    %3234 = vmatprep.subr.mxu0 0.0
    %3235 = vmatpush1.msra.mxu0 %v1725
    %3236 = vmatprep.subr.mxu0 0.0
    %3237 = vmatpush2.msra.mxu0 0.0
    %3238 = vmatprep.subr.mxu0 0.0
    %3239 = vmatpush2.msra.mxu0 0.0
    %3240 = vmatprep.subr.mxu0 0.0
    %3241 = vmatpush2.msra.mxu0 0.0
    %3242 = vmatprep.subr.mxu0 0.0
    %3243 = vmatpush2.msra.mxu0 0.0
    %3244 = vmatprep.subr.mxu0 0.0
    %3245 = vmatpush2.msra.mxu0 0.0
    %3246 = vmatprep.subr.mxu0 0.0
    %3247 = vmatpush2.msra.mxu0 0.0
    %3248 = vmatprep.subr.mxu0 0.0
    %3249 = vmatpush2.msra.mxu0 0.0
    %3250 = vmatprep.subr.mxu0 0.0
    %3251 = vmatpush2.msra.mxu0 0.0
    %3252 = vmatprep.subr.mxu0 0.0
    %3253 = vmatpush2.msra.mxu0 0.0
    %3254 = vmatprep.subr.mxu0 0.0
    %3255 = vmatpush2.msra.mxu0 0.0
    %3256 = vmatprep.subr.mxu0 0.0
    %3257 = vmatpush2.msra.mxu0 0.0
    %3258 = vmatprep.subr.mxu0 0.0
    %3259 = vmatpush2.msra.mxu0 0.0
    %3260 = vmatprep.subr.mxu0 0.0
    %3261 = vmatpush2.msra.mxu0 0.0
    %3262 = vmatprep.subr.mxu0 0.0
    %3263 = vmatpush2.msra.mxu0 0.0
    %3264 = vmatprep.subr.mxu0 0.0
    %3265 = vmatpush2.msra.mxu0 0.0
    %3266 = vmatprep.subr.mxu0 0.0
    %3267 = vmatpush2.msra.mxu0 0.0
    %3268 = vmatprep.mubr.f32.mxu0 0.0
    %3269 = vmatmul.mubr.f32.gmra.mxu0 %v3202
    %v3270 = vpop.f32.mrf.mxu0
    %v3271 = vadd.f32 %v3196, %v3270
    %v3272 = vpop.f32.mrf.mxu0
    %3273 = vdwg.mxu0
    %v3274 = vrot.slane %v222, 4
    %v3275 = vrot.slane %v227, 3
    %v3276 = vsel %vm378, %v3275, %v3274
    %v3278 = vadd.f32 %v3271, %v3276
    %v3279 = vxor.u32 %v3278, 2147483648
    %v3280 = vmul.f32 %v3279, 1.442695
    %v3281 = vpow.pop %v3280
    %v3282 = vadd.f32 %v3281, 1.0
    %v3283 = vrcp.pop %v3282
    %v3284 = vmul.f32 1.0, %v3283
    %v3285 = vtanh.pop %v3278
    %v3286 = vmul.f32 %v3284, %v2947
    %3288 = vrot.lane.b32.xlu0 %v3285, 32
    %v3289 = vpop.permute.xlu0 %3288
    %v3291 = vmul.f32 %v3284, %v3289
    %3293 = vrot.lane.b32.xlu0 %v3291, 32
    %v3294 = vpop.permute.xlu0 %3293
    %v3296 = vadd.f32 %v3286, %v3294
    %v3297 = vtanh.pop %v3296
    %3299 = vrot.lane.b32.xlu0 %v3297, 32
    %v3300 = vpop.permute.xlu0 %3299
    %v3302 = vmul.f32 %v3284, %v3300
    %3304 = vrot.lane.b32.xlu0 %v3302, 64
    %v3305 = vpop.permute.xlu0 %3304
    %v3307 = vsel %vm234, %v3305, %v3296
    %v3309 = vsel %vm1550, %v3307, 0
    %3311 = vmatprep.subr.mxu0 0.0
    %3312 = vmatpush1.msra.mxu0 0.0
    %3313 = vmatprep.subr.mxu0 0.0
    %3314 = vmatpush1.msra.mxu0 0.0
    %3315 = vmatprep.subr.mxu0 0.0
    %3316 = vmatpush1.msra.mxu0 0.0
    %3317 = vmatprep.subr.mxu0 0.0
    %3318 = vmatpush1.msra.mxu0 0.0
    %3319 = vmatprep.subr.mxu0 0.0
    %3320 = vmatpush1.msra.mxu0 0.0
    %3321 = vmatprep.subr.mxu0 0.0
    %3322 = vmatpush1.msra.mxu0 0.0
    %3323 = vmatprep.subr.mxu0 0.0
    %3324 = vmatpush1.msra.mxu0 0.0
    %3325 = vmatprep.subr.mxu0 0.0
    %3326 = vmatpush1.msra.mxu0 0.0
    %3327 = vmatprep.subr.mxu0 0.0
    %3328 = vmatpush1.msra.mxu0 %v1549
    %3329 = vmatprep.subr.mxu0 0.0
    %3330 = vmatpush1.msra.mxu0 %v1548
    %3331 = vmatprep.subr.mxu0 0.0
    %3332 = vmatpush1.msra.mxu0 %v1547
    %3333 = vmatprep.subr.mxu0 0.0
    %3334 = vmatpush1.msra.mxu0 %v1546
    %3335 = vmatprep.subr.mxu0 0.0
    %3336 = vmatpush1.msra.mxu0 %v1545
    %3337 = vmatprep.subr.mxu0 0.0
    %3338 = vmatpush1.msra.mxu0 %v1544
    %3339 = vmatprep.subr.mxu0 0.0
    %3340 = vmatpush1.msra.mxu0 %v1543
    %3341 = vmatprep.subr.mxu0 0.0
    %3342 = vmatpush1.msra.mxu0 %v1542
    %3343 = vmatprep.subr.mxu0 0.0
    %3344 = vmatpush2.msra.mxu0 0.0
    %3345 = vmatprep.subr.mxu0 0.0
    %3346 = vmatpush2.msra.mxu0 0.0
    %3347 = vmatprep.subr.mxu0 0.0
    %3348 = vmatpush2.msra.mxu0 0.0
    %3349 = vmatprep.subr.mxu0 0.0
    %3350 = vmatpush2.msra.mxu0 0.0
    %3351 = vmatprep.subr.mxu0 0.0
    %3352 = vmatpush2.msra.mxu0 0.0
    %3353 = vmatprep.subr.mxu0 0.0
    %3354 = vmatpush2.msra.mxu0 0.0
    %3355 = vmatprep.subr.mxu0 0.0
    %3356 = vmatpush2.msra.mxu0 0.0
    %3357 = vmatprep.subr.mxu0 0.0
    %3358 = vmatpush2.msra.mxu0 0.0
    %3359 = vmatprep.subr.mxu0 0.0
    %3360 = vmatpush2.msra.mxu0 0.0
    %3361 = vmatprep.subr.mxu0 0.0
    %3362 = vmatpush2.msra.mxu0 0.0
    %3363 = vmatprep.subr.mxu0 0.0
    %3364 = vmatpush2.msra.mxu0 0.0
    %3365 = vmatprep.subr.mxu0 0.0
    %3366 = vmatpush2.msra.mxu0 0.0
    %3367 = vmatprep.subr.mxu0 0.0
    %3368 = vmatpush2.msra.mxu0 0.0
    %3369 = vmatprep.subr.mxu0 0.0
    %3370 = vmatpush2.msra.mxu0 0.0
    %3371 = vmatprep.subr.mxu0 0.0
    %3372 = vmatpush2.msra.mxu0 0.0
    %3373 = vmatprep.subr.mxu0 0.0
    %3374 = vmatpush2.msra.mxu0 0.0
    %3375 = vmatprep.mubr.f32.mxu0 0.0
    %3376 = vmatmul.mubr.f32.gmra.mxu0 %v3309
    %v3377 = vpop.f32.mrf.mxu0
    %v3378 = vadd.f32 0.0, %v3377
    %v3379 = vpop.f32.mrf.mxu0
    %3380 = vdwg.mxu0
    %v3383 = vunpack.c.l.s4 1966171168
    %v3384 = vunpack.c.0.s8 %v3383
    %v3385 = vlaneseq
    %v3386 = vshrl.u32 %v3385, 7
    %v3387 = vsub.s32 %v3384, %v3386
    %v3388 = vrot.slane %v3378, %v3387
    %v3389 = vcombine.high %v3388, %v3388
    %v3391 = vunpack.c.l.s4 1966171168
    %v3392 = vunpack.c.0.s8 %v3391
    %v3393 = vlaneseq
    %v3394 = vshrl.u32 %v3393, 7
    %v3395 = vsub.s32 %v3392, %v3394
    %v3396 = vrot.slane %v3388, %v3395
    %v3398 = vunpack.c.l.s4 1966171168
    %v3399 = vunpack.c.0.s8 %v3398
    %v3400 = vlaneseq
    %v3401 = vshrl.u32 %v3400, 7
    %v3402 = vsub.s32 %v3399, %v3401
    %v3403 = vrot.slane %v3389, %v3402
    %v3404 = vlaneseq
    %v3405 = vshrl.u32 %v3404, 7
    %v3406 = vsub.s32 0, %v3405
    %v3407 = vrot.slane %v3396, %v3406
    %v3408 = vlaneseq
    %v3409 = vshrl.u32 %v3408, 7
    %v3410 = vsub.s32 0, %v3409
    %v3411 = vrot.slane %v3403, %v3410
    %v3414 = vadd.f32 %v3407, %v1540
    %v3415 = vadd.f32 %v3411, %v1541
    %v3416 = vtanh.pop %v3414
    %v3417 = vtanh.pop %v3415
    %v3418 = vmul.f32 %v3416, %v1665
    %v3419 = vmul.f32 %v3417, %v1665
    %v3420 = vsel %vm234, %v3418, 0.0
    %3421 = vadd.xlane.f32.xlu0 %v3420
    %v3422 = vpop.xlane.xlu0 %3421
    %v3423 = vsel %vm234, %v3419, 0.0
    %3424 = vadd.xlane.f32.xlu0 %v3423
    %v3425 = vpop.xlane.xlu0 %3424
    %v3426 = vrot.slane %v3422, 4
    %v3427 = vmax.f32 %v3422, %v3426
    %v3428 = vrot.slane %v3427, 2
    %v3429 = vmax.f32 %v3427, %v3428
    %v3430 = vrot.slane %v3429, 1
    %v3431 = vmax.f32 %v3429, %v3430
    %v3432 = vrot.slane %v3425, 4
    %v3433 = vmax.f32 %v3425, %v3432
    %v3434 = vrot.slane %v3433, 2
    %v3435 = vmax.f32 %v3433, %v3434
    %v3436 = vrot.slane %v3435, 1
    %v3437 = vmax.f32 %v3435, %v3436
    %v3438 = vsub.f32 %v3422, %v3431
    %v3439 = vsub.f32 %v3425, %v3437
    %v3440 = vmul.f32 %v3438, 1.442695
    %v3441 = vpow.pop %v3440
    %v3442 = vmul.f32 %v3439, 1.442695
    %v3443 = vpow.pop %v3442
    %v3444 = vrot.slane %v3441, 4
    %v3445 = vadd.f32 %v3441, %v3444
    %v3446 = vrot.slane %v3445, 2
    %v3447 = vadd.f32 %v3445, %v3446
    %v3448 = vrot.slane %v3447, 1
    %v3449 = vadd.f32 %v3447, %v3448
    %v3450 = vrot.slane %v3443, 4
    %v3451 = vadd.f32 %v3443, %v3450
    %v3452 = vrot.slane %v3451, 2
    %v3453 = vadd.f32 %v3451, %v3452
    %v3454 = vrot.slane %v3453, 1
    %v3455 = vadd.f32 %v3453, %v3454
    %v3456 = vrcp.pop %v3449
    %v3457 = vrcp.pop %v3455
    %v3458 = vmul.f32 %v3441, %v1538
    %v3459 = vmul.f32 %v3443, %v1539
    %v3460 = vsel %vm234, %v3458, 0.0
    %v3461 = vrot.slane %v3460, 4
    %v3462 = vadd.f32 %v3460, %v3461
    %v3463 = vrot.slane %v3462, 2
    %v3464 = vadd.f32 %v3462, %v3463
    %v3465 = vrot.slane %v3464, 1
    %v3466 = vadd.f32 %v3464, %v3465
    %v3467 = vsel %vm234, %v3459, 0.0
    %v3468 = vrot.slane %v3467, 4
    %v3469 = vadd.f32 %v3467, %v3468
    %v3470 = vrot.slane %v3469, 2
    %v3471 = vadd.f32 %v3469, %v3470
    %v3472 = vrot.slane %v3471, 1
    %v3473 = vadd.f32 %v3471, %v3472
    %v3474 = vmul.f32 %v3466, %v3456
    %v3475 = vmul.f32 %v3473, %v3457
    %v3476 = vsel %vm234, %v3305, 0
    %3478 = vmatprep.subr.mxu0 0.0
    %3479 = vmatpush1.msra.mxu0 0.0
    %3480 = vmatprep.subr.mxu0 0.0
    %3481 = vmatpush1.msra.mxu0 0.0
    %3482 = vmatprep.subr.mxu0 0.0
    %3483 = vmatpush1.msra.mxu0 0.0
    %3484 = vmatprep.subr.mxu0 0.0
    %3485 = vmatpush1.msra.mxu0 0.0
    %3486 = vmatprep.subr.mxu0 0.0
    %3487 = vmatpush1.msra.mxu0 0.0
    %3488 = vmatprep.subr.mxu0 0.0
    %3489 = vmatpush1.msra.mxu0 0.0
    %3490 = vmatprep.subr.mxu0 0.0
    %3491 = vmatpush1.msra.mxu0 0.0
    %3492 = vmatprep.subr.mxu0 0.0
    %3493 = vmatpush1.msra.mxu0 0.0
    %3494 = vmatprep.subr.mxu0 0.0
    %3495 = vmatpush1.msra.mxu0 0.0
    %3496 = vmatprep.subr.mxu0 0.0
    %3497 = vmatpush1.msra.mxu0 0.0
    %3498 = vmatprep.subr.mxu0 0.0
    %3499 = vmatpush1.msra.mxu0 0.0
    %3500 = vmatprep.subr.mxu0 0.0
    %3501 = vmatpush1.msra.mxu0 0.0
    %3502 = vmatprep.subr.mxu0 0.0
    %3503 = vmatpush1.msra.mxu0 %v1732
    %3504 = vmatprep.subr.mxu0 0.0
    %3505 = vmatpush1.msra.mxu0 %v1731
    %3506 = vmatprep.subr.mxu0 0.0
    %3507 = vmatpush1.msra.mxu0 %v1730
    %3508 = vmatprep.subr.mxu0 0.0
    %3509 = vmatpush1.msra.mxu0 %v1729
    %3510 = vmatprep.subr.mxu0 0.0
    %3511 = vmatpush2.msra.mxu0 0.0
    %3512 = vmatprep.subr.mxu0 0.0
    %3513 = vmatpush2.msra.mxu0 0.0
    %3514 = vmatprep.subr.mxu0 0.0
    %3515 = vmatpush2.msra.mxu0 0.0
    %3516 = vmatprep.subr.mxu0 0.0
    %3517 = vmatpush2.msra.mxu0 0.0
    %3518 = vmatprep.subr.mxu0 0.0
    %3519 = vmatpush2.msra.mxu0 0.0
    %3520 = vmatprep.subr.mxu0 0.0
    %3521 = vmatpush2.msra.mxu0 0.0
    %3522 = vmatprep.subr.mxu0 0.0
    %3523 = vmatpush2.msra.mxu0 0.0
    %3524 = vmatprep.subr.mxu0 0.0
    %3525 = vmatpush2.msra.mxu0 0.0
    %3526 = vmatprep.subr.mxu0 0.0
    %3527 = vmatpush2.msra.mxu0 0.0
    %3528 = vmatprep.subr.mxu0 0.0
    %3529 = vmatpush2.msra.mxu0 0.0
    %3530 = vmatprep.subr.mxu0 0.0
    %3531 = vmatpush2.msra.mxu0 0.0
    %3532 = vmatprep.subr.mxu0 0.0
    %3533 = vmatpush2.msra.mxu0 0.0
    %3534 = vmatprep.subr.mxu0 0.0
    %3535 = vmatpush2.msra.mxu0 0.0
    %3536 = vmatprep.subr.mxu0 0.0
    %3537 = vmatpush2.msra.mxu0 0.0
    %3538 = vmatprep.subr.mxu0 0.0
    %3539 = vmatpush2.msra.mxu0 0.0
    %3540 = vmatprep.subr.mxu0 0.0
    %3541 = vmatpush2.msra.mxu0 0.0
    %3542 = vmatprep.mubr.f32.mxu0 0.0
    %3543 = vmatmul.mubr.f32.gmra.mxu0 %v3476
    %v3544 = vpop.f32.mrf.mxu0
    %v3545 = vadd.f32 0.0, %v3544
    %v3546 = vpop.f32.mrf.mxu0
    %3547 = vdwg.mxu0
    %v3550 = vsel %vm378, %v3475, %v3474
    %v3551 = vsel %vm234, %v3550, 0
    %3553 = vmatprep.subr.mxu0 0.0
    %3554 = vmatpush1.msra.mxu0 0.0
    %3555 = vmatprep.subr.mxu0 0.0
    %3556 = vmatpush1.msra.mxu0 0.0
    %3557 = vmatprep.subr.mxu0 0.0
    %3558 = vmatpush1.msra.mxu0 0.0
    %3559 = vmatprep.subr.mxu0 0.0
    %3560 = vmatpush1.msra.mxu0 0.0
    %3561 = vmatprep.subr.mxu0 0.0
    %3562 = vmatpush1.msra.mxu0 0.0
    %3563 = vmatprep.subr.mxu0 0.0
    %3564 = vmatpush1.msra.mxu0 0.0
    %3565 = vmatprep.subr.mxu0 0.0
    %3566 = vmatpush1.msra.mxu0 0.0
    %3567 = vmatprep.subr.mxu0 0.0
    %3568 = vmatpush1.msra.mxu0 0.0
    %3569 = vmatprep.subr.mxu0 0.0
    %3570 = vmatpush1.msra.mxu0 0.0
    %3571 = vmatprep.subr.mxu0 0.0
    %3572 = vmatpush1.msra.mxu0 0.0
    %3573 = vmatprep.subr.mxu0 0.0
    %3574 = vmatpush1.msra.mxu0 0.0
    %3575 = vmatprep.subr.mxu0 0.0
    %3576 = vmatpush1.msra.mxu0 0.0
    %3577 = vmatprep.subr.mxu0 0.0
    %3578 = vmatpush1.msra.mxu0 %v1728
    %3579 = vmatprep.subr.mxu0 0.0
    %3580 = vmatpush1.msra.mxu0 %v1727
    %3581 = vmatprep.subr.mxu0 0.0
    %3582 = vmatpush1.msra.mxu0 %v1726
    %3583 = vmatprep.subr.mxu0 0.0
    %3584 = vmatpush1.msra.mxu0 %v1725
    %3585 = vmatprep.subr.mxu0 0.0
    %3586 = vmatpush2.msra.mxu0 0.0
    %3587 = vmatprep.subr.mxu0 0.0
    %3588 = vmatpush2.msra.mxu0 0.0
    %3589 = vmatprep.subr.mxu0 0.0
    %3590 = vmatpush2.msra.mxu0 0.0
    %3591 = vmatprep.subr.mxu0 0.0
    %3592 = vmatpush2.msra.mxu0 0.0
    %3593 = vmatprep.subr.mxu0 0.0
    %3594 = vmatpush2.msra.mxu0 0.0
    %3595 = vmatprep.subr.mxu0 0.0
    %3596 = vmatpush2.msra.mxu0 0.0
    %3597 = vmatprep.subr.mxu0 0.0
    %3598 = vmatpush2.msra.mxu0 0.0
    %3599 = vmatprep.subr.mxu0 0.0
    %3600 = vmatpush2.msra.mxu0 0.0
    %3601 = vmatprep.subr.mxu0 0.0
    %3602 = vmatpush2.msra.mxu0 0.0
    %3603 = vmatprep.subr.mxu0 0.0
    %3604 = vmatpush2.msra.mxu0 0.0
    %3605 = vmatprep.subr.mxu0 0.0
    %3606 = vmatpush2.msra.mxu0 0.0
    %3607 = vmatprep.subr.mxu0 0.0
    %3608 = vmatpush2.msra.mxu0 0.0
    %3609 = vmatprep.subr.mxu0 0.0
    %3610 = vmatpush2.msra.mxu0 0.0
    %3611 = vmatprep.subr.mxu0 0.0
    %3612 = vmatpush2.msra.mxu0 0.0
    %3613 = vmatprep.subr.mxu0 0.0
    %3614 = vmatpush2.msra.mxu0 0.0
    %3615 = vmatprep.subr.mxu0 0.0
    %3616 = vmatpush2.msra.mxu0 0.0
    %3617 = vmatprep.mubr.f32.mxu0 0.0
    %3618 = vmatmul.mubr.f32.gmra.mxu0 %v3551
    %v3619 = vpop.f32.mrf.mxu0
    %v3620 = vadd.f32 %v3545, %v3619
    %v3621 = vpop.f32.mrf.mxu0
    %3622 = vdwg.mxu0
    %v3623 = vrot.slane %v222, 5
    %v3624 = vrot.slane %v227, 4
    %v3625 = vsel %vm378, %v3624, %v3623
    %v3627 = vadd.f32 %v3620, %v3625
    %v3628 = vxor.u32 %v3627, 2147483648
    %v3629 = vmul.f32 %v3628, 1.442695
    %v3630 = vpow.pop %v3629
    %v3631 = vadd.f32 %v3630, 1.0
    %v3632 = vrcp.pop %v3631
    %v3633 = vmul.f32 1.0, %v3632
    %v3634 = vtanh.pop %v3627
    %v3635 = vmul.f32 %v3633, %v3296
    %3637 = vrot.lane.b32.xlu0 %v3634, 32
    %v3638 = vpop.permute.xlu0 %3637
    %v3640 = vmul.f32 %v3633, %v3638
    %3642 = vrot.lane.b32.xlu0 %v3640, 32
    %v3643 = vpop.permute.xlu0 %3642
    %v3645 = vadd.f32 %v3635, %v3643
    %v3646 = vtanh.pop %v3645
    %3648 = vrot.lane.b32.xlu0 %v3646, 32
    %v3649 = vpop.permute.xlu0 %3648
    %v3651 = vmul.f32 %v3633, %v3649
    %3653 = vrot.lane.b32.xlu0 %v3651, 64
    %v3654 = vpop.permute.xlu0 %3653
    %v3656 = vsel %vm234, %v3654, %v3645
    %v3658 = vsel %vm1550, %v3656, 0
    %3660 = vmatprep.subr.mxu0 0.0
    %3661 = vmatpush1.msra.mxu0 0.0
    %3662 = vmatprep.subr.mxu0 0.0
    %3663 = vmatpush1.msra.mxu0 0.0
    %3664 = vmatprep.subr.mxu0 0.0
    %3665 = vmatpush1.msra.mxu0 0.0
    %3666 = vmatprep.subr.mxu0 0.0
    %3667 = vmatpush1.msra.mxu0 0.0
    %3668 = vmatprep.subr.mxu0 0.0
    %3669 = vmatpush1.msra.mxu0 0.0
    %3670 = vmatprep.subr.mxu0 0.0
    %3671 = vmatpush1.msra.mxu0 0.0
    %3672 = vmatprep.subr.mxu0 0.0
    %3673 = vmatpush1.msra.mxu0 0.0
    %3674 = vmatprep.subr.mxu0 0.0
    %3675 = vmatpush1.msra.mxu0 0.0
    %3676 = vmatprep.subr.mxu0 0.0
    %3677 = vmatpush1.msra.mxu0 %v1549
    %3678 = vmatprep.subr.mxu0 0.0
    %3679 = vmatpush1.msra.mxu0 %v1548
    %3680 = vmatprep.subr.mxu0 0.0
    %3681 = vmatpush1.msra.mxu0 %v1547
    %3682 = vmatprep.subr.mxu0 0.0
    %3683 = vmatpush1.msra.mxu0 %v1546
    %3684 = vmatprep.subr.mxu0 0.0
    %3685 = vmatpush1.msra.mxu0 %v1545
    %3686 = vmatprep.subr.mxu0 0.0
    %3687 = vmatpush1.msra.mxu0 %v1544
    %3688 = vmatprep.subr.mxu0 0.0
    %3689 = vmatpush1.msra.mxu0 %v1543
    %3690 = vmatprep.subr.mxu0 0.0
    %3691 = vmatpush1.msra.mxu0 %v1542
    %3692 = vmatprep.subr.mxu0 0.0
    %3693 = vmatpush2.msra.mxu0 0.0
    %3694 = vmatprep.subr.mxu0 0.0
    %3695 = vmatpush2.msra.mxu0 0.0
    %3696 = vmatprep.subr.mxu0 0.0
    %3697 = vmatpush2.msra.mxu0 0.0
    %3698 = vmatprep.subr.mxu0 0.0
    %3699 = vmatpush2.msra.mxu0 0.0
    %3700 = vmatprep.subr.mxu0 0.0
    %3701 = vmatpush2.msra.mxu0 0.0
    %3702 = vmatprep.subr.mxu0 0.0
    %3703 = vmatpush2.msra.mxu0 0.0
    %3704 = vmatprep.subr.mxu0 0.0
    %3705 = vmatpush2.msra.mxu0 0.0
    %3706 = vmatprep.subr.mxu0 0.0
    %3707 = vmatpush2.msra.mxu0 0.0
    %3708 = vmatprep.subr.mxu0 0.0
    %3709 = vmatpush2.msra.mxu0 0.0
    %3710 = vmatprep.subr.mxu0 0.0
    %3711 = vmatpush2.msra.mxu0 0.0
    %3712 = vmatprep.subr.mxu0 0.0
    %3713 = vmatpush2.msra.mxu0 0.0
    %3714 = vmatprep.subr.mxu0 0.0
    %3715 = vmatpush2.msra.mxu0 0.0
    %3716 = vmatprep.subr.mxu0 0.0
    %3717 = vmatpush2.msra.mxu0 0.0
    %3718 = vmatprep.subr.mxu0 0.0
    %3719 = vmatpush2.msra.mxu0 0.0
    %3720 = vmatprep.subr.mxu0 0.0
    %3721 = vmatpush2.msra.mxu0 0.0
    %3722 = vmatprep.subr.mxu0 0.0
    %3723 = vmatpush2.msra.mxu0 0.0
    %3724 = vmatprep.mubr.f32.mxu0 0.0
    %3725 = vmatmul.mubr.f32.gmra.mxu0 %v3658
    %v3726 = vpop.f32.mrf.mxu0
    %v3727 = vadd.f32 0.0, %v3726
    %v3728 = vpop.f32.mrf.mxu0
    %3729 = vdwg.mxu0
    %v3732 = vunpack.c.l.s4 1966171168
    %v3733 = vunpack.c.0.s8 %v3732
    %v3734 = vlaneseq
    %v3735 = vshrl.u32 %v3734, 7
    %v3736 = vsub.s32 %v3733, %v3735
    %v3737 = vrot.slane %v3727, %v3736
    %v3738 = vcombine.high %v3737, %v3737
    %v3740 = vunpack.c.l.s4 1966171168
    %v3741 = vunpack.c.0.s8 %v3740
    %v3742 = vlaneseq
    %v3743 = vshrl.u32 %v3742, 7
    %v3744 = vsub.s32 %v3741, %v3743
    %v3745 = vrot.slane %v3737, %v3744
    %v3747 = vunpack.c.l.s4 1966171168
    %v3748 = vunpack.c.0.s8 %v3747
    %v3749 = vlaneseq
    %v3750 = vshrl.u32 %v3749, 7
    %v3751 = vsub.s32 %v3748, %v3750
    %v3752 = vrot.slane %v3738, %v3751
    %v3753 = vlaneseq
    %v3754 = vshrl.u32 %v3753, 7
    %v3755 = vsub.s32 0, %v3754
    %v3756 = vrot.slane %v3745, %v3755
    %v3757 = vlaneseq
    %v3758 = vshrl.u32 %v3757, 7
    %v3759 = vsub.s32 0, %v3758
    %v3760 = vrot.slane %v3752, %v3759
    %v3763 = vadd.f32 %v3756, %v1540
    %v3764 = vadd.f32 %v3760, %v1541
    %v3765 = vtanh.pop %v3763
    %v3766 = vtanh.pop %v3764
    %v3767 = vmul.f32 %v3765, %v1665
    %v3768 = vmul.f32 %v3766, %v1665
    %v3769 = vsel %vm234, %v3767, 0.0
    %3770 = vadd.xlane.f32.xlu0 %v3769
    %v3771 = vpop.xlane.xlu0 %3770
    %v3772 = vsel %vm234, %v3768, 0.0
    %3773 = vadd.xlane.f32.xlu0 %v3772
    %v3774 = vpop.xlane.xlu0 %3773
    %v3775 = vrot.slane %v3771, 4
    %v3776 = vmax.f32 %v3771, %v3775
    %v3777 = vrot.slane %v3776, 2
    %v3778 = vmax.f32 %v3776, %v3777
    %v3779 = vrot.slane %v3778, 1
    %v3780 = vmax.f32 %v3778, %v3779
    %v3781 = vrot.slane %v3774, 4
    %v3782 = vmax.f32 %v3774, %v3781
    %v3783 = vrot.slane %v3782, 2
    %v3784 = vmax.f32 %v3782, %v3783
    %v3785 = vrot.slane %v3784, 1
    %v3786 = vmax.f32 %v3784, %v3785
    %v3787 = vsub.f32 %v3771, %v3780
    %v3788 = vsub.f32 %v3774, %v3786
    %v3789 = vmul.f32 %v3787, 1.442695
    %v3790 = vpow.pop %v3789
    %v3791 = vmul.f32 %v3788, 1.442695
    %v3792 = vpow.pop %v3791
    %v3793 = vrot.slane %v3790, 4
    %v3794 = vadd.f32 %v3790, %v3793
    %v3795 = vrot.slane %v3794, 2
    %v3796 = vadd.f32 %v3794, %v3795
    %v3797 = vrot.slane %v3796, 1
    %v3798 = vadd.f32 %v3796, %v3797
    %v3799 = vrot.slane %v3792, 4
    %v3800 = vadd.f32 %v3792, %v3799
    %v3801 = vrot.slane %v3800, 2
    %v3802 = vadd.f32 %v3800, %v3801
    %v3803 = vrot.slane %v3802, 1
    %v3804 = vadd.f32 %v3802, %v3803
    %v3805 = vrcp.pop %v3798
    %v3806 = vrcp.pop %v3804
    %v3807 = vmul.f32 %v3790, %v1538
    %v3808 = vmul.f32 %v3792, %v1539
    %v3809 = vsel %vm234, %v3807, 0.0
    %v3810 = vrot.slane %v3809, 4
    %v3811 = vadd.f32 %v3809, %v3810
    %v3812 = vrot.slane %v3811, 2
    %v3813 = vadd.f32 %v3811, %v3812
    %v3814 = vrot.slane %v3813, 1
    %v3815 = vadd.f32 %v3813, %v3814
    %v3816 = vsel %vm234, %v3808, 0.0
    %v3817 = vrot.slane %v3816, 4
    %v3818 = vadd.f32 %v3816, %v3817
    %v3819 = vrot.slane %v3818, 2
    %v3820 = vadd.f32 %v3818, %v3819
    %v3821 = vrot.slane %v3820, 1
    %v3822 = vadd.f32 %v3820, %v3821
    %v3823 = vmul.f32 %v3815, %v3805
    %v3824 = vmul.f32 %v3822, %v3806
    %v3825 = vsel %vm234, %v3654, 0
    %3827 = vmatprep.subr.mxu0 0.0
    %3828 = vmatpush1.msra.mxu0 0.0
    %3829 = vmatprep.subr.mxu0 0.0
    %3830 = vmatpush1.msra.mxu0 0.0
    %3831 = vmatprep.subr.mxu0 0.0
    %3832 = vmatpush1.msra.mxu0 0.0
    %3833 = vmatprep.subr.mxu0 0.0
    %3834 = vmatpush1.msra.mxu0 0.0
    %3835 = vmatprep.subr.mxu0 0.0
    %3836 = vmatpush1.msra.mxu0 0.0
    %3837 = vmatprep.subr.mxu0 0.0
    %3838 = vmatpush1.msra.mxu0 0.0
    %3839 = vmatprep.subr.mxu0 0.0
    %3840 = vmatpush1.msra.mxu0 0.0
    %3841 = vmatprep.subr.mxu0 0.0
    %3842 = vmatpush1.msra.mxu0 0.0
    %3843 = vmatprep.subr.mxu0 0.0
    %3844 = vmatpush1.msra.mxu0 0.0
    %3845 = vmatprep.subr.mxu0 0.0
    %3846 = vmatpush1.msra.mxu0 0.0
    %3847 = vmatprep.subr.mxu0 0.0
    %3848 = vmatpush1.msra.mxu0 0.0
    %3849 = vmatprep.subr.mxu0 0.0
    %3850 = vmatpush1.msra.mxu0 0.0
    %3851 = vmatprep.subr.mxu0 0.0
    %3852 = vmatpush1.msra.mxu0 %v1732
    %3853 = vmatprep.subr.mxu0 0.0
    %3854 = vmatpush1.msra.mxu0 %v1731
    %3855 = vmatprep.subr.mxu0 0.0
    %3856 = vmatpush1.msra.mxu0 %v1730
    %3857 = vmatprep.subr.mxu0 0.0
    %3858 = vmatpush1.msra.mxu0 %v1729
    %3859 = vmatprep.subr.mxu0 0.0
    %3860 = vmatpush2.msra.mxu0 0.0
    %3861 = vmatprep.subr.mxu0 0.0
    %3862 = vmatpush2.msra.mxu0 0.0
    %3863 = vmatprep.subr.mxu0 0.0
    %3864 = vmatpush2.msra.mxu0 0.0
    %3865 = vmatprep.subr.mxu0 0.0
    %3866 = vmatpush2.msra.mxu0 0.0
    %3867 = vmatprep.subr.mxu0 0.0
    %3868 = vmatpush2.msra.mxu0 0.0
    %3869 = vmatprep.subr.mxu0 0.0
    %3870 = vmatpush2.msra.mxu0 0.0
    %3871 = vmatprep.subr.mxu0 0.0
    %3872 = vmatpush2.msra.mxu0 0.0
    %3873 = vmatprep.subr.mxu0 0.0
    %3874 = vmatpush2.msra.mxu0 0.0
    %3875 = vmatprep.subr.mxu0 0.0
    %3876 = vmatpush2.msra.mxu0 0.0
    %3877 = vmatprep.subr.mxu0 0.0
    %3878 = vmatpush2.msra.mxu0 0.0
    %3879 = vmatprep.subr.mxu0 0.0
    %3880 = vmatpush2.msra.mxu0 0.0
    %3881 = vmatprep.subr.mxu0 0.0
    %3882 = vmatpush2.msra.mxu0 0.0
    %3883 = vmatprep.subr.mxu0 0.0
    %3884 = vmatpush2.msra.mxu0 0.0
    %3885 = vmatprep.subr.mxu0 0.0
    %3886 = vmatpush2.msra.mxu0 0.0
    %3887 = vmatprep.subr.mxu0 0.0
    %3888 = vmatpush2.msra.mxu0 0.0
    %3889 = vmatprep.subr.mxu0 0.0
    %3890 = vmatpush2.msra.mxu0 0.0
    %3891 = vmatprep.mubr.f32.mxu0 0.0
    %3892 = vmatmul.mubr.f32.gmra.mxu0 %v3825
    %v3893 = vpop.f32.mrf.mxu0
    %v3894 = vadd.f32 0.0, %v3893
    %v3895 = vpop.f32.mrf.mxu0
    %3896 = vdwg.mxu0
    %v3899 = vsel %vm378, %v3824, %v3823
    %v3900 = vsel %vm234, %v3899, 0
    %3902 = vmatprep.subr.mxu0 0.0
    %3903 = vmatpush1.msra.mxu0 0.0
    %3904 = vmatprep.subr.mxu0 0.0
    %3905 = vmatpush1.msra.mxu0 0.0
    %3906 = vmatprep.subr.mxu0 0.0
    %3907 = vmatpush1.msra.mxu0 0.0
    %3908 = vmatprep.subr.mxu0 0.0
    %3909 = vmatpush1.msra.mxu0 0.0
    %3910 = vmatprep.subr.mxu0 0.0
    %3911 = vmatpush1.msra.mxu0 0.0
    %3912 = vmatprep.subr.mxu0 0.0
    %3913 = vmatpush1.msra.mxu0 0.0
    %3914 = vmatprep.subr.mxu0 0.0
    %3915 = vmatpush1.msra.mxu0 0.0
    %3916 = vmatprep.subr.mxu0 0.0
    %3917 = vmatpush1.msra.mxu0 0.0
    %3918 = vmatprep.subr.mxu0 0.0
    %3919 = vmatpush1.msra.mxu0 0.0
    %3920 = vmatprep.subr.mxu0 0.0
    %3921 = vmatpush1.msra.mxu0 0.0
    %3922 = vmatprep.subr.mxu0 0.0
    %3923 = vmatpush1.msra.mxu0 0.0
    %3924 = vmatprep.subr.mxu0 0.0
    %3925 = vmatpush1.msra.mxu0 0.0
    %3926 = vmatprep.subr.mxu0 0.0
    %3927 = vmatpush1.msra.mxu0 %v1728
    %3928 = vmatprep.subr.mxu0 0.0
    %3929 = vmatpush1.msra.mxu0 %v1727
    %3930 = vmatprep.subr.mxu0 0.0
    %3931 = vmatpush1.msra.mxu0 %v1726
    %3932 = vmatprep.subr.mxu0 0.0
    %3933 = vmatpush1.msra.mxu0 %v1725
    %3934 = vmatprep.subr.mxu0 0.0
    %3935 = vmatpush2.msra.mxu0 0.0
    %3936 = vmatprep.subr.mxu0 0.0
    %3937 = vmatpush2.msra.mxu0 0.0
    %3938 = vmatprep.subr.mxu0 0.0
    %3939 = vmatpush2.msra.mxu0 0.0
    %3940 = vmatprep.subr.mxu0 0.0
    %3941 = vmatpush2.msra.mxu0 0.0
    %3942 = vmatprep.subr.mxu0 0.0
    %3943 = vmatpush2.msra.mxu0 0.0
    %3944 = vmatprep.subr.mxu0 0.0
    %3945 = vmatpush2.msra.mxu0 0.0
    %3946 = vmatprep.subr.mxu0 0.0
    %3947 = vmatpush2.msra.mxu0 0.0
    %3948 = vmatprep.subr.mxu0 0.0
    %3949 = vmatpush2.msra.mxu0 0.0
    %3950 = vmatprep.subr.mxu0 0.0
    %3951 = vmatpush2.msra.mxu0 0.0
    %3952 = vmatprep.subr.mxu0 0.0
    %3953 = vmatpush2.msra.mxu0 0.0
    %3954 = vmatprep.subr.mxu0 0.0
    %3955 = vmatpush2.msra.mxu0 0.0
    %3956 = vmatprep.subr.mxu0 0.0
    %3957 = vmatpush2.msra.mxu0 0.0
    %3958 = vmatprep.subr.mxu0 0.0
    %3959 = vmatpush2.msra.mxu0 0.0
    %3960 = vmatprep.subr.mxu0 0.0
    %3961 = vmatpush2.msra.mxu0 0.0
    %3962 = vmatprep.subr.mxu0 0.0
    %3963 = vmatpush2.msra.mxu0 0.0
    %3964 = vmatprep.subr.mxu0 0.0
    %3965 = vmatpush2.msra.mxu0 0.0
    %3966 = vmatprep.mubr.f32.mxu0 0.0
    %3967 = vmatmul.mubr.f32.gmra.mxu0 %v3900
    %v3968 = vpop.f32.mrf.mxu0
    %v3969 = vadd.f32 %v3894, %v3968
    %v3970 = vpop.f32.mrf.mxu0
    %3971 = vdwg.mxu0
    %v3972 = vrot.slane %v222, 6
    %v3973 = vrot.slane %v227, 5
    %v3974 = vsel %vm378, %v3973, %v3972
    %v3976 = vadd.f32 %v3969, %v3974
    %v3977 = vxor.u32 %v3976, 2147483648
    %v3978 = vmul.f32 %v3977, 1.442695
    %v3979 = vpow.pop %v3978
    %v3980 = vadd.f32 %v3979, 1.0
    %v3981 = vrcp.pop %v3980
    %v3982 = vmul.f32 1.0, %v3981
    %v3983 = vtanh.pop %v3976
    %v3984 = vmul.f32 %v3982, %v3645
    %3986 = vrot.lane.b32.xlu0 %v3983, 32
    %v3987 = vpop.permute.xlu0 %3986
    %v3989 = vmul.f32 %v3982, %v3987
    %3991 = vrot.lane.b32.xlu0 %v3989, 32
    %v3992 = vpop.permute.xlu0 %3991
    %v3994 = vadd.f32 %v3984, %v3992
    %v3995 = vtanh.pop %v3994
    %3997 = vrot.lane.b32.xlu0 %v3995, 32
    %v3998 = vpop.permute.xlu0 %3997
    %v4000 = vmul.f32 %v3982, %v3998
    %4002 = vrot.lane.b32.xlu0 %v4000, 64
    %v4003 = vpop.permute.xlu0 %4002
    %v4005 = vsel %vm234, %v4003, %v3994
    %v4007 = vsel %vm1550, %v4005, 0
    %4009 = vmatprep.subr.mxu0 0.0
    %4010 = vmatpush1.msra.mxu0 0.0
    %4011 = vmatprep.subr.mxu0 0.0
    %4012 = vmatpush1.msra.mxu0 0.0
    %4013 = vmatprep.subr.mxu0 0.0
    %4014 = vmatpush1.msra.mxu0 0.0
    %4015 = vmatprep.subr.mxu0 0.0
    %4016 = vmatpush1.msra.mxu0 0.0
    %4017 = vmatprep.subr.mxu0 0.0
    %4018 = vmatpush1.msra.mxu0 0.0
    %4019 = vmatprep.subr.mxu0 0.0
    %4020 = vmatpush1.msra.mxu0 0.0
    %4021 = vmatprep.subr.mxu0 0.0
    %4022 = vmatpush1.msra.mxu0 0.0
    %4023 = vmatprep.subr.mxu0 0.0
    %4024 = vmatpush1.msra.mxu0 0.0
    %4025 = vmatprep.subr.mxu0 0.0
    %4026 = vmatpush1.msra.mxu0 %v1549
    %4027 = vmatprep.subr.mxu0 0.0
    %4028 = vmatpush1.msra.mxu0 %v1548
    %4029 = vmatprep.subr.mxu0 0.0
    %4030 = vmatpush1.msra.mxu0 %v1547
    %4031 = vmatprep.subr.mxu0 0.0
    %4032 = vmatpush1.msra.mxu0 %v1546
    %4033 = vmatprep.subr.mxu0 0.0
    %4034 = vmatpush1.msra.mxu0 %v1545
    %4035 = vmatprep.subr.mxu0 0.0
    %4036 = vmatpush1.msra.mxu0 %v1544
    %4037 = vmatprep.subr.mxu0 0.0
    %4038 = vmatpush1.msra.mxu0 %v1543
    %4039 = vmatprep.subr.mxu0 0.0
    %4040 = vmatpush1.msra.mxu0 %v1542
    %4041 = vmatprep.subr.mxu0 0.0
    %4042 = vmatpush2.msra.mxu0 0.0
    %4043 = vmatprep.subr.mxu0 0.0
    %4044 = vmatpush2.msra.mxu0 0.0
    %4045 = vmatprep.subr.mxu0 0.0
    %4046 = vmatpush2.msra.mxu0 0.0
    %4047 = vmatprep.subr.mxu0 0.0
    %4048 = vmatpush2.msra.mxu0 0.0
    %4049 = vmatprep.subr.mxu0 0.0
    %4050 = vmatpush2.msra.mxu0 0.0
    %4051 = vmatprep.subr.mxu0 0.0
    %4052 = vmatpush2.msra.mxu0 0.0
    %4053 = vmatprep.subr.mxu0 0.0
    %4054 = vmatpush2.msra.mxu0 0.0
    %4055 = vmatprep.subr.mxu0 0.0
    %4056 = vmatpush2.msra.mxu0 0.0
    %4057 = vmatprep.subr.mxu0 0.0
    %4058 = vmatpush2.msra.mxu0 0.0
    %4059 = vmatprep.subr.mxu0 0.0
    %4060 = vmatpush2.msra.mxu0 0.0
    %4061 = vmatprep.subr.mxu0 0.0
    %4062 = vmatpush2.msra.mxu0 0.0
    %4063 = vmatprep.subr.mxu0 0.0
    %4064 = vmatpush2.msra.mxu0 0.0
    %4065 = vmatprep.subr.mxu0 0.0
    %4066 = vmatpush2.msra.mxu0 0.0
    %4067 = vmatprep.subr.mxu0 0.0
    %4068 = vmatpush2.msra.mxu0 0.0
    %4069 = vmatprep.subr.mxu0 0.0
    %4070 = vmatpush2.msra.mxu0 0.0
    %4071 = vmatprep.subr.mxu0 0.0
    %4072 = vmatpush2.msra.mxu0 0.0
    %4073 = vmatprep.mubr.f32.mxu0 0.0
    %4074 = vmatmul.mubr.f32.gmra.mxu0 %v4007
    %v4075 = vpop.f32.mrf.mxu0
    %v4076 = vadd.f32 0.0, %v4075
    %v4077 = vpop.f32.mrf.mxu0
    %4078 = vdwg.mxu0
    %v4081 = vunpack.c.l.s4 1966171168
    %v4082 = vunpack.c.0.s8 %v4081
    %v4083 = vlaneseq
    %v4084 = vshrl.u32 %v4083, 7
    %v4085 = vsub.s32 %v4082, %v4084
    %v4086 = vrot.slane %v4076, %v4085
    %v4087 = vcombine.high %v4086, %v4086
    %v4089 = vunpack.c.l.s4 1966171168
    %v4090 = vunpack.c.0.s8 %v4089
    %v4091 = vlaneseq
    %v4092 = vshrl.u32 %v4091, 7
    %v4093 = vsub.s32 %v4090, %v4092
    %v4094 = vrot.slane %v4086, %v4093
    %v4096 = vunpack.c.l.s4 1966171168
    %v4097 = vunpack.c.0.s8 %v4096
    %v4098 = vlaneseq
    %v4099 = vshrl.u32 %v4098, 7
    %v4100 = vsub.s32 %v4097, %v4099
    %v4101 = vrot.slane %v4087, %v4100
    %v4102 = vlaneseq
    %v4103 = vshrl.u32 %v4102, 7
    %v4104 = vsub.s32 0, %v4103
    %v4105 = vrot.slane %v4094, %v4104
    %v4106 = vlaneseq
    %v4107 = vshrl.u32 %v4106, 7
    %v4108 = vsub.s32 0, %v4107
    %v4109 = vrot.slane %v4101, %v4108
    %v4112 = vadd.f32 %v4105, %v1540
    %v4113 = vadd.f32 %v4109, %v1541
    %v4114 = vtanh.pop %v4112
    %v4115 = vtanh.pop %v4113
    %v4116 = vmul.f32 %v4114, %v1665
    %v4117 = vmul.f32 %v4115, %v1665
    %v4118 = vsel %vm234, %v4116, 0.0
    %4119 = vadd.xlane.f32.xlu0 %v4118
    %v4120 = vpop.xlane.xlu0 %4119
    %v4121 = vsel %vm234, %v4117, 0.0
    %4122 = vadd.xlane.f32.xlu0 %v4121
    %v4123 = vpop.xlane.xlu0 %4122
    %v4124 = vrot.slane %v4120, 4
    %v4125 = vmax.f32 %v4120, %v4124
    %v4126 = vrot.slane %v4125, 2
    %v4127 = vmax.f32 %v4125, %v4126
    %v4128 = vrot.slane %v4127, 1
    %v4129 = vmax.f32 %v4127, %v4128
    %v4130 = vrot.slane %v4123, 4
    %v4131 = vmax.f32 %v4123, %v4130
    %v4132 = vrot.slane %v4131, 2
    %v4133 = vmax.f32 %v4131, %v4132
    %v4134 = vrot.slane %v4133, 1
    %v4135 = vmax.f32 %v4133, %v4134
    %v4136 = vsub.f32 %v4120, %v4129
    %v4137 = vsub.f32 %v4123, %v4135
    %v4138 = vmul.f32 %v4136, 1.442695
    %v4139 = vpow.pop %v4138
    %v4140 = vmul.f32 %v4137, 1.442695
    %v4141 = vpow.pop %v4140
    %v4142 = vrot.slane %v4139, 4
    %v4143 = vadd.f32 %v4139, %v4142
    %v4144 = vrot.slane %v4143, 2
    %v4145 = vadd.f32 %v4143, %v4144
    %v4146 = vrot.slane %v4145, 1
    %v4147 = vadd.f32 %v4145, %v4146
    %v4148 = vrot.slane %v4141, 4
    %v4149 = vadd.f32 %v4141, %v4148
    %v4150 = vrot.slane %v4149, 2
    %v4151 = vadd.f32 %v4149, %v4150
    %v4152 = vrot.slane %v4151, 1
    %v4153 = vadd.f32 %v4151, %v4152
    %v4154 = vrcp.pop %v4147
    %v4155 = vrcp.pop %v4153
    %v4156 = vmul.f32 %v4139, %v1538
    %v4157 = vmul.f32 %v4141, %v1539
    %v4158 = vsel %vm234, %v4156, 0.0
    %v4159 = vrot.slane %v4158, 4
    %v4160 = vadd.f32 %v4158, %v4159
    %v4161 = vrot.slane %v4160, 2
    %v4162 = vadd.f32 %v4160, %v4161
    %v4163 = vrot.slane %v4162, 1
    %v4164 = vadd.f32 %v4162, %v4163
    %v4165 = vsel %vm234, %v4157, 0.0
    %v4166 = vrot.slane %v4165, 4
    %v4167 = vadd.f32 %v4165, %v4166
    %v4168 = vrot.slane %v4167, 2
    %v4169 = vadd.f32 %v4167, %v4168
    %v4170 = vrot.slane %v4169, 1
    %v4171 = vadd.f32 %v4169, %v4170
    %v4172 = vmul.f32 %v4164, %v4154
    %v4173 = vmul.f32 %v4171, %v4155
    %v4174 = vsel %vm234, %v4003, 0
    %4176 = vmatprep.subr.mxu0 0.0
    %4177 = vmatpush1.msra.mxu0 0.0
    %4178 = vmatprep.subr.mxu0 0.0
    %4179 = vmatpush1.msra.mxu0 0.0
    %4180 = vmatprep.subr.mxu0 0.0
    %4181 = vmatpush1.msra.mxu0 0.0
    %4182 = vmatprep.subr.mxu0 0.0
    %4183 = vmatpush1.msra.mxu0 0.0
    %4184 = vmatprep.subr.mxu0 0.0
    %4185 = vmatpush1.msra.mxu0 0.0
    %4186 = vmatprep.subr.mxu0 0.0
    %4187 = vmatpush1.msra.mxu0 0.0
    %4188 = vmatprep.subr.mxu0 0.0
    %4189 = vmatpush1.msra.mxu0 0.0
    %4190 = vmatprep.subr.mxu0 0.0
    %4191 = vmatpush1.msra.mxu0 0.0
    %4192 = vmatprep.subr.mxu0 0.0
    %4193 = vmatpush1.msra.mxu0 0.0
    %4194 = vmatprep.subr.mxu0 0.0
    %4195 = vmatpush1.msra.mxu0 0.0
    %4196 = vmatprep.subr.mxu0 0.0
    %4197 = vmatpush1.msra.mxu0 0.0
    %4198 = vmatprep.subr.mxu0 0.0
    %4199 = vmatpush1.msra.mxu0 0.0
    %4200 = vmatprep.subr.mxu0 0.0
    %4201 = vmatpush1.msra.mxu0 %v1732
    %4202 = vmatprep.subr.mxu0 0.0
    %4203 = vmatpush1.msra.mxu0 %v1731
    %4204 = vmatprep.subr.mxu0 0.0
    %4205 = vmatpush1.msra.mxu0 %v1730
    %4206 = vmatprep.subr.mxu0 0.0
    %4207 = vmatpush1.msra.mxu0 %v1729
    %4208 = vmatprep.subr.mxu0 0.0
    %4209 = vmatpush2.msra.mxu0 0.0
    %4210 = vmatprep.subr.mxu0 0.0
    %4211 = vmatpush2.msra.mxu0 0.0
    %4212 = vmatprep.subr.mxu0 0.0
    %4213 = vmatpush2.msra.mxu0 0.0
    %4214 = vmatprep.subr.mxu0 0.0
    %4215 = vmatpush2.msra.mxu0 0.0
    %4216 = vmatprep.subr.mxu0 0.0
    %4217 = vmatpush2.msra.mxu0 0.0
    %4218 = vmatprep.subr.mxu0 0.0
    %4219 = vmatpush2.msra.mxu0 0.0
    %4220 = vmatprep.subr.mxu0 0.0
    %4221 = vmatpush2.msra.mxu0 0.0
    %4222 = vmatprep.subr.mxu0 0.0
    %4223 = vmatpush2.msra.mxu0 0.0
    %4224 = vmatprep.subr.mxu0 0.0
    %4225 = vmatpush2.msra.mxu0 0.0
    %4226 = vmatprep.subr.mxu0 0.0
    %4227 = vmatpush2.msra.mxu0 0.0
    %4228 = vmatprep.subr.mxu0 0.0
    %4229 = vmatpush2.msra.mxu0 0.0
    %4230 = vmatprep.subr.mxu0 0.0
    %4231 = vmatpush2.msra.mxu0 0.0
    %4232 = vmatprep.subr.mxu0 0.0
    %4233 = vmatpush2.msra.mxu0 0.0
    %4234 = vmatprep.subr.mxu0 0.0
    %4235 = vmatpush2.msra.mxu0 0.0
    %4236 = vmatprep.subr.mxu0 0.0
    %4237 = vmatpush2.msra.mxu0 0.0
    %4238 = vmatprep.subr.mxu0 0.0
    %4239 = vmatpush2.msra.mxu0 0.0
    %4240 = vmatprep.mubr.f32.mxu0 0.0
    %4241 = vmatmul.mubr.f32.gmra.mxu0 %v4174
    %v4242 = vpop.f32.mrf.mxu0
    %v4243 = vadd.f32 0.0, %v4242
    %v4244 = vpop.f32.mrf.mxu0
    %4245 = vdwg.mxu0
    %v4248 = vsel %vm378, %v4173, %v4172
    %v4249 = vsel %vm234, %v4248, 0
    %4251 = vmatprep.subr.mxu0 0.0
    %4252 = vmatpush1.msra.mxu0 0.0
    %4253 = vmatprep.subr.mxu0 0.0
    %4254 = vmatpush1.msra.mxu0 0.0
    %4255 = vmatprep.subr.mxu0 0.0
    %4256 = vmatpush1.msra.mxu0 0.0
    %4257 = vmatprep.subr.mxu0 0.0
    %4258 = vmatpush1.msra.mxu0 0.0
    %4259 = vmatprep.subr.mxu0 0.0
    %4260 = vmatpush1.msra.mxu0 0.0
    %4261 = vmatprep.subr.mxu0 0.0
    %4262 = vmatpush1.msra.mxu0 0.0
    %4263 = vmatprep.subr.mxu0 0.0
    %4264 = vmatpush1.msra.mxu0 0.0
    %4265 = vmatprep.subr.mxu0 0.0
    %4266 = vmatpush1.msra.mxu0 0.0
    %4267 = vmatprep.subr.mxu0 0.0
    %4268 = vmatpush1.msra.mxu0 0.0
    %4269 = vmatprep.subr.mxu0 0.0
    %4270 = vmatpush1.msra.mxu0 0.0
    %4271 = vmatprep.subr.mxu0 0.0
    %4272 = vmatpush1.msra.mxu0 0.0
    %4273 = vmatprep.subr.mxu0 0.0
    %4274 = vmatpush1.msra.mxu0 0.0
    %4275 = vmatprep.subr.mxu0 0.0
    %4276 = vmatpush1.msra.mxu0 %v1728
    %4277 = vmatprep.subr.mxu0 0.0
    %4278 = vmatpush1.msra.mxu0 %v1727
    %4279 = vmatprep.subr.mxu0 0.0
    %4280 = vmatpush1.msra.mxu0 %v1726
    %4281 = vmatprep.subr.mxu0 0.0
    %4282 = vmatpush1.msra.mxu0 %v1725
    %4283 = vmatprep.subr.mxu0 0.0
    %4284 = vmatpush2.msra.mxu0 0.0
    %4285 = vmatprep.subr.mxu0 0.0
    %4286 = vmatpush2.msra.mxu0 0.0
    %4287 = vmatprep.subr.mxu0 0.0
    %4288 = vmatpush2.msra.mxu0 0.0
    %4289 = vmatprep.subr.mxu0 0.0
    %4290 = vmatpush2.msra.mxu0 0.0
    %4291 = vmatprep.subr.mxu0 0.0
    %4292 = vmatpush2.msra.mxu0 0.0
    %4293 = vmatprep.subr.mxu0 0.0
    %4294 = vmatpush2.msra.mxu0 0.0
    %4295 = vmatprep.subr.mxu0 0.0
    %4296 = vmatpush2.msra.mxu0 0.0
    %4297 = vmatprep.subr.mxu0 0.0
    %4298 = vmatpush2.msra.mxu0 0.0
    %4299 = vmatprep.subr.mxu0 0.0
    %4300 = vmatpush2.msra.mxu0 0.0
    %4301 = vmatprep.subr.mxu0 0.0
    %4302 = vmatpush2.msra.mxu0 0.0
    %4303 = vmatprep.subr.mxu0 0.0
    %4304 = vmatpush2.msra.mxu0 0.0
    %4305 = vmatprep.subr.mxu0 0.0
    %4306 = vmatpush2.msra.mxu0 0.0
    %4307 = vmatprep.subr.mxu0 0.0
    %4308 = vmatpush2.msra.mxu0 0.0
    %4309 = vmatprep.subr.mxu0 0.0
    %4310 = vmatpush2.msra.mxu0 0.0
    %4311 = vmatprep.subr.mxu0 0.0
    %4312 = vmatpush2.msra.mxu0 0.0
    %4313 = vmatprep.subr.mxu0 0.0
    %4314 = vmatpush2.msra.mxu0 0.0
    %4315 = vmatprep.mubr.f32.mxu0 0.0
    %4316 = vmatmul.mubr.f32.gmra.mxu0 %v4249
    %v4317 = vpop.f32.mrf.mxu0
    %v4318 = vadd.f32 %v4243, %v4317
    %v4319 = vpop.f32.mrf.mxu0
    %4320 = vdwg.mxu0
    %v4321 = vrot.slane %v222, 7
    %v4322 = vrot.slane %v227, 6
    %v4323 = vsel %vm378, %v4322, %v4321
    %v4325 = vadd.f32 %v4318, %v4323
    %v4326 = vxor.u32 %v4325, 2147483648
    %v4327 = vmul.f32 %v4326, 1.442695
    %v4328 = vpow.pop %v4327
    %v4329 = vadd.f32 %v4328, 1.0
    %v4330 = vrcp.pop %v4329
    %v4331 = vmul.f32 1.0, %v4330
    %v4332 = vtanh.pop %v4325
    %v4333 = vmul.f32 %v4331, %v3994
    %4335 = vrot.lane.b32.xlu0 %v4332, 32
    %v4336 = vpop.permute.xlu0 %4335
    %v4338 = vmul.f32 %v4331, %v4336
    %4340 = vrot.lane.b32.xlu0 %v4338, 32
    %v4341 = vpop.permute.xlu0 %4340
    %v4343 = vadd.f32 %v4333, %v4341
    %v4344 = vtanh.pop %v4343
    %4346 = vrot.lane.b32.xlu0 %v4344, 32
    %v4347 = vpop.permute.xlu0 %4346
    %v4349 = vmul.f32 %v4331, %v4347
    %4351 = vrot.lane.b32.xlu0 %v4349, 64
    %v4352 = vpop.permute.xlu0 %4351
    %4354 = vrot.lane.b32.xlu0 %v4248, 32
    %v4355 = vpop.permute.xlu0 %4354
    %v4357 = vsel %vm234, %v4352, %v4355
    %v4358 = vld [vmem:[%s12] sm:$0xff]
    %v4359 = vld [vmem:[%s12 + $0x8] sm:$0xff]
    %v4360 = vld [vmem:[%s12 + $0x10] sm:$0xff]
    %v4361 = vld [vmem:[%s12 + $0x18] sm:$0xff]
    %v4362 = vld [vmem:[%s12 + $0x20] sm:$0xff]
    %v4363 = vld [vmem:[%s12 + $0x28] sm:$0xff]
    %v4364 = vld [vmem:[%s12 + $0x30] sm:$0xff]
    %v4365 = vld [vmem:[%s12 + $0x38] sm:$0xff]
    %v4366 = vld [vmem:[%s13] sm:$0x1]
    %v4368 = vlaneseq
    %v4369 = vshrl.u32 %v4368, 7
    %v4370 = vsub.s32 0, %v4369
    %v4371 = vrot.slane %v4366, %v4370
    %v4374 = vsel %vm1550, %v4357, 0
    %4376 = vmatprep.subr.mxu0 0.0
    %4377 = vmatpush1.msra.mxu0 0.0
    %4378 = vmatprep.subr.mxu0 0.0
    %4379 = vmatpush1.msra.mxu0 0.0
    %4380 = vmatprep.subr.mxu0 0.0
    %4381 = vmatpush1.msra.mxu0 0.0
    %4382 = vmatprep.subr.mxu0 0.0
    %4383 = vmatpush1.msra.mxu0 0.0
    %4384 = vmatprep.subr.mxu0 0.0
    %4385 = vmatpush1.msra.mxu0 0.0
    %4386 = vmatprep.subr.mxu0 0.0
    %4387 = vmatpush1.msra.mxu0 0.0
    %4388 = vmatprep.subr.mxu0 0.0
    %4389 = vmatpush1.msra.mxu0 0.0
    %4390 = vmatprep.subr.mxu0 0.0
    %4391 = vmatpush1.msra.mxu0 0.0
    %4392 = vmatprep.subr.mxu0 0.0
    %4393 = vmatpush1.msra.mxu0 %v4365
    %4394 = vmatprep.subr.mxu0 0.0
    %4395 = vmatpush1.msra.mxu0 %v4364
    %4396 = vmatprep.subr.mxu0 0.0
    %4397 = vmatpush1.msra.mxu0 %v4363
    %4398 = vmatprep.subr.mxu0 0.0
    %4399 = vmatpush1.msra.mxu0 %v4362
    %4400 = vmatprep.subr.mxu0 0.0
    %4401 = vmatpush1.msra.mxu0 %v4361
    %4402 = vmatprep.subr.mxu0 0.0
    %4403 = vmatpush1.msra.mxu0 %v4360
    %4404 = vmatprep.subr.mxu0 0.0
    %4405 = vmatpush1.msra.mxu0 %v4359
    %4406 = vmatprep.subr.mxu0 0.0
    %4407 = vmatpush1.msra.mxu0 %v4358
    %4408 = vmatprep.subr.mxu0 0.0
    %4409 = vmatpush2.msra.mxu0 0.0
    %4410 = vmatprep.subr.mxu0 0.0
    %4411 = vmatpush2.msra.mxu0 0.0
    %4412 = vmatprep.subr.mxu0 0.0
    %4413 = vmatpush2.msra.mxu0 0.0
    %4414 = vmatprep.subr.mxu0 0.0
    %4415 = vmatpush2.msra.mxu0 0.0
    %4416 = vmatprep.subr.mxu0 0.0
    %4417 = vmatpush2.msra.mxu0 0.0
    %4418 = vmatprep.subr.mxu0 0.0
    %4419 = vmatpush2.msra.mxu0 0.0
    %4420 = vmatprep.subr.mxu0 0.0
    %4421 = vmatpush2.msra.mxu0 0.0
    %4422 = vmatprep.subr.mxu0 0.0
    %4423 = vmatpush2.msra.mxu0 0.0
    %4424 = vmatprep.subr.mxu0 0.0
    %4425 = vmatpush2.msra.mxu0 0.0
    %4426 = vmatprep.subr.mxu0 0.0
    %4427 = vmatpush2.msra.mxu0 0.0
    %4428 = vmatprep.subr.mxu0 0.0
    %4429 = vmatpush2.msra.mxu0 0.0
    %4430 = vmatprep.subr.mxu0 0.0
    %4431 = vmatpush2.msra.mxu0 0.0
    %4432 = vmatprep.subr.mxu0 0.0
    %4433 = vmatpush2.msra.mxu0 0.0
    %4434 = vmatprep.subr.mxu0 0.0
    %4435 = vmatpush2.msra.mxu0 0.0
    %4436 = vmatprep.subr.mxu0 0.0
    %4437 = vmatpush2.msra.mxu0 0.0
    %4438 = vmatprep.subr.mxu0 0.0
    %4439 = vmatpush2.msra.mxu0 0.0
    %4440 = vmatprep.mubr.f32.mxu0 0.0
    %4441 = vmatmul.mubr.f32.gmra.mxu0 %v4374
    %v4442 = vpop.f32.mrf.mxu0
    %v4443 = vadd.f32 %v4371, %v4442
    %v4444 = vpop.f32.mrf.mxu0
    %4445 = vdwg.mxu0
    %vm4446 = vcmask 25600
    %4447 = vst.msk [vmem:[#allocation4] sm:$0x3] %vm4446, %v4443
    // Predicated region
    $region58: #{attn_lstm_forward.1} parent=1 // pred_check
      _
    $region59: #{attn_lstm_forward.1} parent=1 // pred_check_branch
      %4449 = sbr.rel (0) target = $region61
    $region60: #{attn_lstm_forward.1} parent=1 // pred_region
      %s4451 = ssub.s32 32, 32
      %4452 = vsyncadd [#allocation5], %s4451
      %s4454 = sshll.u32 [#allocation4], 4
      %s4455 = int_to_ptr.vmem [resolvable:$true] %s4454
      %4457 = dma.vmem_to_hbm [thread:$0]  %s4455, 32, %s14, [#allocation5]
    $region61: #{attn_lstm_forward.1} parent=1 // pred_fallthru
      _
    // Predicated region
    $region62: #{attn_lstm_forward.1} parent=1 // pred_check
      _
    $region63: #{attn_lstm_forward.1} parent=1 // pred_check_branch
      %4459 = sbr.rel (0) target = $region65
    $region64: #{attn_lstm_forward.1} parent=1 // pred_region
      %4460 = dma.done [#allocation5], 32
    $region65: #{attn_lstm_forward.1} parent=1 // pred_fallthru
      _
    %4461 = vsyncpa [#allocation5], 1

</llo_original>
